<compile_context>
chip_gen: v5e
topology: v5e:2x2
jax: 0.10.0
libtpu: 0.0.40
codegen_flags: <defaults>
</compile_context>

<pallas_src>
import functools

import jax
import jax.numpy as jnp
from jax.experimental import pallas as pl
from jax.experimental.pallas import tpu as pltpu


def _conv3x3_bn_relu_kernel(x_ref, halo_ref, w_ref, shift_ref, o_ref,
                            slab_ref, acc_ref, *, wp):
    """One M-tile of the fused 3x3 conv + folded-BN + ReLU.

    x_ref:     (TM, C)        bf16  main rows of the flat padded-NHWC stream
    halo_ref:  (1, HALO, C)   bf16  first HALO rows of the *next* tile
    w_ref:     (9, C, Fp)     bf16  conv weights, BN scale folded, tap-major
    shift_ref: (1, Fp)        f32   folded BN shift
    o_ref:     (TM, Fp)       f32   output rows (padded pixel grid, NHWC-flat)
    slab_ref:  (TM+HALO, C)   f32   VMEM scratch: contiguous slab
    acc_ref:   (TM, Fp)       f32   VMEM scratch: accumulator
    """
    tm = x_ref.shape[0]
    halo = halo_ref.shape[1]

    # Stage a contiguous slab (tile rows + halo rows) in VMEM (f32 staging so
    # the sublane-unaligned tap slices below stay on the simple 32-bit path).
    slab_ref[0:tm, :] = x_ref[...].astype(jnp.float32)
    slab_ref[tm:tm + halo, :] = halo_ref[0].astype(jnp.float32)

    acc_ref[...] = jnp.zeros_like(acc_ref)

    # 3x3 conv as 9 shifted (TM, C) x (C, Fp) bf16 MXU matmuls, f32 accumulate.
    for k in range(9):
        dh, dw = divmod(k, 3)
        off = dh * wp + dw                      # static tap offset in the slab
        lhs = slab_ref[off:off + tm, :].astype(jnp.bfloat16)
        acc_ref[...] += jnp.dot(lhs, w_ref[k],
                                preferred_element_type=jnp.float32)

    o_ref[...] = jnp.maximum(acc_ref[...] + shift_ref[...],
                             0.0).astype(o_ref.dtype)


def conv2d_batchnorm_relu(x, weight, bias, gamma, beta, running_mean,
                          running_var, *, eps=1e-5, tile_m=512):
    """x: (N, C, H, W) f32. weight: (F, C, 3, 3). Returns (N, F, H, W) f32."""
    N, C, H, W = x.shape
    F, Cw, KH, KW = weight.shape
    assert KH == 3 and KW == 3 and Cw == C

    Hp, Wp = H + 2, W + 2
    halo = 2 * Wp + 2                       # max tap offset within a tile

    # Tile sizing: multiple of 8 sublanes and at least one halo long.
    tile_m = max(int(tile_m), halo)
    tile_m = 8 * ((tile_m + 7) // 8)

    M_total = N * Hp * Wp                   # outputs on the padded pixel grid
    num_tiles = (M_total + tile_m - 1) // tile_m
    M_grid = num_tiles * tile_m

    Fp = 128 * ((F + 127) // 128)           # lane-dense output channels

    # ---- flat padded-NHWC pixel stream (single copy of the input, bf16) ----
    xp = jnp.pad(x, ((0, 0), (0, 0), (1, 1), (1, 1)))          # (N, C, Hp, Wp)
    x_flat = xp.transpose(0, 2, 3, 1).reshape(M_total, C)      # (N*Hp*Wp, C)

    lead = Wp + 1                            # shift so tap offsets are >= 0
    total_len = M_grid + tile_m              # room for the last tile's halo
    tail = total_len - lead - M_total
    stream = jnp.concatenate(
        [jnp.zeros((lead, C), x_flat.dtype), x_flat,
         jnp.zeros((tail, C), x_flat.dtype)], axis=0).astype(jnp.bfloat16)

    x_main = stream[:M_grid]                                        # (M_grid, C)
    x_halo = stream[tile_m:tile_m + M_grid].reshape(
        num_tiles, tile_m, C)[:, :halo, :]                          # (nt, halo, C)

    # ---- fold BatchNorm (eval mode) into weights / shift ----
    scale = gamma / jnp.sqrt(running_var + eps)                     # (F,)
    shift = (bias - running_mean) * scale + beta                    # (F,)
    w_scaled = weight * scale[:, None, None, None]                  # (F, C, 3, 3)
    w_taps = jnp.transpose(w_scaled, (2, 3, 1, 0)).reshape(9, C, F)  # tap-major
    w_taps = jnp.pad(w_taps, ((0, 0), (0, 0), (0, Fp - F))).astype(jnp.bfloat16)
    shift_p = jnp.pad(shift, (0, Fp - F)).reshape(1, Fp).astype(jnp.float32)

    kernel = functools.partial(_conv3x3_bn_relu_kernel, wp=Wp)

    out = pl.pallas_call(
        kernel,
        out_shape=jax.ShapeDtypeStruct((M_grid, Fp), jnp.float32),
        grid_spec=pltpu.PrefetchScalarGridSpec(
            num_scalar_prefetch=0,
            grid=(num_tiles,),
            in_specs=[
                pl.BlockSpec((tile_m, C), lambda i: (i, 0)),      # main rows
                pl.BlockSpec((1, halo, C), lambda i: (i, 0, 0)),  # halo rows
                pl.BlockSpec((9, C, Fp), lambda i: (0, 0, 0)),    # weights (resident)
                pl.BlockSpec((1, Fp), lambda i: (0, 0)),          # BN shift
            ],
            out_specs=pl.BlockSpec((tile_m, Fp), lambda i: (i, 0)),
            scratch_shapes=[
                pltpu.VMEM((tile_m + halo, C), jnp.float32),      # slab
                pltpu.VMEM((tile_m, Fp), jnp.float32),            # accumulator
            ]),
        compiler_params=pltpu.CompilerParams(
            dimension_semantics=("parallel",)),
    )(x_main, x_halo, w_taps, shift_p)

    # Valid interior of the padded output grid, NHWC -> NCHW (module contract).
    y = out[:M_total].reshape(N, Hp, Wp, Fp)[:, 1:H + 1, 1:W + 1, :F]
    return y.transpose(0, 3, 1, 2)


def _reference(x, weight, bias, gamma, beta, mean, var, eps=1e-5):
    y = jax.lax.conv_general_dilated(
        x, weight, window_strides=(1, 1), padding=((1, 1), (1, 1)),
        dimension_numbers=("NCHW", "OIHW", "NCHW"))
    y = y + bias.reshape(1, -1, 1, 1)
    y = (y - mean.reshape(1, -1, 1, 1)) / jnp.sqrt(var.reshape(1, -1, 1, 1) + eps)
    y = y * gamma.reshape(1, -1, 1, 1) + beta.reshape(1, -1, 1, 1)
    return jnp.maximum(y, 0.0)


if __name__ == "__main__":
    key = jax.random.PRNGKey(0)
    N, C, H, W = 2, 4, 16, 16
    Fout, Ksz = 8, 3

    k1, k2, k3, k4, k5, k6, k7 = jax.random.split(key, 7)
    x = jax.random.normal(k1, (N, C, H, W), dtype=jnp.float32)
    weight = 0.1 * jax.random.normal(k2, (Fout, C, Ksz, Ksz), dtype=jnp.float32)
    bias = 0.1 * jax.random.normal(k3, (Fout,), dtype=jnp.float32)
    gamma = 1.0 + 0.1 * jax.random.normal(k4, (Fout,), dtype=jnp.float32)
    beta = 0.1 * jax.random.normal(k5, (Fout,), dtype=jnp.float32)
    running_mean = 0.1 * jax.random.normal(k6, (Fout,), dtype=jnp.float32)
    running_var = jnp.abs(1.0 + 0.1 * jax.random.normal(k7, (Fout,), dtype=jnp.float32))

    out = conv2d_batchnorm_relu(x, weight, bias, gamma, beta,
                                running_mean, running_var)
    out = jax.block_until_ready(out)

    ref = _reference(x, weight, bias, gamma, beta, running_mean, running_var)
    assert out.shape == (N, Fout, H, W)
    # bf16 MXU operands, f32 accumulation -> slightly looser tolerance vs f32 ref.
    assert jnp.allclose(out, ref, atol=3e-2, rtol=3e-2)

    print("KERNEL_OK")
</pallas_src>

<mosaic_0001>
module attributes {stable_mosaic.version = 11 : i64} {
  func.func @_conv3x3_bn_relu_kernel(%arg0: i32, %arg1: memref<512x4xbf16, #tpu.memory_space<vmem>>, %arg2: memref<1x38x4xbf16, #tpu.memory_space<vmem>>, %arg3: memref<9x4x128xbf16, #tpu.memory_space<vmem>>, %arg4: memref<1x128xf32, #tpu.memory_space<vmem>>, %arg5: memref<512x128xf32, #tpu.memory_space<vmem>>, %arg6: memref<550x4xf32, #tpu.memory_space<vmem>>, %arg7: memref<512x128xf32, #tpu.memory_space<vmem>>) attributes {dimension_semantics = [#tpu.dimension_semantics<parallel>], iteration_bounds = array<i64: 2>, scalar_prefetch = 0 : i64, scratch_operands = 2 : i64, tpu.core_type = #tpu.core_type<tc>, window_params = [{transform_indices = @transform_0, window_bounds = array<i64: 512, 4>}, {transform_indices = @transform_1, window_bounds = array<i64: 1, 38, 4>}, {pipeline_mode = #tpu.pipeline_mode<synchronous>, transform_indices = @transform_2, window_bounds = array<i64: 9, 4, 128>}, {pipeline_mode = #tpu.pipeline_mode<synchronous>, transform_indices = @transform_3, window_bounds = array<i64: 1, 128>}, {transform_indices = @transform_4, window_bounds = array<i64: 512, 128>}]} {
    %c0 = arith.constant 0 : index
    %c0_0 = arith.constant 0 : index
    %0 = vector.load %arg1[%c0, %c0_0] : memref<512x4xbf16, #tpu.memory_space<vmem>>, vector<512x4xbf16>
    %1 = arith.extf %0 : vector<512x4xbf16> to vector<512x4xf32>
    %c0_1 = arith.constant 0 : index
    %c0_2 = arith.constant 0 : index
    %2 = vector.load %arg6[%c0_1, %c0_2] : memref<550x4xf32, #tpu.memory_space<vmem>>, vector<512x4xf32>
    tpu.vector_store %arg6[%c0_1, %c0_2], %1 {strides = array<i32>} : memref<550x4xf32, #tpu.memory_space<vmem>>, vector<512x4xf32>,
    %c0_3 = arith.constant 0 : index
    %c0_4 = arith.constant 0 : index
    %c0_5 = arith.constant 0 : index
    %3 = vector.load %arg2[%c0_3, %c0_4, %c0_5] : memref<1x38x4xbf16, #tpu.memory_space<vmem>>, vector<1x38x4xbf16>
    %4 = vector.shape_cast %3 : vector<1x38x4xbf16> to vector<38x4xbf16>
    %5 = arith.extf %4 : vector<38x4xbf16> to vector<38x4xf32>
    %c512 = arith.constant 512 : index
    %c0_6 = arith.constant 0 : index
    %6 = vector.load %arg6[%c512, %c0_6] : memref<550x4xf32, #tpu.memory_space<vmem>>, vector<38x4xf32>
    tpu.vector_store %arg6[%c512, %c0_6], %5 {strides = array<i32>} : memref<550x4xf32, #tpu.memory_space<vmem>>, vector<38x4xf32>,
    %cst = arith.constant 0.000000e+00 : f32
    %7 = vector.broadcast %cst : f32 to vector<512x128xf32>
    %c0_7 = arith.constant 0 : index
    %c0_8 = arith.constant 0 : index
    %8 = vector.load %arg7[%c0_7, %c0_8] : memref<512x128xf32, #tpu.memory_space<vmem>>, vector<512x128xf32>
    tpu.vector_store %arg7[%c0_7, %c0_8], %7 {strides = array<i32>} : memref<512x128xf32, #tpu.memory_space<vmem>>, vector<512x128xf32>,
    %c0_9 = arith.constant 0 : index
    %c0_10 = arith.constant 0 : index
    %9 = vector.load %arg6[%c0_9, %c0_10] : memref<550x4xf32, #tpu.memory_space<vmem>>, vector<512x4xf32>
    %10 = arith.truncf %9 : vector<512x4xf32> to vector<512x4xbf16>
    %c0_11 = arith.constant 0 : index
    %c0_12 = arith.constant 0 : index
    %11 = vector.load %arg7[%c0_11, %c0_12] : memref<512x128xf32, #tpu.memory_space<vmem>>, vector<512x128xf32>
    %c0_13 = arith.constant 0 : index
    %c0_14 = arith.constant 0 : index
    %c0_15 = arith.constant 0 : index
    %12 = vector.load %arg3[%c0_13, %c0_14, %c0_15] : memref<9x4x128xbf16, #tpu.memory_space<vmem>>, vector<1x4x128xbf16>
    %13 = vector.shape_cast %12 : vector<1x4x128xbf16> to vector<4x128xbf16>
    %cst_16 = arith.constant dense<0.000000e+00> : vector<512x128xf32>
    %14 = tpu.matmul %10, %13, %cst_16 {dimension_numbers = #tpu.dot_dimension_numbers<[1], [0], [0], [1], [0, 0, 1, 1], [], []>} : vector<512x4xbf16>, vector<4x128xbf16>, vector<512x128xf32> -> vector<512x128xf32>
    %15 = arith.addf %11, %14 : vector<512x128xf32>
    %c0_17 = arith.constant 0 : index
    %c0_18 = arith.constant 0 : index
    %16 = vector.load %arg7[%c0_17, %c0_18] : memref<512x128xf32, #tpu.memory_space<vmem>>, vector<512x128xf32>
    tpu.vector_store %arg7[%c0_17, %c0_18], %15 {strides = array<i32>} : memref<512x128xf32, #tpu.memory_space<vmem>>, vector<512x128xf32>,
    %c1 = arith.constant 1 : index
    %c0_19 = arith.constant 0 : index
    %17 = vector.load %arg6[%c1, %c0_19] : memref<550x4xf32, #tpu.memory_space<vmem>>, vector<512x4xf32>
    %18 = arith.truncf %17 : vector<512x4xf32> to vector<512x4xbf16>
    %c0_20 = arith.constant 0 : index
    %c0_21 = arith.constant 0 : index
    %19 = vector.load %arg7[%c0_20, %c0_21] : memref<512x128xf32, #tpu.memory_space<vmem>>, vector<512x128xf32>
    %c1_22 = arith.constant 1 : index
    %c0_23 = arith.constant 0 : index
    %c0_24 = arith.constant 0 : index
    %20 = vector.load %arg3[%c1_22, %c0_23, %c0_24] : memref<9x4x128xbf16, #tpu.memory_space<vmem>>, vector<1x4x128xbf16>
    %21 = vector.shape_cast %20 : vector<1x4x128xbf16> to vector<4x128xbf16>
    %cst_25 = arith.constant dense<0.000000e+00> : vector<512x128xf32>
    %22 = tpu.matmul %18, %21, %cst_25 {dimension_numbers = #tpu.dot_dimension_numbers<[1], [0], [0], [1], [0, 0, 1, 1], [], []>} : vector<512x4xbf16>, vector<4x128xbf16>, vector<512x128xf32> -> vector<512x128xf32>
    %23 = arith.addf %19, %22 : vector<512x128xf32>
    %c0_26 = arith.constant 0 : index
    %c0_27 = arith.constant 0 : index
    %24 = vector.load %arg7[%c0_26, %c0_27] : memref<512x128xf32, #tpu.memory_space<vmem>>, vector<512x128xf32>
    tpu.vector_store %arg7[%c0_26, %c0_27], %23 {strides = array<i32>} : memref<512x128xf32, #tpu.memory_space<vmem>>, vector<512x128xf32>,
    %c2 = arith.constant 2 : index
    %c0_28 = arith.constant 0 : index
    %25 = vector.load %arg6[%c2, %c0_28] : memref<550x4xf32, #tpu.memory_space<vmem>>, vector<512x4xf32>
    %26 = arith.truncf %25 : vector<512x4xf32> to vector<512x4xbf16>
    %c0_29 = arith.constant 0 : index
    %c0_30 = arith.constant 0 : index
    %27 = vector.load %arg7[%c0_29, %c0_30] : memref<512x128xf32, #tpu.memory_space<vmem>>, vector<512x128xf32>
    %c2_31 = arith.constant 2 : index
    %c0_32 = arith.constant 0 : index
    %c0_33 = arith.constant 0 : index
    %28 = vector.load %arg3[%c2_31, %c0_32, %c0_33] : memref<9x4x128xbf16, #tpu.memory_space<vmem>>, vector<1x4x128xbf16>
    %29 = vector.shape_cast %28 : vector<1x4x128xbf16> to vector<4x128xbf16>
    %cst_34 = arith.constant dense<0.000000e+00> : vector<512x128xf32>
    %30 = tpu.matmul %26, %29, %cst_34 {dimension_numbers = #tpu.dot_dimension_numbers<[1], [0], [0], [1], [0, 0, 1, 1], [], []>} : vector<512x4xbf16>, vector<4x128xbf16>, vector<512x128xf32> -> vector<512x128xf32>
    %31 = arith.addf %27, %30 : vector<512x128xf32>
    %c0_35 = arith.constant 0 : index
    %c0_36 = arith.constant 0 : index
    %32 = vector.load %arg7[%c0_35, %c0_36] : memref<512x128xf32, #tpu.memory_space<vmem>>, vector<512x128xf32>
    tpu.vector_store %arg7[%c0_35, %c0_36], %31 {strides = array<i32>} : memref<512x128xf32, #tpu.memory_space<vmem>>, vector<512x128xf32>,
    %c18 = arith.constant 18 : index
    %c0_37 = arith.constant 0 : index
    %33 = vector.load %arg6[%c18, %c0_37] : memref<550x4xf32, #tpu.memory_space<vmem>>, vector<512x4xf32>
    %34 = arith.truncf %33 : vector<512x4xf32> to vector<512x4xbf16>
    %c0_38 = arith.constant 0 : index
    %c0_39 = arith.constant 0 : index
    %35 = vector.load %arg7[%c0_38, %c0_39] : memref<512x128xf32, #tpu.memory_space<vmem>>, vector<512x128xf32>
    %c3 = arith.constant 3 : index
    %c0_40 = arith.constant 0 : index
    %c0_41 = arith.constant 0 : index
    %36 = vector.load %arg3[%c3, %c0_40, %c0_41] : memref<9x4x128xbf16, #tpu.memory_space<vmem>>, vector<1x4x128xbf16>
    %37 = vector.shape_cast %36 : vector<1x4x128xbf16> to vector<4x128xbf16>
    %cst_42 = arith.constant dense<0.000000e+00> : vector<512x128xf32>
    %38 = tpu.matmul %34, %37, %cst_42 {dimension_numbers = #tpu.dot_dimension_numbers<[1], [0], [0], [1], [0, 0, 1, 1], [], []>} : vector<512x4xbf16>, vector<4x128xbf16>, vector<512x128xf32> -> vector<512x128xf32>
    %39 = arith.addf %35, %38 : vector<512x128xf32>
    %c0_43 = arith.constant 0 : index
    %c0_44 = arith.constant 0 : index
    %40 = vector.load %arg7[%c0_43, %c0_44] : memref<512x128xf32, #tpu.memory_space<vmem>>, vector<512x128xf32>
    tpu.vector_store %arg7[%c0_43, %c0_44], %39 {strides = array<i32>} : memref<512x128xf32, #tpu.memory_space<vmem>>, vector<512x128xf32>,
    %c19 = arith.constant 19 : index
    %c0_45 = arith.constant 0 : index
    %41 = vector.load %arg6[%c19, %c0_45] : memref<550x4xf32, #tpu.memory_space<vmem>>, vector<512x4xf32>
    %42 = arith.truncf %41 : vector<512x4xf32> to vector<512x4xbf16>
    %c0_46 = arith.constant 0 : index
    %c0_47 = arith.constant 0 : index
    %43 = vector.load %arg7[%c0_46, %c0_47] : memref<512x128xf32, #tpu.memory_space<vmem>>, vector<512x128xf32>
    %c4 = arith.constant 4 : index
    %c0_48 = arith.constant 0 : index
    %c0_49 = arith.constant 0 : index
    %44 = vector.load %arg3[%c4, %c0_48, %c0_49] : memref<9x4x128xbf16, #tpu.memory_space<vmem>>, vector<1x4x128xbf16>
    %45 = vector.shape_cast %44 : vector<1x4x128xbf16> to vector<4x128xbf16>
    %cst_50 = arith.constant dense<0.000000e+00> : vector<512x128xf32>
    %46 = tpu.matmul %42, %45, %cst_50 {dimension_numbers = #tpu.dot_dimension_numbers<[1], [0], [0], [1], [0, 0, 1, 1], [], []>} : vector<512x4xbf16>, vector<4x128xbf16>, vector<512x128xf32> -> vector<512x128xf32>
    %47 = arith.addf %43, %46 : vector<512x128xf32>
    %c0_51 = arith.constant 0 : index
    %c0_52 = arith.constant 0 : index
    %48 = vector.load %arg7[%c0_51, %c0_52] : memref<512x128xf32, #tpu.memory_space<vmem>>, vector<512x128xf32>
    tpu.vector_store %arg7[%c0_51, %c0_52], %47 {strides = array<i32>} : memref<512x128xf32, #tpu.memory_space<vmem>>, vector<512x128xf32>,
    %c20 = arith.constant 20 : index
    %c0_53 = arith.constant 0 : index
    %49 = vector.load %arg6[%c20, %c0_53] : memref<550x4xf32, #tpu.memory_space<vmem>>, vector<512x4xf32>
    %50 = arith.truncf %49 : vector<512x4xf32> to vector<512x4xbf16>
    %c0_54 = arith.constant 0 : index
    %c0_55 = arith.constant 0 : index
    %51 = vector.load %arg7[%c0_54, %c0_55] : memref<512x128xf32, #tpu.memory_space<vmem>>, vector<512x128xf32>
    %c5 = arith.constant 5 : index
    %c0_56 = arith.constant 0 : index
    %c0_57 = arith.constant 0 : index
    %52 = vector.load %arg3[%c5, %c0_56, %c0_57] : memref<9x4x128xbf16, #tpu.memory_space<vmem>>, vector<1x4x128xbf16>
    %53 = vector.shape_cast %52 : vector<1x4x128xbf16> to vector<4x128xbf16>
    %cst_58 = arith.constant dense<0.000000e+00> : vector<512x128xf32>
    %54 = tpu.matmul %50, %53, %cst_58 {dimension_numbers = #tpu.dot_dimension_numbers<[1], [0], [0], [1], [0, 0, 1, 1], [], []>} : vector<512x4xbf16>, vector<4x128xbf16>, vector<512x128xf32> -> vector<512x128xf32>
    %55 = arith.addf %51, %54 : vector<512x128xf32>
    %c0_59 = arith.constant 0 : index
    %c0_60 = arith.constant 0 : index
    %56 = vector.load %arg7[%c0_59, %c0_60] : memref<512x128xf32, #tpu.memory_space<vmem>>, vector<512x128xf32>
    tpu.vector_store %arg7[%c0_59, %c0_60], %55 {strides = array<i32>} : memref<512x128xf32, #tpu.memory_space<vmem>>, vector<512x128xf32>,
    %c36 = arith.constant 36 : index
    %c0_61 = arith.constant 0 : index
    %57 = vector.load %arg6[%c36, %c0_61] : memref<550x4xf32, #tpu.memory_space<vmem>>, vector<512x4xf32>
    %58 = arith.truncf %57 : vector<512x4xf32> to vector<512x4xbf16>
    %c0_62 = arith.constant 0 : index
    %c0_63 = arith.constant 0 : index
    %59 = vector.load %arg7[%c0_62, %c0_63] : memref<512x128xf32, #tpu.memory_space<vmem>>, vector<512x128xf32>
    %c6 = arith.constant 6 : index
    %c0_64 = arith.constant 0 : index
    %c0_65 = arith.constant 0 : index
    %60 = vector.load %arg3[%c6, %c0_64, %c0_65] : memref<9x4x128xbf16, #tpu.memory_space<vmem>>, vector<1x4x128xbf16>
    %61 = vector.shape_cast %60 : vector<1x4x128xbf16> to vector<4x128xbf16>
    %cst_66 = arith.constant dense<0.000000e+00> : vector<512x128xf32>
    %62 = tpu.matmul %58, %61, %cst_66 {dimension_numbers = #tpu.dot_dimension_numbers<[1], [0], [0], [1], [0, 0, 1, 1], [], []>} : vector<512x4xbf16>, vector<4x128xbf16>, vector<512x128xf32> -> vector<512x128xf32>
    %63 = arith.addf %59, %62 : vector<512x128xf32>
    %c0_67 = arith.constant 0 : index
    %c0_68 = arith.constant 0 : index
    %64 = vector.load %arg7[%c0_67, %c0_68] : memref<512x128xf32, #tpu.memory_space<vmem>>, vector<512x128xf32>
    tpu.vector_store %arg7[%c0_67, %c0_68], %63 {strides = array<i32>} : memref<512x128xf32, #tpu.memory_space<vmem>>, vector<512x128xf32>,
    %c37 = arith.constant 37 : index
    %c0_69 = arith.constant 0 : index
    %65 = vector.load %arg6[%c37, %c0_69] : memref<550x4xf32, #tpu.memory_space<vmem>>, vector<512x4xf32>
    %66 = arith.truncf %65 : vector<512x4xf32> to vector<512x4xbf16>
    %c0_70 = arith.constant 0 : index
    %c0_71 = arith.constant 0 : index
    %67 = vector.load %arg7[%c0_70, %c0_71] : memref<512x128xf32, #tpu.memory_space<vmem>>, vector<512x128xf32>
    %c7 = arith.constant 7 : index
    %c0_72 = arith.constant 0 : index
    %c0_73 = arith.constant 0 : index
    %68 = vector.load %arg3[%c7, %c0_72, %c0_73] : memref<9x4x128xbf16, #tpu.memory_space<vmem>>, vector<1x4x128xbf16>
    %69 = vector.shape_cast %68 : vector<1x4x128xbf16> to vector<4x128xbf16>
    %cst_74 = arith.constant dense<0.000000e+00> : vector<512x128xf32>
    %70 = tpu.matmul %66, %69, %cst_74 {dimension_numbers = #tpu.dot_dimension_numbers<[1], [0], [0], [1], [0, 0, 1, 1], [], []>} : vector<512x4xbf16>, vector<4x128xbf16>, vector<512x128xf32> -> vector<512x128xf32>
    %71 = arith.addf %67, %70 : vector<512x128xf32>
    %c0_75 = arith.constant 0 : index
    %c0_76 = arith.constant 0 : index
    %72 = vector.load %arg7[%c0_75, %c0_76] : memref<512x128xf32, #tpu.memory_space<vmem>>, vector<512x128xf32>
    tpu.vector_store %arg7[%c0_75, %c0_76], %71 {strides = array<i32>} : memref<512x128xf32, #tpu.memory_space<vmem>>, vector<512x128xf32>,
    %c38 = arith.constant 38 : index
    %c0_77 = arith.constant 0 : index
    %73 = vector.load %arg6[%c38, %c0_77] : memref<550x4xf32, #tpu.memory_space<vmem>>, vector<512x4xf32>
    %74 = arith.truncf %73 : vector<512x4xf32> to vector<512x4xbf16>
    %c0_78 = arith.constant 0 : index
    %c0_79 = arith.constant 0 : index
    %75 = vector.load %arg7[%c0_78, %c0_79] : memref<512x128xf32, #tpu.memory_space<vmem>>, vector<512x128xf32>
    %c8 = arith.constant 8 : index
    %c0_80 = arith.constant 0 : index
    %c0_81 = arith.constant 0 : index
    %76 = vector.load %arg3[%c8, %c0_80, %c0_81] : memref<9x4x128xbf16, #tpu.memory_space<vmem>>, vector<1x4x128xbf16>
    %77 = vector.shape_cast %76 : vector<1x4x128xbf16> to vector<4x128xbf16>
    %cst_82 = arith.constant dense<0.000000e+00> : vector<512x128xf32>
    %78 = tpu.matmul %74, %77, %cst_82 {dimension_numbers = #tpu.dot_dimension_numbers<[1], [0], [0], [1], [0, 0, 1, 1], [], []>} : vector<512x4xbf16>, vector<4x128xbf16>, vector<512x128xf32> -> vector<512x128xf32>
    %79 = arith.addf %75, %78 : vector<512x128xf32>
    %c0_83 = arith.constant 0 : index
    %c0_84 = arith.constant 0 : index
    %80 = vector.load %arg7[%c0_83, %c0_84] : memref<512x128xf32, #tpu.memory_space<vmem>>, vector<512x128xf32>
    tpu.vector_store %arg7[%c0_83, %c0_84], %79 {strides = array<i32>} : memref<512x128xf32, #tpu.memory_space<vmem>>, vector<512x128xf32>,
    %c0_85 = arith.constant 0 : index
    %c0_86 = arith.constant 0 : index
    %81 = vector.load %arg7[%c0_85, %c0_86] : memref<512x128xf32, #tpu.memory_space<vmem>>, vector<512x128xf32>
    %c0_87 = arith.constant 0 : index
    %c0_88 = arith.constant 0 : index
    %82 = vector.load %arg4[%c0_87, %c0_88] : memref<1x128xf32, #tpu.memory_space<vmem>>, vector<1x128xf32>
    %83 = vector.broadcast %82 : vector<1x128xf32> to vector<512x128xf32>
    %84 = arith.addf %81, %83 : vector<512x128xf32>
    %cst_89 = arith.constant 0.000000e+00 : f32
    %85 = vector.broadcast %cst_89 : f32 to vector<512x128xf32>
    %86 = arith.maximumf %84, %85 : vector<512x128xf32>
    %c0_90 = arith.constant 0 : index
    %c0_91 = arith.constant 0 : index
    %87 = vector.load %arg5[%c0_90, %c0_91] : memref<512x128xf32, #tpu.memory_space<vmem>>, vector<512x128xf32>
    tpu.vector_store %arg5[%c0_90, %c0_91], %86 {strides = array<i32>} : memref<512x128xf32, #tpu.memory_space<vmem>>, vector<512x128xf32>,
    return
  }
  func.func @transform_0(%arg0: i32) -> (i32, i32) {
    %c0_i32 = arith.constant 0 : i32
    %c0_i32_0 = arith.constant 0 : i32
    return %arg0, %c0_i32 : i32, i32
  }
  func.func @transform_1(%arg0: i32) -> (i32, i32, i32) {
    %c0_i32 = arith.constant 0 : i32
    %c0_i32_0 = arith.constant 0 : i32
    %c0_i32_1 = arith.constant 0 : i32
    return %arg0, %c0_i32, %c0_i32_0 : i32, i32, i32
  }
  func.func @transform_2(%arg0: i32) -> (i32, i32, i32) {
    %c0_i32 = arith.constant 0 : i32
    %c0_i32_0 = arith.constant 0 : i32
    %c0_i32_1 = arith.constant 0 : i32
    %c0_i32_2 = arith.constant 0 : i32
    return %c0_i32, %c0_i32_0, %c0_i32_1 : i32, i32, i32
  }
  func.func @transform_3(%arg0: i32) -> (i32, i32) {
    %c0_i32 = arith.constant 0 : i32
    %c0_i32_0 = arith.constant 0 : i32
    %c0_i32_1 = arith.constant 0 : i32
    return %c0_i32, %c0_i32_0 : i32, i32
  }
  func.func @transform_4(%arg0: i32) -> (i32, i32) {
    %c0_i32 = arith.constant 0 : i32
    %c0_i32_0 = arith.constant 0 : i32
    return %arg0, %c0_i32 : i32, i32
  }
}

</mosaic_0001>

<llo_original>
// kernel: tpu_custom_call.1
$region0: #{tpu_custom_call.1}
  #allocation0 [shape = 'u32[]', space=smem, size = 0x4, offset = 0x4, fixed_abs, tag = 'smem constant byte address 0x4 - core index']
  #allocation1 [shape = 'u32[72,128]{1,0:T(1,128)}', space=vmem, size = 0x9000, scoped, tag = 'internal scratch']
  #allocation2 [shape = 'f32[550,4]{1,0:T(8,128)}', space=vmem, size = 0x45000, scoped, tag = 'scratch operand']
  #allocation3 [shape = 'f32[512,128]{1,0:T(8,128)}', space=vmem, size = 0x40000, scoped, tag = 'scratch operand']
  %s0 = inlined_call_operand.vmem [shape: bf16[1024,4], index: 0, kind: input, shape index: {}]
  %s1 = inlined_call_operand.vmem [shape: bf16[2,38,4], index: 1, kind: input, shape index: {}]
  %s2 = inlined_call_operand.vmem [shape: bf16[9,4,128], index: 2, kind: input, shape index: {}]
  %s3 = inlined_call_operand.vmem [shape: f32[1,128], index: 3, kind: input, shape index: {}]
  %s4 = inlined_call_operand.hbm [shape: f32[1024,128], index: 4, kind: output, shape index: {}]
  %s5 = sld [smem:[#allocation0]]
  $region49: #{tpu_custom_call.1} parent=0
    _
  %s7 = ssub.s32 1, %s5
  %s8 = scalar_select 0, %s7, %s5
  $region1: #{tpu_custom_call.1} parent=0
    #allocation4 [shape = 'u8[524288]{0}', space=vmem, size = 0x80000, scoped, tag = 'output window, operand 0']
    #allocation5 [shape = 's32[2]{0}', space=sflag, size = 0x8, scoped, tag = 'scoped memory for tpu_custom_call.1']
    %9 = vsyncpa [#allocation5], 0
    %s10 = scalar_lea.sflag [#allocation5], 1
    %11 = vsyncpa %s10, 0
    loop: start=0, step=1, limit=4
    $region2: #{tpu_custom_call.1} parent=1 // loop_pre_header
      _
    $region3: #{tpu_custom_call.1} parent=1 // loop_header
      %s13 = sphi 0, %s17
      %p14 = scmp.ge.s32.totalorder %s13, 4
      %s23 = sphi 0, %s25
      %s26 = sphi 0, %s23
      %s27 = sphi 0, %s26
      %s43 = sphi 0, %s27
      %s49 = sphi 0, %s51
      %s52 = sphi 0, %s49
      %s53 = sphi 0, %s52
      %s69 = sphi 0, %s53
      %s73 = sphi 0, %s73
      %s75 = sphi 0, %s73
      %s76 = sphi 0, %s75
      %s90 = sphi 0, %s76
      %s94 = sphi 0, %s94
      %s96 = sphi 0, %s94
      %s97 = sphi 0, %s96
      %s111 = sphi 0, %s97
      %s117 = sphi 0, %s119
      %s120 = sphi 0, %s117
      %s121 = sphi 0, %s120
      %s137 = sphi 0, %s121
    $region4: #{tpu_custom_call.1} parent=1 // loop_header_branch
      %16 = sbr.rel (%p14) target = $region8
    $region5: #{tpu_custom_call.1} parent=1 // loop_body
      %s18 = ssub.s32 %s13, 1
      %s19 = ssub.s32 %s13, 2
      %s20 = sadd.s32 %s13, 1
      %s21 = ssub.s32 %s13, %s20
      %p22 = scmp.eq.s32.totalorder %s21, 0
      %s24 = sadd.s32 %s23, 1
      %s25 = scalar_select %p22, %s23, %s24
      %p28 = pneg %p22
      %p29 = scmp.eq.s32.totalorder %s13, 1
      %p30 = por %p28, %p29
      %p31 = scmp.ne.s32.totalorder %s23, %s26
      %p32 = scmp.eq.s32.totalorder %s13, 0
      %p33 = por %p31, %p32
      %p34 = scmp.ne.s32.totalorder %s23, %s26
      %p35 = scmp.eq.s32.totalorder %s18, 1
      %p36 = por %p34, %p35
      %p37 = scmp.ne.s32.totalorder %s26, %s27
      %p38 = scmp.eq.s32.totalorder %s18, 0
      %p39 = por %p37, %p38
      %p40 = scmp.ne.s32.totalorder %s26, %s27
      %p41 = scmp.eq.s32.totalorder %s19, 1
      %p42 = por %p40, %p41
      %p44 = scmp.ne.s32.totalorder %s27, %s43
      %p45 = scmp.eq.s32.totalorder %s19, 0
      %p46 = por %p44, %p45
      %s47 = ssub.s32 %s13, %s20
      %p48 = scmp.eq.s32.totalorder %s47, 0
      %s50 = sadd.s32 %s49, 1
      %s51 = scalar_select %p48, %s49, %s50
      %p54 = pneg %p48
      %p55 = scmp.eq.s32.totalorder %s13, 1
      %p56 = por %p54, %p55
      %p57 = scmp.ne.s32.totalorder %s49, %s52
      %p58 = scmp.eq.s32.totalorder %s13, 0
      %p59 = por %p57, %p58
      %p60 = scmp.ne.s32.totalorder %s49, %s52
      %p61 = scmp.eq.s32.totalorder %s18, 1
      %p62 = por %p60, %p61
      %p63 = scmp.ne.s32.totalorder %s52, %s53
      %p64 = scmp.eq.s32.totalorder %s18, 0
      %p65 = por %p63, %p64
      %p66 = scmp.ne.s32.totalorder %s52, %s53
      %p67 = scmp.eq.s32.totalorder %s19, 1
      %p68 = por %p66, %p67
      %p70 = scmp.ne.s32.totalorder %s53, %s69
      %p71 = scmp.eq.s32.totalorder %s19, 0
      %p72 = por %p70, %p71
      %s74 = sadd.s32 %s73, 1
      %p77 = scmp.eq.s32.totalorder %s13, 1
      %p78 = scmp.ne.s32.totalorder %s73, %s75
      %p79 = scmp.eq.s32.totalorder %s13, 0
      %p80 = por %p78, %p79
      %p81 = scmp.ne.s32.totalorder %s73, %s75
      %p82 = scmp.eq.s32.totalorder %s18, 1
      %p83 = por %p81, %p82
      %p84 = scmp.ne.s32.totalorder %s75, %s76
      %p85 = scmp.eq.s32.totalorder %s18, 0
      %p86 = por %p84, %p85
      %p87 = scmp.ne.s32.totalorder %s75, %s76
      %p88 = scmp.eq.s32.totalorder %s19, 1
      %p89 = por %p87, %p88
      %p91 = scmp.ne.s32.totalorder %s76, %s90
      %p92 = scmp.eq.s32.totalorder %s19, 0
      %p93 = por %p91, %p92
      %s95 = sadd.s32 %s94, 1
      %p98 = scmp.eq.s32.totalorder %s13, 1
      %p99 = scmp.ne.s32.totalorder %s94, %s96
      %p100 = scmp.eq.s32.totalorder %s13, 0
      %p101 = por %p99, %p100
      %p102 = scmp.ne.s32.totalorder %s94, %s96
      %p103 = scmp.eq.s32.totalorder %s18, 1
      %p104 = por %p102, %p103
      %p105 = scmp.ne.s32.totalorder %s96, %s97
      %p106 = scmp.eq.s32.totalorder %s18, 0
      %p107 = por %p105, %p106
      %p108 = scmp.ne.s32.totalorder %s96, %s97
      %p109 = scmp.eq.s32.totalorder %s19, 1
      %p110 = por %p108, %p109
      %p112 = scmp.ne.s32.totalorder %s97, %s111
      %p113 = scmp.eq.s32.totalorder %s19, 0
      %p114 = por %p112, %p113
      %s115 = ssub.s32 %s13, %s20
      %p116 = scmp.eq.s32.totalorder %s115, 0
      %s118 = sadd.s32 %s117, 1
      %s119 = scalar_select %p116, %s117, %s118
      %p122 = pneg %p116
      %p123 = scmp.eq.s32.totalorder %s13, 1
      %p124 = por %p122, %p123
      %p125 = scmp.ne.s32.totalorder %s117, %s120
      %p126 = scmp.eq.s32.totalorder %s13, 0
      %p127 = por %p125, %p126
      %p128 = scmp.ne.s32.totalorder %s117, %s120
      %p129 = scmp.eq.s32.totalorder %s18, 1
      %p130 = por %p128, %p129
      %p131 = scmp.ne.s32.totalorder %s120, %s121
      %p132 = scmp.eq.s32.totalorder %s18, 0
      %p133 = por %p131, %p132
      %p134 = scmp.ne.s32.totalorder %s120, %s121
      %p135 = scmp.eq.s32.totalorder %s19, 1
      %p136 = por %p134, %p135
      %p138 = scmp.ne.s32.totalorder %s121, %s137
      %p139 = scmp.eq.s32.totalorder %s19, 0
      %p140 = por %p138, %p139
      %p141 = scmp.le.s32.totalorder 1, %s13
      %p142 = scmp.lt.s32.totalorder %s13, 3
      %p143 = pnand %p141, %p142
      %p144 = pneg %p143
      // Predicated region
      $region9: #{tpu_custom_call.1} parent=5 // pred_check
        _
      $region10: #{tpu_custom_call.1} parent=5 // pred_check_branch
        %146 = sbr.rel (%p143) target = $region12
      $region11: #{tpu_custom_call.1} parent=5 // pred_region
        %s147 = ssub.s32 %s13, 1
        // Predicated region
        $region13: #{tpu_custom_call.1} parent=11 // pred_check
          %p148 = pneg %p86
        $region14: #{tpu_custom_call.1} parent=11 // pred_check_branch
          %150 = sbr.rel (%p148) target = $region16
        $region15: #{tpu_custom_call.1} parent=11 // pred_region
          _
        $region16: #{tpu_custom_call.1} parent=11 // pred_fallthru
          _
        // Predicated region
        $region17: #{tpu_custom_call.1} parent=11 // pred_check
          %p151 = pneg %p107
        $region18: #{tpu_custom_call.1} parent=11 // pred_check_branch
          %153 = sbr.rel (%p151) target = $region20
        $region19: #{tpu_custom_call.1} parent=11 // pred_region
          _
        $region20: #{tpu_custom_call.1} parent=11 // pred_fallthru
          _
      $region12: #{tpu_custom_call.1} parent=5 // pred_fallthru
        _
      %p154 = scmp.lt.s32.totalorder %s13, 2
      // Predicated region
      $region21: #{tpu_custom_call.1} parent=5 // pred_check
        %p155 = pneg %p154
      $region22: #{tpu_custom_call.1} parent=5 // pred_check_branch
        %157 = sbr.rel (%p155) target = $region24
      $region23: #{tpu_custom_call.1} parent=5 // pred_region
        // Predicated region
        $region25: #{tpu_custom_call.1} parent=23 // pred_check
          %p158 = pneg %p33
        $region26: #{tpu_custom_call.1} parent=23 // pred_check_branch
          %160 = sbr.rel (%p158) target = $region28
        $region27: #{tpu_custom_call.1} parent=23 // pred_region
          %s161 = smul.u32 64, %s13
          %p162 = scmp.lt.s32.totalorder %s161, 127
          %s163 = scalar_select %p162, %s161, 127
          %s164 = smul.addr %s163, 4
          %s165 = scalar_lea.vmem %s0, %s164
          %s166 = smul.u32 64, %s13
        $region28: #{tpu_custom_call.1} parent=23 // pred_fallthru
          _
        // Predicated region
        $region29: #{tpu_custom_call.1} parent=23 // pred_check
          %p167 = pneg %p59
        $region30: #{tpu_custom_call.1} parent=23 // pred_check_branch
          %169 = sbr.rel (%p167) target = $region32
        $region31: #{tpu_custom_call.1} parent=23 // pred_region
          %p170 = scmp.lt.s32.totalorder %s13, 1
          %s171 = scalar_select %p170, %s13, 1
          %s172 = smul.addr %s171, 5
          %s173 = smul.addr %s172, 4
          %s174 = scalar_lea.vmem %s1, %s173
        $region32: #{tpu_custom_call.1} parent=23 // pred_fallthru
          _
      $region24: #{tpu_custom_call.1} parent=5 // pred_fallthru
        _
      %p175 = scmp.le.s32.totalorder 1, %s13
      %p176 = scmp.lt.s32.totalorder %s13, 3
      %p177 = pnand %p175, %p176
      %p178 = pneg %p177
      // Predicated region
      $region33: #{tpu_custom_call.1} parent=5 // pred_check
        _
      $region34: #{tpu_custom_call.1} parent=5 // pred_check_branch
        %180 = sbr.rel (%p177) target = $region36
      $region35: #{tpu_custom_call.1} parent=5 // pred_region
        %s181 = ssub.s32 %s13, 1
        %s182 = smul.u32 64, %s18
        %p183 = scmp.lt.s32.totalorder %s182, 127
        %s184 = scalar_select %p183, %s182, 127
        %s185 = smul.addr %s184, 4
        %s186 = scalar_lea.vmem %s0, %s185
        %p187 = pneg %p39
        %p188 = pneg %p36
        %p189 = scmp.lt.s32.totalorder %s18, 1
        %s190 = scalar_select %p189, %s18, 1
        %s191 = smul.addr %s190, 5
        %s192 = smul.addr %s191, 4
        %s193 = scalar_lea.vmem %s1, %s192
        %p194 = pneg %p65
        %p195 = pneg %p62
        %p196 = pneg %p86
        %p197 = pneg %p83
        %p198 = pneg %p107
        %p199 = pneg %p104
        %p200 = pneg %p133
        %p201 = pneg %p130
        %s202 = sand.u32 %s120, 1
        %s203 = scalar_lea.sflag [#allocation5], %s202
        %s204 = sand.u32 %s120, 1
        %s205 = smul.addr %s204, 512
        %s206 = scalar_lea.vmem [#allocation4], %s205
        %s207 = smul.u32 64, %s18
        %p208 = scmp.lt.s32.totalorder %s207, 127
        %s209 = scalar_select %p208, %s207, 127
        %s210 = smul.addr %s209, 4
        %s211 = scalar_lea.vmem %s0, %s210
        %s212 = smul.u32 64, %s18
        %p213 = scmp.lt.s32.totalorder %s18, 1
        %s214 = scalar_select %p213, %s18, 1
        %s215 = smul.addr %s214, 5
        %s216 = smul.addr %s215, 4
        %s217 = scalar_lea.vmem %s1, %s216
        %s218 = smul.u32 64, %s18
        %v220 = vld [vmem:[%s211] sm:$0xf]
        %v221 = vld [vmem:[%s211 + $0x4] sm:$0xf]
        %v222 = vld [vmem:[%s211 + $0x8] sm:$0xf]
        %v223 = vld [vmem:[%s211 + $0xc] sm:$0xf]
        %v224 = vld [vmem:[%s211 + $0x10] sm:$0xf]
        %v225 = vld [vmem:[%s211 + $0x14] sm:$0xf]
        %v226 = vld [vmem:[%s211 + $0x18] sm:$0xf]
        %v227 = vld [vmem:[%s211 + $0x1c] sm:$0xf]
        %v228 = vld [vmem:[%s211 + $0x20] sm:$0xf]
        %v229 = vld [vmem:[%s211 + $0x24] sm:$0xf]
        %v230 = vld [vmem:[%s211 + $0x28] sm:$0xf]
        %v231 = vld [vmem:[%s211 + $0x2c] sm:$0xf]
        %v232 = vld [vmem:[%s211 + $0x30] sm:$0xf]
        %v233 = vld [vmem:[%s211 + $0x34] sm:$0xf]
        %v234 = vld [vmem:[%s211 + $0x38] sm:$0xf]
        %v235 = vld [vmem:[%s211 + $0x3c] sm:$0xf]
        %v236 = vld [vmem:[%s211 + $0x40] sm:$0xf]
        %v237 = vld [vmem:[%s211 + $0x44] sm:$0xf]
        %v238 = vld [vmem:[%s211 + $0x48] sm:$0xf]
        %v239 = vld [vmem:[%s211 + $0x4c] sm:$0xf]
        %v240 = vld [vmem:[%s211 + $0x50] sm:$0xf]
        %v241 = vld [vmem:[%s211 + $0x54] sm:$0xf]
        %v242 = vld [vmem:[%s211 + $0x58] sm:$0xf]
        %v243 = vld [vmem:[%s211 + $0x5c] sm:$0xf]
        %v244 = vld [vmem:[%s211 + $0x60] sm:$0xf]
        %v245 = vld [vmem:[%s211 + $0x64] sm:$0xf]
        %v246 = vld [vmem:[%s211 + $0x68] sm:$0xf]
        %v247 = vld [vmem:[%s211 + $0x6c] sm:$0xf]
        %v248 = vld [vmem:[%s211 + $0x70] sm:$0xf]
        %v249 = vld [vmem:[%s211 + $0x74] sm:$0xf]
        %v250 = vld [vmem:[%s211 + $0x78] sm:$0xf]
        %v251 = vld [vmem:[%s211 + $0x7c] sm:$0xf]
        %v252 = vld [vmem:[%s211 + $0x80] sm:$0xf]
        %v253 = vld [vmem:[%s211 + $0x84] sm:$0xf]
        %v254 = vld [vmem:[%s211 + $0x88] sm:$0xf]
        %v255 = vld [vmem:[%s211 + $0x8c] sm:$0xf]
        %v256 = vld [vmem:[%s211 + $0x90] sm:$0xf]
        %v257 = vld [vmem:[%s211 + $0x94] sm:$0xf]
        %v258 = vld [vmem:[%s211 + $0x98] sm:$0xf]
        %v259 = vld [vmem:[%s211 + $0x9c] sm:$0xf]
        %v260 = vld [vmem:[%s211 + $0xa0] sm:$0xf]
        %v261 = vld [vmem:[%s211 + $0xa4] sm:$0xf]
        %v262 = vld [vmem:[%s211 + $0xa8] sm:$0xf]
        %v263 = vld [vmem:[%s211 + $0xac] sm:$0xf]
        %v264 = vld [vmem:[%s211 + $0xb0] sm:$0xf]
        %v265 = vld [vmem:[%s211 + $0xb4] sm:$0xf]
        %v266 = vld [vmem:[%s211 + $0xb8] sm:$0xf]
        %v267 = vld [vmem:[%s211 + $0xbc] sm:$0xf]
        %v268 = vld [vmem:[%s211 + $0xc0] sm:$0xf]
        %v269 = vld [vmem:[%s211 + $0xc4] sm:$0xf]
        %v270 = vld [vmem:[%s211 + $0xc8] sm:$0xf]
        %v271 = vld [vmem:[%s211 + $0xcc] sm:$0xf]
        %v272 = vld [vmem:[%s211 + $0xd0] sm:$0xf]
        %v273 = vld [vmem:[%s211 + $0xd4] sm:$0xf]
        %v274 = vld [vmem:[%s211 + $0xd8] sm:$0xf]
        %v275 = vld [vmem:[%s211 + $0xdc] sm:$0xf]
        %v276 = vld [vmem:[%s211 + $0xe0] sm:$0xf]
        %v277 = vld [vmem:[%s211 + $0xe4] sm:$0xf]
        %v278 = vld [vmem:[%s211 + $0xe8] sm:$0xf]
        %v279 = vld [vmem:[%s211 + $0xec] sm:$0xf]
        %v280 = vld [vmem:[%s211 + $0xf0] sm:$0xf]
        %v281 = vld [vmem:[%s211 + $0xf4] sm:$0xf]
        %v282 = vld [vmem:[%s211 + $0xf8] sm:$0xf]
        %v283 = vld [vmem:[%s211 + $0xfc] sm:$0xf]
        %v284 = vunpack.c.l.bf16 %v220
        %v285 = vunpack.c.l.bf16 %v221
        %v286 = vunpack.c.l.bf16 %v222
        %v287 = vunpack.c.l.bf16 %v223
        %v288 = vunpack.c.l.bf16 %v224
        %v289 = vunpack.c.l.bf16 %v225
        %v290 = vunpack.c.l.bf16 %v226
        %v291 = vunpack.c.l.bf16 %v227
        %v292 = vunpack.c.l.bf16 %v228
        %v293 = vunpack.c.l.bf16 %v229
        %v294 = vunpack.c.l.bf16 %v230
        %v295 = vunpack.c.l.bf16 %v231
        %v296 = vunpack.c.l.bf16 %v232
        %v297 = vunpack.c.l.bf16 %v233
        %v298 = vunpack.c.l.bf16 %v234
        %v299 = vunpack.c.l.bf16 %v235
        %v300 = vunpack.c.l.bf16 %v236
        %v301 = vunpack.c.l.bf16 %v237
        %v302 = vunpack.c.l.bf16 %v238
        %v303 = vunpack.c.l.bf16 %v239
        %v304 = vunpack.c.l.bf16 %v240
        %v305 = vunpack.c.l.bf16 %v241
        %v306 = vunpack.c.l.bf16 %v242
        %v307 = vunpack.c.l.bf16 %v243
        %v308 = vunpack.c.l.bf16 %v244
        %v309 = vunpack.c.l.bf16 %v245
        %v310 = vunpack.c.l.bf16 %v246
        %v311 = vunpack.c.l.bf16 %v247
        %v312 = vunpack.c.l.bf16 %v248
        %v313 = vunpack.c.l.bf16 %v249
        %v314 = vunpack.c.l.bf16 %v250
        %v315 = vunpack.c.l.bf16 %v251
        %v316 = vunpack.c.l.bf16 %v252
        %v317 = vunpack.c.l.bf16 %v253
        %v318 = vunpack.c.l.bf16 %v254
        %v319 = vunpack.c.l.bf16 %v255
        %v320 = vunpack.c.l.bf16 %v256
        %v321 = vunpack.c.l.bf16 %v257
        %v322 = vunpack.c.l.bf16 %v258
        %v323 = vunpack.c.l.bf16 %v259
        %v324 = vunpack.c.l.bf16 %v260
        %v325 = vunpack.c.l.bf16 %v261
        %v326 = vunpack.c.l.bf16 %v262
        %v327 = vunpack.c.l.bf16 %v263
        %v328 = vunpack.c.l.bf16 %v264
        %v329 = vunpack.c.l.bf16 %v265
        %v330 = vunpack.c.l.bf16 %v266
        %v331 = vunpack.c.l.bf16 %v267
        %v332 = vunpack.c.l.bf16 %v268
        %v333 = vunpack.c.l.bf16 %v269
        %v334 = vunpack.c.l.bf16 %v270
        %v335 = vunpack.c.l.bf16 %v271
        %v336 = vunpack.c.l.bf16 %v272
        %v337 = vunpack.c.l.bf16 %v273
        %v338 = vunpack.c.l.bf16 %v274
        %v339 = vunpack.c.l.bf16 %v275
        %v340 = vunpack.c.l.bf16 %v276
        %v341 = vunpack.c.l.bf16 %v277
        %v342 = vunpack.c.l.bf16 %v278
        %v343 = vunpack.c.l.bf16 %v279
        %v344 = vunpack.c.l.bf16 %v280
        %v345 = vunpack.c.l.bf16 %v281
        %v346 = vunpack.c.l.bf16 %v282
        %v347 = vunpack.c.l.bf16 %v283
        %vm348 = vcmask 31744
        %349 = vst.msk [vmem:[#allocation2] sm:$0xff] %vm348, %v284
        %350 = vst.msk [vmem:[#allocation2 + $0x8] sm:$0xff] %vm348, %v285
        %351 = vst.msk [vmem:[#allocation2 + $0x10] sm:$0xff] %vm348, %v286
        %352 = vst.msk [vmem:[#allocation2 + $0x18] sm:$0xff] %vm348, %v287
        %353 = vst.msk [vmem:[#allocation2 + $0x20] sm:$0xff] %vm348, %v288
        %354 = vst.msk [vmem:[#allocation2 + $0x28] sm:$0xff] %vm348, %v289
        %355 = vst.msk [vmem:[#allocation2 + $0x30] sm:$0xff] %vm348, %v290
        %356 = vst.msk [vmem:[#allocation2 + $0x38] sm:$0xff] %vm348, %v291
        %357 = vst.msk [vmem:[#allocation2 + $0x40] sm:$0xff] %vm348, %v292
        %358 = vst.msk [vmem:[#allocation2 + $0x48] sm:$0xff] %vm348, %v293
        %359 = vst.msk [vmem:[#allocation2 + $0x50] sm:$0xff] %vm348, %v294
        %360 = vst.msk [vmem:[#allocation2 + $0x58] sm:$0xff] %vm348, %v295
        %361 = vst.msk [vmem:[#allocation2 + $0x60] sm:$0xff] %vm348, %v296
        %362 = vst.msk [vmem:[#allocation2 + $0x68] sm:$0xff] %vm348, %v297
        %363 = vst.msk [vmem:[#allocation2 + $0x70] sm:$0xff] %vm348, %v298
        %364 = vst.msk [vmem:[#allocation2 + $0x78] sm:$0xff] %vm348, %v299
        %365 = vst.msk [vmem:[#allocation2 + $0x80] sm:$0xff] %vm348, %v300
        %366 = vst.msk [vmem:[#allocation2 + $0x88] sm:$0xff] %vm348, %v301
        %367 = vst.msk [vmem:[#allocation2 + $0x90] sm:$0xff] %vm348, %v302
        %368 = vst.msk [vmem:[#allocation2 + $0x98] sm:$0xff] %vm348, %v303
        %369 = vst.msk [vmem:[#allocation2 + $0xa0] sm:$0xff] %vm348, %v304
        %370 = vst.msk [vmem:[#allocation2 + $0xa8] sm:$0xff] %vm348, %v305
        %371 = vst.msk [vmem:[#allocation2 + $0xb0] sm:$0xff] %vm348, %v306
        %372 = vst.msk [vmem:[#allocation2 + $0xb8] sm:$0xff] %vm348, %v307
        %373 = vst.msk [vmem:[#allocation2 + $0xc0] sm:$0xff] %vm348, %v308
        %374 = vst.msk [vmem:[#allocation2 + $0xc8] sm:$0xff] %vm348, %v309
        %375 = vst.msk [vmem:[#allocation2 + $0xd0] sm:$0xff] %vm348, %v310
        %376 = vst.msk [vmem:[#allocation2 + $0xd8] sm:$0xff] %vm348, %v311
        %377 = vst.msk [vmem:[#allocation2 + $0xe0] sm:$0xff] %vm348, %v312
        %378 = vst.msk [vmem:[#allocation2 + $0xe8] sm:$0xff] %vm348, %v313
        %379 = vst.msk [vmem:[#allocation2 + $0xf0] sm:$0xff] %vm348, %v314
        %380 = vst.msk [vmem:[#allocation2 + $0xf8] sm:$0xff] %vm348, %v315
        %381 = vst.msk [vmem:[#allocation2 + $0x100] sm:$0xff] %vm348, %v316
        %382 = vst.msk [vmem:[#allocation2 + $0x108] sm:$0xff] %vm348, %v317
        %383 = vst.msk [vmem:[#allocation2 + $0x110] sm:$0xff] %vm348, %v318
        %384 = vst.msk [vmem:[#allocation2 + $0x118] sm:$0xff] %vm348, %v319
        %385 = vst.msk [vmem:[#allocation2 + $0x120] sm:$0xff] %vm348, %v320
        %386 = vst.msk [vmem:[#allocation2 + $0x128] sm:$0xff] %vm348, %v321
        %387 = vst.msk [vmem:[#allocation2 + $0x130] sm:$0xff] %vm348, %v322
        %388 = vst.msk [vmem:[#allocation2 + $0x138] sm:$0xff] %vm348, %v323
        %389 = vst.msk [vmem:[#allocation2 + $0x140] sm:$0xff] %vm348, %v324
        %390 = vst.msk [vmem:[#allocation2 + $0x148] sm:$0xff] %vm348, %v325
        %391 = vst.msk [vmem:[#allocation2 + $0x150] sm:$0xff] %vm348, %v326
        %392 = vst.msk [vmem:[#allocation2 + $0x158] sm:$0xff] %vm348, %v327
        %393 = vst.msk [vmem:[#allocation2 + $0x160] sm:$0xff] %vm348, %v328
        %394 = vst.msk [vmem:[#allocation2 + $0x168] sm:$0xff] %vm348, %v329
        %395 = vst.msk [vmem:[#allocation2 + $0x170] sm:$0xff] %vm348, %v330
        %396 = vst.msk [vmem:[#allocation2 + $0x178] sm:$0xff] %vm348, %v331
        %397 = vst.msk [vmem:[#allocation2 + $0x180] sm:$0xff] %vm348, %v332
        %398 = vst.msk [vmem:[#allocation2 + $0x188] sm:$0xff] %vm348, %v333
        %399 = vst.msk [vmem:[#allocation2 + $0x190] sm:$0xff] %vm348, %v334
        %400 = vst.msk [vmem:[#allocation2 + $0x198] sm:$0xff] %vm348, %v335
        %401 = vst.msk [vmem:[#allocation2 + $0x1a0] sm:$0xff] %vm348, %v336
        %402 = vst.msk [vmem:[#allocation2 + $0x1a8] sm:$0xff] %vm348, %v337
        %403 = vst.msk [vmem:[#allocation2 + $0x1b0] sm:$0xff] %vm348, %v338
        %404 = vst.msk [vmem:[#allocation2 + $0x1b8] sm:$0xff] %vm348, %v339
        %405 = vst.msk [vmem:[#allocation2 + $0x1c0] sm:$0xff] %vm348, %v340
        %406 = vst.msk [vmem:[#allocation2 + $0x1c8] sm:$0xff] %vm348, %v341
        %407 = vst.msk [vmem:[#allocation2 + $0x1d0] sm:$0xff] %vm348, %v342
        %408 = vst.msk [vmem:[#allocation2 + $0x1d8] sm:$0xff] %vm348, %v343
        %409 = vst.msk [vmem:[#allocation2 + $0x1e0] sm:$0xff] %vm348, %v344
        %410 = vst.msk [vmem:[#allocation2 + $0x1e8] sm:$0xff] %vm348, %v345
        %411 = vst.msk [vmem:[#allocation2 + $0x1f0] sm:$0xff] %vm348, %v346
        %412 = vst.msk [vmem:[#allocation2 + $0x1f8] sm:$0xff] %vm348, %v347
        %v413 = vld [vmem:[%s217] sm:$0xf]
        %v414 = vld [vmem:[%s217 + $0x4] sm:$0xf]
        %v415 = vld [vmem:[%s217 + $0x8] sm:$0xf]
        %v416 = vld [vmem:[%s217 + $0xc] sm:$0xf]
        %v417 = vld [vmem:[%s217 + $0x10] sm:$0x7]
        %v418 = vunpack.c.l.bf16 %v413
        %v419 = vunpack.c.l.bf16 %v414
        %v420 = vunpack.c.l.bf16 %v415
        %v421 = vunpack.c.l.bf16 %v416
        %v422 = vunpack.c.l.bf16 %v417
        %423 = vst.msk [vmem:[#allocation2 + $0x200] sm:$0xff] %vm348, %v418
        %424 = vst.msk [vmem:[#allocation2 + $0x208] sm:$0xff] %vm348, %v419
        %425 = vst.msk [vmem:[#allocation2 + $0x210] sm:$0xff] %vm348, %v420
        %426 = vst.msk [vmem:[#allocation2 + $0x218] sm:$0xff] %vm348, %v421
        %vm427 = vcmask 29696
        %428 = vst.msk [vmem:[#allocation2 + $0x220] sm:$0x3f] %vm427, %v422
        %429 = vst [vmem:[#allocation3] sm:$0xff] 0.0
        %430 = vst [vmem:[#allocation3 + $0x8] sm:$0xff] 0.0
        %431 = vst [vmem:[#allocation3 + $0x10] sm:$0xff] 0.0
        %432 = vst [vmem:[#allocation3 + $0x18] sm:$0xff] 0.0
        %433 = vst [vmem:[#allocation3 + $0x20] sm:$0xff] 0.0
        %434 = vst [vmem:[#allocation3 + $0x28] sm:$0xff] 0.0
        %435 = vst [vmem:[#allocation3 + $0x30] sm:$0xff] 0.0
        %436 = vst [vmem:[#allocation3 + $0x38] sm:$0xff] 0.0
        %437 = vst [vmem:[#allocation3 + $0x40] sm:$0xff] 0.0
        %438 = vst [vmem:[#allocation3 + $0x48] sm:$0xff] 0.0
        %439 = vst [vmem:[#allocation3 + $0x50] sm:$0xff] 0.0
        %440 = vst [vmem:[#allocation3 + $0x58] sm:$0xff] 0.0
        %441 = vst [vmem:[#allocation3 + $0x60] sm:$0xff] 0.0
        %442 = vst [vmem:[#allocation3 + $0x68] sm:$0xff] 0.0
        %443 = vst [vmem:[#allocation3 + $0x70] sm:$0xff] 0.0
        %444 = vst [vmem:[#allocation3 + $0x78] sm:$0xff] 0.0
        %445 = vst [vmem:[#allocation3 + $0x80] sm:$0xff] 0.0
        %446 = vst [vmem:[#allocation3 + $0x88] sm:$0xff] 0.0
        %447 = vst [vmem:[#allocation3 + $0x90] sm:$0xff] 0.0
        %448 = vst [vmem:[#allocation3 + $0x98] sm:$0xff] 0.0
        %449 = vst [vmem:[#allocation3 + $0xa0] sm:$0xff] 0.0
        %450 = vst [vmem:[#allocation3 + $0xa8] sm:$0xff] 0.0
        %451 = vst [vmem:[#allocation3 + $0xb0] sm:$0xff] 0.0
        %452 = vst [vmem:[#allocation3 + $0xb8] sm:$0xff] 0.0
        %453 = vst [vmem:[#allocation3 + $0xc0] sm:$0xff] 0.0
        %454 = vst [vmem:[#allocation3 + $0xc8] sm:$0xff] 0.0
        %455 = vst [vmem:[#allocation3 + $0xd0] sm:$0xff] 0.0
        %456 = vst [vmem:[#allocation3 + $0xd8] sm:$0xff] 0.0
        %457 = vst [vmem:[#allocation3 + $0xe0] sm:$0xff] 0.0
        %458 = vst [vmem:[#allocation3 + $0xe8] sm:$0xff] 0.0
        %459 = vst [vmem:[#allocation3 + $0xf0] sm:$0xff] 0.0
        %460 = vst [vmem:[#allocation3 + $0xf8] sm:$0xff] 0.0
        %461 = vst [vmem:[#allocation3 + $0x100] sm:$0xff] 0.0
        %462 = vst [vmem:[#allocation3 + $0x108] sm:$0xff] 0.0
        %463 = vst [vmem:[#allocation3 + $0x110] sm:$0xff] 0.0
        %464 = vst [vmem:[#allocation3 + $0x118] sm:$0xff] 0.0
        %465 = vst [vmem:[#allocation3 + $0x120] sm:$0xff] 0.0
        %466 = vst [vmem:[#allocation3 + $0x128] sm:$0xff] 0.0
        %467 = vst [vmem:[#allocation3 + $0x130] sm:$0xff] 0.0
        %468 = vst [vmem:[#allocation3 + $0x138] sm:$0xff] 0.0
        %469 = vst [vmem:[#allocation3 + $0x140] sm:$0xff] 0.0
        %470 = vst [vmem:[#allocation3 + $0x148] sm:$0xff] 0.0
        %471 = vst [vmem:[#allocation3 + $0x150] sm:$0xff] 0.0
        %472 = vst [vmem:[#allocation3 + $0x158] sm:$0xff] 0.0
        %473 = vst [vmem:[#allocation3 + $0x160] sm:$0xff] 0.0
        %474 = vst [vmem:[#allocation3 + $0x168] sm:$0xff] 0.0
        %475 = vst [vmem:[#allocation3 + $0x170] sm:$0xff] 0.0
        %476 = vst [vmem:[#allocation3 + $0x178] sm:$0xff] 0.0
        %477 = vst [vmem:[#allocation3 + $0x180] sm:$0xff] 0.0
        %478 = vst [vmem:[#allocation3 + $0x188] sm:$0xff] 0.0
        %479 = vst [vmem:[#allocation3 + $0x190] sm:$0xff] 0.0
        %480 = vst [vmem:[#allocation3 + $0x198] sm:$0xff] 0.0
        %481 = vst [vmem:[#allocation3 + $0x1a0] sm:$0xff] 0.0
        %482 = vst [vmem:[#allocation3 + $0x1a8] sm:$0xff] 0.0
        %483 = vst [vmem:[#allocation3 + $0x1b0] sm:$0xff] 0.0
        %484 = vst [vmem:[#allocation3 + $0x1b8] sm:$0xff] 0.0
        %485 = vst [vmem:[#allocation3 + $0x1c0] sm:$0xff] 0.0
        %486 = vst [vmem:[#allocation3 + $0x1c8] sm:$0xff] 0.0
        %487 = vst [vmem:[#allocation3 + $0x1d0] sm:$0xff] 0.0
        %488 = vst [vmem:[#allocation3 + $0x1d8] sm:$0xff] 0.0
        %489 = vst [vmem:[#allocation3 + $0x1e0] sm:$0xff] 0.0
        %490 = vst [vmem:[#allocation3 + $0x1e8] sm:$0xff] 0.0
        %491 = vst [vmem:[#allocation3 + $0x1f0] sm:$0xff] 0.0
        %492 = vst [vmem:[#allocation3 + $0x1f8] sm:$0xff] 0.0
        %v493 = vld [vmem:[#allocation2] sm:$0xff]
        %v494 = vld [vmem:[#allocation2 + $0x8] sm:$0xff]
        %v495 = vld [vmem:[#allocation2 + $0x10] sm:$0xff]
        %v496 = vld [vmem:[#allocation2 + $0x18] sm:$0xff]
        %v497 = vld [vmem:[#allocation2 + $0x20] sm:$0xff]
        %v498 = vld [vmem:[#allocation2 + $0x28] sm:$0xff]
        %v499 = vld [vmem:[#allocation2 + $0x30] sm:$0xff]
        %v500 = vld [vmem:[#allocation2 + $0x38] sm:$0xff]
        %v501 = vld [vmem:[#allocation2 + $0x40] sm:$0xff]
        %v502 = vld [vmem:[#allocation2 + $0x48] sm:$0xff]
        %v503 = vld [vmem:[#allocation2 + $0x50] sm:$0xff]
        %v504 = vld [vmem:[#allocation2 + $0x58] sm:$0xff]
        %v505 = vld [vmem:[#allocation2 + $0x60] sm:$0xff]
        %v506 = vld [vmem:[#allocation2 + $0x68] sm:$0xff]
        %v507 = vld [vmem:[#allocation2 + $0x70] sm:$0xff]
        %v508 = vld [vmem:[#allocation2 + $0x78] sm:$0xff]
        %v509 = vld [vmem:[#allocation2 + $0x80] sm:$0xff]
        %v510 = vld [vmem:[#allocation2 + $0x88] sm:$0xff]
        %v511 = vld [vmem:[#allocation2 + $0x90] sm:$0xff]
        %v512 = vld [vmem:[#allocation2 + $0x98] sm:$0xff]
        %v513 = vld [vmem:[#allocation2 + $0xa0] sm:$0xff]
        %v514 = vld [vmem:[#allocation2 + $0xa8] sm:$0xff]
        %v515 = vld [vmem:[#allocation2 + $0xb0] sm:$0xff]
        %v516 = vld [vmem:[#allocation2 + $0xb8] sm:$0xff]
        %v517 = vld [vmem:[#allocation2 + $0xc0] sm:$0xff]
        %v518 = vld [vmem:[#allocation2 + $0xc8] sm:$0xff]
        %v519 = vld [vmem:[#allocation2 + $0xd0] sm:$0xff]
        %v520 = vld [vmem:[#allocation2 + $0xd8] sm:$0xff]
        %v521 = vld [vmem:[#allocation2 + $0xe0] sm:$0xff]
        %v522 = vld [vmem:[#allocation2 + $0xe8] sm:$0xff]
        %v523 = vld [vmem:[#allocation2 + $0xf0] sm:$0xff]
        %v524 = vld [vmem:[#allocation2 + $0xf8] sm:$0xff]
        %v525 = vld [vmem:[#allocation2 + $0x100] sm:$0xff]
        %v526 = vld [vmem:[#allocation2 + $0x108] sm:$0xff]
        %v527 = vld [vmem:[#allocation2 + $0x110] sm:$0xff]
        %v528 = vld [vmem:[#allocation2 + $0x118] sm:$0xff]
        %v529 = vld [vmem:[#allocation2 + $0x120] sm:$0xff]
        %v530 = vld [vmem:[#allocation2 + $0x128] sm:$0xff]
        %v531 = vld [vmem:[#allocation2 + $0x130] sm:$0xff]
        %v532 = vld [vmem:[#allocation2 + $0x138] sm:$0xff]
        %v533 = vld [vmem:[#allocation2 + $0x140] sm:$0xff]
        %v534 = vld [vmem:[#allocation2 + $0x148] sm:$0xff]
        %v535 = vld [vmem:[#allocation2 + $0x150] sm:$0xff]
        %v536 = vld [vmem:[#allocation2 + $0x158] sm:$0xff]
        %v537 = vld [vmem:[#allocation2 + $0x160] sm:$0xff]
        %v538 = vld [vmem:[#allocation2 + $0x168] sm:$0xff]
        %v539 = vld [vmem:[#allocation2 + $0x170] sm:$0xff]
        %v540 = vld [vmem:[#allocation2 + $0x178] sm:$0xff]
        %v541 = vld [vmem:[#allocation2 + $0x180] sm:$0xff]
        %v542 = vld [vmem:[#allocation2 + $0x188] sm:$0xff]
        %v543 = vld [vmem:[#allocation2 + $0x190] sm:$0xff]
        %v544 = vld [vmem:[#allocation2 + $0x198] sm:$0xff]
        %v545 = vld [vmem:[#allocation2 + $0x1a0] sm:$0xff]
        %v546 = vld [vmem:[#allocation2 + $0x1a8] sm:$0xff]
        %v547 = vld [vmem:[#allocation2 + $0x1b0] sm:$0xff]
        %v548 = vld [vmem:[#allocation2 + $0x1b8] sm:$0xff]
        %v549 = vld [vmem:[#allocation2 + $0x1c0] sm:$0xff]
        %v550 = vld [vmem:[#allocation2 + $0x1c8] sm:$0xff]
        %v551 = vld [vmem:[#allocation2 + $0x1d0] sm:$0xff]
        %v552 = vld [vmem:[#allocation2 + $0x1d8] sm:$0xff]
        %v553 = vld [vmem:[#allocation2 + $0x1e0] sm:$0xff]
        %v554 = vld [vmem:[#allocation2 + $0x1e8] sm:$0xff]
        %v555 = vld [vmem:[#allocation2 + $0x1f0] sm:$0xff]
        %v556 = vld [vmem:[#allocation2 + $0x1f8] sm:$0xff]
        %v557 = vpack.c.bf16 %v494, %v493
        %v558 = vpack.c.bf16 %v496, %v495
        %v559 = vpack.c.bf16 %v498, %v497
        %v560 = vpack.c.bf16 %v500, %v499
        %v561 = vpack.c.bf16 %v502, %v501
        %v562 = vpack.c.bf16 %v504, %v503
        %v563 = vpack.c.bf16 %v506, %v505
        %v564 = vpack.c.bf16 %v508, %v507
        %v565 = vpack.c.bf16 %v510, %v509
        %v566 = vpack.c.bf16 %v512, %v511
        %v567 = vpack.c.bf16 %v514, %v513
        %v568 = vpack.c.bf16 %v516, %v515
        %v569 = vpack.c.bf16 %v518, %v517
        %v570 = vpack.c.bf16 %v520, %v519
        %v571 = vpack.c.bf16 %v522, %v521
        %v572 = vpack.c.bf16 %v524, %v523
        %v573 = vpack.c.bf16 %v526, %v525
        %v574 = vpack.c.bf16 %v528, %v527
        %v575 = vpack.c.bf16 %v530, %v529
        %v576 = vpack.c.bf16 %v532, %v531
        %v577 = vpack.c.bf16 %v534, %v533
        %v578 = vpack.c.bf16 %v536, %v535
        %v579 = vpack.c.bf16 %v538, %v537
        %v580 = vpack.c.bf16 %v540, %v539
        %v581 = vpack.c.bf16 %v542, %v541
        %v582 = vpack.c.bf16 %v544, %v543
        %v583 = vpack.c.bf16 %v546, %v545
        %v584 = vpack.c.bf16 %v548, %v547
        %v585 = vpack.c.bf16 %v550, %v549
        %v586 = vpack.c.bf16 %v552, %v551
        %v587 = vpack.c.bf16 %v554, %v553
        %v588 = vpack.c.bf16 %v556, %v555
        %v589 = vld [vmem:[#allocation3] sm:$0xff]
        %v590 = vld [vmem:[#allocation3 + $0x8] sm:$0xff]
        %v591 = vld [vmem:[#allocation3 + $0x10] sm:$0xff]
        %v592 = vld [vmem:[#allocation3 + $0x18] sm:$0xff]
        %v593 = vld [vmem:[#allocation3 + $0x20] sm:$0xff]
        %v594 = vld [vmem:[#allocation3 + $0x28] sm:$0xff]
        %v595 = vld [vmem:[#allocation3 + $0x30] sm:$0xff]
        %v596 = vld [vmem:[#allocation3 + $0x38] sm:$0xff]
        %v597 = vld [vmem:[#allocation3 + $0x40] sm:$0xff]
        %v598 = vld [vmem:[#allocation3 + $0x48] sm:$0xff]
        %v599 = vld [vmem:[#allocation3 + $0x50] sm:$0xff]
        %v600 = vld [vmem:[#allocation3 + $0x58] sm:$0xff]
        %v601 = vld [vmem:[#allocation3 + $0x60] sm:$0xff]
        %v602 = vld [vmem:[#allocation3 + $0x68] sm:$0xff]
        %v603 = vld [vmem:[#allocation3 + $0x70] sm:$0xff]
        %v604 = vld [vmem:[#allocation3 + $0x78] sm:$0xff]
        %v605 = vld [vmem:[#allocation3 + $0x80] sm:$0xff]
        %v606 = vld [vmem:[#allocation3 + $0x88] sm:$0xff]
        %v607 = vld [vmem:[#allocation3 + $0x90] sm:$0xff]
        %v608 = vld [vmem:[#allocation3 + $0x98] sm:$0xff]
        %v609 = vld [vmem:[#allocation3 + $0xa0] sm:$0xff]
        %v610 = vld [vmem:[#allocation3 + $0xa8] sm:$0xff]
        %v611 = vld [vmem:[#allocation3 + $0xb0] sm:$0xff]
        %v612 = vld [vmem:[#allocation3 + $0xb8] sm:$0xff]
        %v613 = vld [vmem:[#allocation3 + $0xc0] sm:$0xff]
        %v614 = vld [vmem:[#allocation3 + $0xc8] sm:$0xff]
        %v615 = vld [vmem:[#allocation3 + $0xd0] sm:$0xff]
        %v616 = vld [vmem:[#allocation3 + $0xd8] sm:$0xff]
        %v617 = vld [vmem:[#allocation3 + $0xe0] sm:$0xff]
        %v618 = vld [vmem:[#allocation3 + $0xe8] sm:$0xff]
        %v619 = vld [vmem:[#allocation3 + $0xf0] sm:$0xff]
        %v620 = vld [vmem:[#allocation3 + $0xf8] sm:$0xff]
        %v621 = vld [vmem:[#allocation3 + $0x100] sm:$0xff]
        %v622 = vld [vmem:[#allocation3 + $0x108] sm:$0xff]
        %v623 = vld [vmem:[#allocation3 + $0x110] sm:$0xff]
        %v624 = vld [vmem:[#allocation3 + $0x118] sm:$0xff]
        %v625 = vld [vmem:[#allocation3 + $0x120] sm:$0xff]
        %v626 = vld [vmem:[#allocation3 + $0x128] sm:$0xff]
        %v627 = vld [vmem:[#allocation3 + $0x130] sm:$0xff]
        %v628 = vld [vmem:[#allocation3 + $0x138] sm:$0xff]
        %v629 = vld [vmem:[#allocation3 + $0x140] sm:$0xff]
        %v630 = vld [vmem:[#allocation3 + $0x148] sm:$0xff]
        %v631 = vld [vmem:[#allocation3 + $0x150] sm:$0xff]
        %v632 = vld [vmem:[#allocation3 + $0x158] sm:$0xff]
        %v633 = vld [vmem:[#allocation3 + $0x160] sm:$0xff]
        %v634 = vld [vmem:[#allocation3 + $0x168] sm:$0xff]
        %v635 = vld [vmem:[#allocation3 + $0x170] sm:$0xff]
        %v636 = vld [vmem:[#allocation3 + $0x178] sm:$0xff]
        %v637 = vld [vmem:[#allocation3 + $0x180] sm:$0xff]
        %v638 = vld [vmem:[#allocation3 + $0x188] sm:$0xff]
        %v639 = vld [vmem:[#allocation3 + $0x190] sm:$0xff]
        %v640 = vld [vmem:[#allocation3 + $0x198] sm:$0xff]
        %v641 = vld [vmem:[#allocation3 + $0x1a0] sm:$0xff]
        %v642 = vld [vmem:[#allocation3 + $0x1a8] sm:$0xff]
        %v643 = vld [vmem:[#allocation3 + $0x1b0] sm:$0xff]
        %v644 = vld [vmem:[#allocation3 + $0x1b8] sm:$0xff]
        %v645 = vld [vmem:[#allocation3 + $0x1c0] sm:$0xff]
        %v646 = vld [vmem:[#allocation3 + $0x1c8] sm:$0xff]
        %v647 = vld [vmem:[#allocation3 + $0x1d0] sm:$0xff]
        %v648 = vld [vmem:[#allocation3 + $0x1d8] sm:$0xff]
        %v649 = vld [vmem:[#allocation3 + $0x1e0] sm:$0xff]
        %v650 = vld [vmem:[#allocation3 + $0x1e8] sm:$0xff]
        %v651 = vld [vmem:[#allocation3 + $0x1f0] sm:$0xff]
        %v652 = vld [vmem:[#allocation3 + $0x1f8] sm:$0xff]
        %v653 = vld [vmem:[%s2] sm:$0x3]
        %v655 = vsel %vm348, %v557, 0
        %v658 = vsel %vm348, %v558, 0
        %v661 = vsel %vm348, %v559, 0
        %v664 = vsel %vm348, %v560, 0
        %v667 = vsel %vm348, %v561, 0
        %v670 = vsel %vm348, %v562, 0
        %v673 = vsel %vm348, %v563, 0
        %v676 = vsel %vm348, %v564, 0
        %v679 = vsel %vm348, %v565, 0
        %v682 = vsel %vm348, %v566, 0
        %v685 = vsel %vm348, %v567, 0
        %v688 = vsel %vm348, %v568, 0
        %v691 = vsel %vm348, %v569, 0
        %v694 = vsel %vm348, %v570, 0
        %v697 = vsel %vm348, %v571, 0
        %v700 = vsel %vm348, %v572, 0
        %v703 = vsel %vm348, %v573, 0
        %v706 = vsel %vm348, %v574, 0
        %v709 = vsel %vm348, %v575, 0
        %v712 = vsel %vm348, %v576, 0
        %v715 = vsel %vm348, %v577, 0
        %v718 = vsel %vm348, %v578, 0
        %v721 = vsel %vm348, %v579, 0
        %v724 = vsel %vm348, %v580, 0
        %v727 = vsel %vm348, %v581, 0
        %v730 = vsel %vm348, %v582, 0
        %v733 = vsel %vm348, %v583, 0
        %v736 = vsel %vm348, %v584, 0
        %v739 = vsel %vm348, %v585, 0
        %v742 = vsel %vm348, %v586, 0
        %v745 = vsel %vm348, %v587, 0
        %v748 = vsel %vm348, %v588, 0
        %vm750 = vcmask 1041408
        %v752 = vsel %vm750, %v653, 0
        %754 = vmatpush.bf16.msra.mxu0 0
        %755 = vmatpush.bf16.msra.mxu0 0
        %756 = vmatpush.bf16.msra.mxu0 0
        %757 = vmatpush.bf16.msra.mxu0 0
        %758 = vmatpush.bf16.msra.mxu0 0
        %759 = vmatpush.bf16.msra.mxu0 0
        %760 = vmatpush.bf16.msra.mxu0 0
        %761 = vmatpush.bf16.msra.mxu0 %v752
        %762 = vmatmul.bf16.gmra.mxu0 %v655
        %v763 = vpop.f32.mrf.mxu0
        %v764 = vadd.f32 0.0, %v763
        %v765 = vpop.f32.mrf.mxu0
        %v766 = vadd.f32 0.0, %v765
        %767 = vmatmul.bf16.gmra.mxu0 %v658
        %v768 = vpop.f32.mrf.mxu0
        %v769 = vadd.f32 0.0, %v768
        %v770 = vpop.f32.mrf.mxu0
        %v771 = vadd.f32 0.0, %v770
        %772 = vmatmul.bf16.gmra.mxu0 %v661
        %v773 = vpop.f32.mrf.mxu0
        %v774 = vadd.f32 0.0, %v773
        %v775 = vpop.f32.mrf.mxu0
        %v776 = vadd.f32 0.0, %v775
        %777 = vmatmul.bf16.gmra.mxu0 %v664
        %v778 = vpop.f32.mrf.mxu0
        %v779 = vadd.f32 0.0, %v778
        %v780 = vpop.f32.mrf.mxu0
        %v781 = vadd.f32 0.0, %v780
        %782 = vmatmul.bf16.gmra.mxu0 %v667
        %v783 = vpop.f32.mrf.mxu0
        %v784 = vadd.f32 0.0, %v783
        %v785 = vpop.f32.mrf.mxu0
        %v786 = vadd.f32 0.0, %v785
        %787 = vmatmul.bf16.gmra.mxu0 %v670
        %v788 = vpop.f32.mrf.mxu0
        %v789 = vadd.f32 0.0, %v788
        %v790 = vpop.f32.mrf.mxu0
        %v791 = vadd.f32 0.0, %v790
        %792 = vmatmul.bf16.gmra.mxu0 %v673
        %v793 = vpop.f32.mrf.mxu0
        %v794 = vadd.f32 0.0, %v793
        %v795 = vpop.f32.mrf.mxu0
        %v796 = vadd.f32 0.0, %v795
        %797 = vmatmul.bf16.gmra.mxu0 %v676
        %v798 = vpop.f32.mrf.mxu0
        %v799 = vadd.f32 0.0, %v798
        %v800 = vpop.f32.mrf.mxu0
        %v801 = vadd.f32 0.0, %v800
        %802 = vmatmul.bf16.gmra.mxu0 %v679
        %v803 = vpop.f32.mrf.mxu0
        %v804 = vadd.f32 0.0, %v803
        %v805 = vpop.f32.mrf.mxu0
        %v806 = vadd.f32 0.0, %v805
        %807 = vmatmul.bf16.gmra.mxu0 %v682
        %v808 = vpop.f32.mrf.mxu0
        %v809 = vadd.f32 0.0, %v808
        %v810 = vpop.f32.mrf.mxu0
        %v811 = vadd.f32 0.0, %v810
        %812 = vmatmul.bf16.gmra.mxu0 %v685
        %v813 = vpop.f32.mrf.mxu0
        %v814 = vadd.f32 0.0, %v813
        %v815 = vpop.f32.mrf.mxu0
        %v816 = vadd.f32 0.0, %v815
        %817 = vmatmul.bf16.gmra.mxu0 %v688
        %v818 = vpop.f32.mrf.mxu0
        %v819 = vadd.f32 0.0, %v818
        %v820 = vpop.f32.mrf.mxu0
        %v821 = vadd.f32 0.0, %v820
        %822 = vmatmul.bf16.gmra.mxu0 %v691
        %v823 = vpop.f32.mrf.mxu0
        %v824 = vadd.f32 0.0, %v823
        %v825 = vpop.f32.mrf.mxu0
        %v826 = vadd.f32 0.0, %v825
        %827 = vmatmul.bf16.gmra.mxu0 %v694
        %v828 = vpop.f32.mrf.mxu0
        %v829 = vadd.f32 0.0, %v828
        %v830 = vpop.f32.mrf.mxu0
        %v831 = vadd.f32 0.0, %v830
        %832 = vmatmul.bf16.gmra.mxu0 %v697
        %v833 = vpop.f32.mrf.mxu0
        %v834 = vadd.f32 0.0, %v833
        %v835 = vpop.f32.mrf.mxu0
        %v836 = vadd.f32 0.0, %v835
        %837 = vmatmul.bf16.gmra.mxu0 %v700
        %v838 = vpop.f32.mrf.mxu0
        %v839 = vadd.f32 0.0, %v838
        %v840 = vpop.f32.mrf.mxu0
        %v841 = vadd.f32 0.0, %v840
        %842 = vmatmul.bf16.gmra.mxu0 %v703
        %v843 = vpop.f32.mrf.mxu0
        %v844 = vadd.f32 0.0, %v843
        %v845 = vpop.f32.mrf.mxu0
        %v846 = vadd.f32 0.0, %v845
        %847 = vmatmul.bf16.gmra.mxu0 %v706
        %v848 = vpop.f32.mrf.mxu0
        %v849 = vadd.f32 0.0, %v848
        %v850 = vpop.f32.mrf.mxu0
        %v851 = vadd.f32 0.0, %v850
        %852 = vmatmul.bf16.gmra.mxu0 %v709
        %v853 = vpop.f32.mrf.mxu0
        %v854 = vadd.f32 0.0, %v853
        %v855 = vpop.f32.mrf.mxu0
        %v856 = vadd.f32 0.0, %v855
        %857 = vmatmul.bf16.gmra.mxu0 %v712
        %v858 = vpop.f32.mrf.mxu0
        %v859 = vadd.f32 0.0, %v858
        %v860 = vpop.f32.mrf.mxu0
        %v861 = vadd.f32 0.0, %v860
        %862 = vmatmul.bf16.gmra.mxu0 %v715
        %v863 = vpop.f32.mrf.mxu0
        %v864 = vadd.f32 0.0, %v863
        %v865 = vpop.f32.mrf.mxu0
        %v866 = vadd.f32 0.0, %v865
        %867 = vmatmul.bf16.gmra.mxu0 %v718
        %v868 = vpop.f32.mrf.mxu0
        %v869 = vadd.f32 0.0, %v868
        %v870 = vpop.f32.mrf.mxu0
        %v871 = vadd.f32 0.0, %v870
        %872 = vmatmul.bf16.gmra.mxu0 %v721
        %v873 = vpop.f32.mrf.mxu0
        %v874 = vadd.f32 0.0, %v873
        %v875 = vpop.f32.mrf.mxu0
        %v876 = vadd.f32 0.0, %v875
        %877 = vmatmul.bf16.gmra.mxu0 %v724
        %v878 = vpop.f32.mrf.mxu0
        %v879 = vadd.f32 0.0, %v878
        %v880 = vpop.f32.mrf.mxu0
        %v881 = vadd.f32 0.0, %v880
        %882 = vmatmul.bf16.gmra.mxu0 %v727
        %v883 = vpop.f32.mrf.mxu0
        %v884 = vadd.f32 0.0, %v883
        %v885 = vpop.f32.mrf.mxu0
        %v886 = vadd.f32 0.0, %v885
        %887 = vmatmul.bf16.gmra.mxu0 %v730
        %v888 = vpop.f32.mrf.mxu0
        %v889 = vadd.f32 0.0, %v888
        %v890 = vpop.f32.mrf.mxu0
        %v891 = vadd.f32 0.0, %v890
        %892 = vmatmul.bf16.gmra.mxu0 %v733
        %v893 = vpop.f32.mrf.mxu0
        %v894 = vadd.f32 0.0, %v893
        %v895 = vpop.f32.mrf.mxu0
        %v896 = vadd.f32 0.0, %v895
        %897 = vmatmul.bf16.gmra.mxu0 %v736
        %v898 = vpop.f32.mrf.mxu0
        %v899 = vadd.f32 0.0, %v898
        %v900 = vpop.f32.mrf.mxu0
        %v901 = vadd.f32 0.0, %v900
        %902 = vmatmul.bf16.gmra.mxu0 %v739
        %v903 = vpop.f32.mrf.mxu0
        %v904 = vadd.f32 0.0, %v903
        %v905 = vpop.f32.mrf.mxu0
        %v906 = vadd.f32 0.0, %v905
        %907 = vmatmul.bf16.gmra.mxu0 %v742
        %v908 = vpop.f32.mrf.mxu0
        %v909 = vadd.f32 0.0, %v908
        %v910 = vpop.f32.mrf.mxu0
        %v911 = vadd.f32 0.0, %v910
        %912 = vmatmul.bf16.gmra.mxu0 %v745
        %v913 = vpop.f32.mrf.mxu0
        %v914 = vadd.f32 0.0, %v913
        %v915 = vpop.f32.mrf.mxu0
        %v916 = vadd.f32 0.0, %v915
        %917 = vmatmul.bf16.gmra.mxu0 %v748
        %v918 = vpop.f32.mrf.mxu0
        %v919 = vadd.f32 0.0, %v918
        %v920 = vpop.f32.mrf.mxu0
        %v921 = vadd.f32 0.0, %v920
        %922 = vdwg.mxu0
        %v923 = vadd.f32 %v589, %v764
        %v924 = vadd.f32 %v590, %v766
        %v925 = vadd.f32 %v591, %v769
        %v926 = vadd.f32 %v592, %v771
        %v927 = vadd.f32 %v593, %v774
        %v928 = vadd.f32 %v594, %v776
        %v929 = vadd.f32 %v595, %v779
        %v930 = vadd.f32 %v596, %v781
        %v931 = vadd.f32 %v597, %v784
        %v932 = vadd.f32 %v598, %v786
        %v933 = vadd.f32 %v599, %v789
        %v934 = vadd.f32 %v600, %v791
        %v935 = vadd.f32 %v601, %v794
        %v936 = vadd.f32 %v602, %v796
        %v937 = vadd.f32 %v603, %v799
        %v938 = vadd.f32 %v604, %v801
        %v939 = vadd.f32 %v605, %v804
        %v940 = vadd.f32 %v606, %v806
        %v941 = vadd.f32 %v607, %v809
        %v942 = vadd.f32 %v608, %v811
        %v943 = vadd.f32 %v609, %v814
        %v944 = vadd.f32 %v610, %v816
        %v945 = vadd.f32 %v611, %v819
        %v946 = vadd.f32 %v612, %v821
        %v947 = vadd.f32 %v613, %v824
        %v948 = vadd.f32 %v614, %v826
        %v949 = vadd.f32 %v615, %v829
        %v950 = vadd.f32 %v616, %v831
        %v951 = vadd.f32 %v617, %v834
        %v952 = vadd.f32 %v618, %v836
        %v953 = vadd.f32 %v619, %v839
        %v954 = vadd.f32 %v620, %v841
        %v955 = vadd.f32 %v621, %v844
        %v956 = vadd.f32 %v622, %v846
        %v957 = vadd.f32 %v623, %v849
        %v958 = vadd.f32 %v624, %v851
        %v959 = vadd.f32 %v625, %v854
        %v960 = vadd.f32 %v626, %v856
        %v961 = vadd.f32 %v627, %v859
        %v962 = vadd.f32 %v628, %v861
        %v963 = vadd.f32 %v629, %v864
        %v964 = vadd.f32 %v630, %v866
        %v965 = vadd.f32 %v631, %v869
        %v966 = vadd.f32 %v632, %v871
        %v967 = vadd.f32 %v633, %v874
        %v968 = vadd.f32 %v634, %v876
        %v969 = vadd.f32 %v635, %v879
        %v970 = vadd.f32 %v636, %v881
        %v971 = vadd.f32 %v637, %v884
        %v972 = vadd.f32 %v638, %v886
        %v973 = vadd.f32 %v639, %v889
        %v974 = vadd.f32 %v640, %v891
        %v975 = vadd.f32 %v641, %v894
        %v976 = vadd.f32 %v642, %v896
        %v977 = vadd.f32 %v643, %v899
        %v978 = vadd.f32 %v644, %v901
        %v979 = vadd.f32 %v645, %v904
        %v980 = vadd.f32 %v646, %v906
        %v981 = vadd.f32 %v647, %v909
        %v982 = vadd.f32 %v648, %v911
        %v983 = vadd.f32 %v649, %v914
        %v984 = vadd.f32 %v650, %v916
        %v985 = vadd.f32 %v651, %v919
        %v986 = vadd.f32 %v652, %v921
        %987 = vst [vmem:[#allocation3] sm:$0xff] %v923
        %988 = vst [vmem:[#allocation3 + $0x8] sm:$0xff] %v924
        %989 = vst [vmem:[#allocation3 + $0x10] sm:$0xff] %v925
        %990 = vst [vmem:[#allocation3 + $0x18] sm:$0xff] %v926
        %991 = vst [vmem:[#allocation3 + $0x20] sm:$0xff] %v927
        %992 = vst [vmem:[#allocation3 + $0x28] sm:$0xff] %v928
        %993 = vst [vmem:[#allocation3 + $0x30] sm:$0xff] %v929
        %994 = vst [vmem:[#allocation3 + $0x38] sm:$0xff] %v930
        %995 = vst [vmem:[#allocation3 + $0x40] sm:$0xff] %v931
        %996 = vst [vmem:[#allocation3 + $0x48] sm:$0xff] %v932
        %997 = vst [vmem:[#allocation3 + $0x50] sm:$0xff] %v933
        %998 = vst [vmem:[#allocation3 + $0x58] sm:$0xff] %v934
        %999 = vst [vmem:[#allocation3 + $0x60] sm:$0xff] %v935
        %1000 = vst [vmem:[#allocation3 + $0x68] sm:$0xff] %v936
        %1001 = vst [vmem:[#allocation3 + $0x70] sm:$0xff] %v937
        %1002 = vst [vmem:[#allocation3 + $0x78] sm:$0xff] %v938
        %1003 = vst [vmem:[#allocation3 + $0x80] sm:$0xff] %v939
        %1004 = vst [vmem:[#allocation3 + $0x88] sm:$0xff] %v940
        %1005 = vst [vmem:[#allocation3 + $0x90] sm:$0xff] %v941
        %1006 = vst [vmem:[#allocation3 + $0x98] sm:$0xff] %v942
        %1007 = vst [vmem:[#allocation3 + $0xa0] sm:$0xff] %v943
        %1008 = vst [vmem:[#allocation3 + $0xa8] sm:$0xff] %v944
        %1009 = vst [vmem:[#allocation3 + $0xb0] sm:$0xff] %v945
        %1010 = vst [vmem:[#allocation3 + $0xb8] sm:$0xff] %v946
        %1011 = vst [vmem:[#allocation3 + $0xc0] sm:$0xff] %v947
        %1012 = vst [vmem:[#allocation3 + $0xc8] sm:$0xff] %v948
        %1013 = vst [vmem:[#allocation3 + $0xd0] sm:$0xff] %v949
        %1014 = vst [vmem:[#allocation3 + $0xd8] sm:$0xff] %v950
        %1015 = vst [vmem:[#allocation3 + $0xe0] sm:$0xff] %v951
        %1016 = vst [vmem:[#allocation3 + $0xe8] sm:$0xff] %v952
        %1017 = vst [vmem:[#allocation3 + $0xf0] sm:$0xff] %v953
        %1018 = vst [vmem:[#allocation3 + $0xf8] sm:$0xff] %v954
        %1019 = vst [vmem:[#allocation3 + $0x100] sm:$0xff] %v955
        %1020 = vst [vmem:[#allocation3 + $0x108] sm:$0xff] %v956
        %1021 = vst [vmem:[#allocation3 + $0x110] sm:$0xff] %v957
        %1022 = vst [vmem:[#allocation3 + $0x118] sm:$0xff] %v958
        %1023 = vst [vmem:[#allocation3 + $0x120] sm:$0xff] %v959
        %1024 = vst [vmem:[#allocation3 + $0x128] sm:$0xff] %v960
        %1025 = vst [vmem:[#allocation3 + $0x130] sm:$0xff] %v961
        %1026 = vst [vmem:[#allocation3 + $0x138] sm:$0xff] %v962
        %1027 = vst [vmem:[#allocation3 + $0x140] sm:$0xff] %v963
        %1028 = vst [vmem:[#allocation3 + $0x148] sm:$0xff] %v964
        %1029 = vst [vmem:[#allocation3 + $0x150] sm:$0xff] %v965
        %1030 = vst [vmem:[#allocation3 + $0x158] sm:$0xff] %v966
        %1031 = vst [vmem:[#allocation3 + $0x160] sm:$0xff] %v967
        %1032 = vst [vmem:[#allocation3 + $0x168] sm:$0xff] %v968
        %1033 = vst [vmem:[#allocation3 + $0x170] sm:$0xff] %v969
        %1034 = vst [vmem:[#allocation3 + $0x178] sm:$0xff] %v970
        %1035 = vst [vmem:[#allocation3 + $0x180] sm:$0xff] %v971
        %1036 = vst [vmem:[#allocation3 + $0x188] sm:$0xff] %v972
        %1037 = vst [vmem:[#allocation3 + $0x190] sm:$0xff] %v973
        %1038 = vst [vmem:[#allocation3 + $0x198] sm:$0xff] %v974
        %1039 = vst [vmem:[#allocation3 + $0x1a0] sm:$0xff] %v975
        %1040 = vst [vmem:[#allocation3 + $0x1a8] sm:$0xff] %v976
        %1041 = vst [vmem:[#allocation3 + $0x1b0] sm:$0xff] %v977
        %1042 = vst [vmem:[#allocation3 + $0x1b8] sm:$0xff] %v978
        %1043 = vst [vmem:[#allocation3 + $0x1c0] sm:$0xff] %v979
        %1044 = vst [vmem:[#allocation3 + $0x1c8] sm:$0xff] %v980
        %1045 = vst [vmem:[#allocation3 + $0x1d0] sm:$0xff] %v981
        %1046 = vst [vmem:[#allocation3 + $0x1d8] sm:$0xff] %v982
        %1047 = vst [vmem:[#allocation3 + $0x1e0] sm:$0xff] %v983
        %1048 = vst [vmem:[#allocation3 + $0x1e8] sm:$0xff] %v984
        %1049 = vst [vmem:[#allocation3 + $0x1f0] sm:$0xff] %v985
        %1050 = vst [vmem:[#allocation3 + $0x1f8] sm:$0xff] %v986
        %v1051 = vld [vmem:[#allocation2 + $0x1] sm:$0xff]
        %v1052 = vld [vmem:[#allocation2 + $0x9] sm:$0xff]
        %v1053 = vld [vmem:[#allocation2 + $0x11] sm:$0xff]
        %v1054 = vld [vmem:[#allocation2 + $0x19] sm:$0xff]
        %v1055 = vld [vmem:[#allocation2 + $0x21] sm:$0xff]
        %v1056 = vld [vmem:[#allocation2 + $0x29] sm:$0xff]
        %v1057 = vld [vmem:[#allocation2 + $0x31] sm:$0xff]
        %v1058 = vld [vmem:[#allocation2 + $0x39] sm:$0xff]
        %v1059 = vld [vmem:[#allocation2 + $0x41] sm:$0xff]
        %v1060 = vld [vmem:[#allocation2 + $0x49] sm:$0xff]
        %v1061 = vld [vmem:[#allocation2 + $0x51] sm:$0xff]
        %v1062 = vld [vmem:[#allocation2 + $0x59] sm:$0xff]
        %v1063 = vld [vmem:[#allocation2 + $0x61] sm:$0xff]
        %v1064 = vld [vmem:[#allocation2 + $0x69] sm:$0xff]
        %v1065 = vld [vmem:[#allocation2 + $0x71] sm:$0xff]
        %v1066 = vld [vmem:[#allocation2 + $0x79] sm:$0xff]
        %v1067 = vld [vmem:[#allocation2 + $0x81] sm:$0xff]
        %v1068 = vld [vmem:[#allocation2 + $0x89] sm:$0xff]
        %v1069 = vld [vmem:[#allocation2 + $0x91] sm:$0xff]
        %v1070 = vld [vmem:[#allocation2 + $0x99] sm:$0xff]
        %v1071 = vld [vmem:[#allocation2 + $0xa1] sm:$0xff]
        %v1072 = vld [vmem:[#allocation2 + $0xa9] sm:$0xff]
        %v1073 = vld [vmem:[#allocation2 + $0xb1] sm:$0xff]
        %v1074 = vld [vmem:[#allocation2 + $0xb9] sm:$0xff]
        %v1075 = vld [vmem:[#allocation2 + $0xc1] sm:$0xff]
        %v1076 = vld [vmem:[#allocation2 + $0xc9] sm:$0xff]
        %v1077 = vld [vmem:[#allocation2 + $0xd1] sm:$0xff]
        %v1078 = vld [vmem:[#allocation2 + $0xd9] sm:$0xff]
        %v1079 = vld [vmem:[#allocation2 + $0xe1] sm:$0xff]
        %v1080 = vld [vmem:[#allocation2 + $0xe9] sm:$0xff]
        %v1081 = vld [vmem:[#allocation2 + $0xf1] sm:$0xff]
        %v1082 = vld [vmem:[#allocation2 + $0xf9] sm:$0xff]
        %v1083 = vld [vmem:[#allocation2 + $0x101] sm:$0xff]
        %v1084 = vld [vmem:[#allocation2 + $0x109] sm:$0xff]
        %v1085 = vld [vmem:[#allocation2 + $0x111] sm:$0xff]
        %v1086 = vld [vmem:[#allocation2 + $0x119] sm:$0xff]
        %v1087 = vld [vmem:[#allocation2 + $0x121] sm:$0xff]
        %v1088 = vld [vmem:[#allocation2 + $0x129] sm:$0xff]
        %v1089 = vld [vmem:[#allocation2 + $0x131] sm:$0xff]
        %v1090 = vld [vmem:[#allocation2 + $0x139] sm:$0xff]
        %v1091 = vld [vmem:[#allocation2 + $0x141] sm:$0xff]
        %v1092 = vld [vmem:[#allocation2 + $0x149] sm:$0xff]
        %v1093 = vld [vmem:[#allocation2 + $0x151] sm:$0xff]
        %v1094 = vld [vmem:[#allocation2 + $0x159] sm:$0xff]
        %v1095 = vld [vmem:[#allocation2 + $0x161] sm:$0xff]
        %v1096 = vld [vmem:[#allocation2 + $0x169] sm:$0xff]
        %v1097 = vld [vmem:[#allocation2 + $0x171] sm:$0xff]
        %v1098 = vld [vmem:[#allocation2 + $0x179] sm:$0xff]
        %v1099 = vld [vmem:[#allocation2 + $0x181] sm:$0xff]
        %v1100 = vld [vmem:[#allocation2 + $0x189] sm:$0xff]
        %v1101 = vld [vmem:[#allocation2 + $0x191] sm:$0xff]
        %v1102 = vld [vmem:[#allocation2 + $0x199] sm:$0xff]
        %v1103 = vld [vmem:[#allocation2 + $0x1a1] sm:$0xff]
        %v1104 = vld [vmem:[#allocation2 + $0x1a9] sm:$0xff]
        %v1105 = vld [vmem:[#allocation2 + $0x1b1] sm:$0xff]
        %v1106 = vld [vmem:[#allocation2 + $0x1b9] sm:$0xff]
        %v1107 = vld [vmem:[#allocation2 + $0x1c1] sm:$0xff]
        %v1108 = vld [vmem:[#allocation2 + $0x1c9] sm:$0xff]
        %v1109 = vld [vmem:[#allocation2 + $0x1d1] sm:$0xff]
        %v1110 = vld [vmem:[#allocation2 + $0x1d9] sm:$0xff]
        %v1111 = vld [vmem:[#allocation2 + $0x1e1] sm:$0xff]
        %v1112 = vld [vmem:[#allocation2 + $0x1e9] sm:$0xff]
        %v1113 = vld [vmem:[#allocation2 + $0x1f1] sm:$0xff]
        %v1114 = vld [vmem:[#allocation2 + $0x1f9] sm:$0xff]
        %v1115 = vpack.c.bf16 %v1052, %v1051
        %v1116 = vpack.c.bf16 %v1054, %v1053
        %v1117 = vpack.c.bf16 %v1056, %v1055
        %v1118 = vpack.c.bf16 %v1058, %v1057
        %v1119 = vpack.c.bf16 %v1060, %v1059
        %v1120 = vpack.c.bf16 %v1062, %v1061
        %v1121 = vpack.c.bf16 %v1064, %v1063
        %v1122 = vpack.c.bf16 %v1066, %v1065
        %v1123 = vpack.c.bf16 %v1068, %v1067
        %v1124 = vpack.c.bf16 %v1070, %v1069
        %v1125 = vpack.c.bf16 %v1072, %v1071
        %v1126 = vpack.c.bf16 %v1074, %v1073
        %v1127 = vpack.c.bf16 %v1076, %v1075
        %v1128 = vpack.c.bf16 %v1078, %v1077
        %v1129 = vpack.c.bf16 %v1080, %v1079
        %v1130 = vpack.c.bf16 %v1082, %v1081
        %v1131 = vpack.c.bf16 %v1084, %v1083
        %v1132 = vpack.c.bf16 %v1086, %v1085
        %v1133 = vpack.c.bf16 %v1088, %v1087
        %v1134 = vpack.c.bf16 %v1090, %v1089
        %v1135 = vpack.c.bf16 %v1092, %v1091
        %v1136 = vpack.c.bf16 %v1094, %v1093
        %v1137 = vpack.c.bf16 %v1096, %v1095
        %v1138 = vpack.c.bf16 %v1098, %v1097
        %v1139 = vpack.c.bf16 %v1100, %v1099
        %v1140 = vpack.c.bf16 %v1102, %v1101
        %v1141 = vpack.c.bf16 %v1104, %v1103
        %v1142 = vpack.c.bf16 %v1106, %v1105
        %v1143 = vpack.c.bf16 %v1108, %v1107
        %v1144 = vpack.c.bf16 %v1110, %v1109
        %v1145 = vpack.c.bf16 %v1112, %v1111
        %v1146 = vpack.c.bf16 %v1114, %v1113
        %v1147 = vld [vmem:[#allocation3] sm:$0xff]
        %v1148 = vld [vmem:[#allocation3 + $0x8] sm:$0xff]
        %v1149 = vld [vmem:[#allocation3 + $0x10] sm:$0xff]
        %v1150 = vld [vmem:[#allocation3 + $0x18] sm:$0xff]
        %v1151 = vld [vmem:[#allocation3 + $0x20] sm:$0xff]
        %v1152 = vld [vmem:[#allocation3 + $0x28] sm:$0xff]
        %v1153 = vld [vmem:[#allocation3 + $0x30] sm:$0xff]
        %v1154 = vld [vmem:[#allocation3 + $0x38] sm:$0xff]
        %v1155 = vld [vmem:[#allocation3 + $0x40] sm:$0xff]
        %v1156 = vld [vmem:[#allocation3 + $0x48] sm:$0xff]
        %v1157 = vld [vmem:[#allocation3 + $0x50] sm:$0xff]
        %v1158 = vld [vmem:[#allocation3 + $0x58] sm:$0xff]
        %v1159 = vld [vmem:[#allocation3 + $0x60] sm:$0xff]
        %v1160 = vld [vmem:[#allocation3 + $0x68] sm:$0xff]
        %v1161 = vld [vmem:[#allocation3 + $0x70] sm:$0xff]
        %v1162 = vld [vmem:[#allocation3 + $0x78] sm:$0xff]
        %v1163 = vld [vmem:[#allocation3 + $0x80] sm:$0xff]
        %v1164 = vld [vmem:[#allocation3 + $0x88] sm:$0xff]
        %v1165 = vld [vmem:[#allocation3 + $0x90] sm:$0xff]
        %v1166 = vld [vmem:[#allocation3 + $0x98] sm:$0xff]
        %v1167 = vld [vmem:[#allocation3 + $0xa0] sm:$0xff]
        %v1168 = vld [vmem:[#allocation3 + $0xa8] sm:$0xff]
        %v1169 = vld [vmem:[#allocation3 + $0xb0] sm:$0xff]
        %v1170 = vld [vmem:[#allocation3 + $0xb8] sm:$0xff]
        %v1171 = vld [vmem:[#allocation3 + $0xc0] sm:$0xff]
        %v1172 = vld [vmem:[#allocation3 + $0xc8] sm:$0xff]
        %v1173 = vld [vmem:[#allocation3 + $0xd0] sm:$0xff]
        %v1174 = vld [vmem:[#allocation3 + $0xd8] sm:$0xff]
        %v1175 = vld [vmem:[#allocation3 + $0xe0] sm:$0xff]
        %v1176 = vld [vmem:[#allocation3 + $0xe8] sm:$0xff]
        %v1177 = vld [vmem:[#allocation3 + $0xf0] sm:$0xff]
        %v1178 = vld [vmem:[#allocation3 + $0xf8] sm:$0xff]
        %v1179 = vld [vmem:[#allocation3 + $0x100] sm:$0xff]
        %v1180 = vld [vmem:[#allocation3 + $0x108] sm:$0xff]
        %v1181 = vld [vmem:[#allocation3 + $0x110] sm:$0xff]
        %v1182 = vld [vmem:[#allocation3 + $0x118] sm:$0xff]
        %v1183 = vld [vmem:[#allocation3 + $0x120] sm:$0xff]
        %v1184 = vld [vmem:[#allocation3 + $0x128] sm:$0xff]
        %v1185 = vld [vmem:[#allocation3 + $0x130] sm:$0xff]
        %v1186 = vld [vmem:[#allocation3 + $0x138] sm:$0xff]
        %v1187 = vld [vmem:[#allocation3 + $0x140] sm:$0xff]
        %v1188 = vld [vmem:[#allocation3 + $0x148] sm:$0xff]
        %v1189 = vld [vmem:[#allocation3 + $0x150] sm:$0xff]
        %v1190 = vld [vmem:[#allocation3 + $0x158] sm:$0xff]
        %v1191 = vld [vmem:[#allocation3 + $0x160] sm:$0xff]
        %v1192 = vld [vmem:[#allocation3 + $0x168] sm:$0xff]
        %v1193 = vld [vmem:[#allocation3 + $0x170] sm:$0xff]
        %v1194 = vld [vmem:[#allocation3 + $0x178] sm:$0xff]
        %v1195 = vld [vmem:[#allocation3 + $0x180] sm:$0xff]
        %v1196 = vld [vmem:[#allocation3 + $0x188] sm:$0xff]
        %v1197 = vld [vmem:[#allocation3 + $0x190] sm:$0xff]
        %v1198 = vld [vmem:[#allocation3 + $0x198] sm:$0xff]
        %v1199 = vld [vmem:[#allocation3 + $0x1a0] sm:$0xff]
        %v1200 = vld [vmem:[#allocation3 + $0x1a8] sm:$0xff]
        %v1201 = vld [vmem:[#allocation3 + $0x1b0] sm:$0xff]
        %v1202 = vld [vmem:[#allocation3 + $0x1b8] sm:$0xff]
        %v1203 = vld [vmem:[#allocation3 + $0x1c0] sm:$0xff]
        %v1204 = vld [vmem:[#allocation3 + $0x1c8] sm:$0xff]
        %v1205 = vld [vmem:[#allocation3 + $0x1d0] sm:$0xff]
        %v1206 = vld [vmem:[#allocation3 + $0x1d8] sm:$0xff]
        %v1207 = vld [vmem:[#allocation3 + $0x1e0] sm:$0xff]
        %v1208 = vld [vmem:[#allocation3 + $0x1e8] sm:$0xff]
        %v1209 = vld [vmem:[#allocation3 + $0x1f0] sm:$0xff]
        %v1210 = vld [vmem:[#allocation3 + $0x1f8] sm:$0xff]
        %s1211 = scalar_lea.vmem %s2, 2
        %v1212 = vld [vmem:[%s1211] sm:$0x3]
        %v1214 = vsel %vm348, %v1115, 0
        %v1217 = vsel %vm348, %v1116, 0
        %v1220 = vsel %vm348, %v1117, 0
        %v1223 = vsel %vm348, %v1118, 0
        %v1226 = vsel %vm348, %v1119, 0
        %v1229 = vsel %vm348, %v1120, 0
        %v1232 = vsel %vm348, %v1121, 0
        %v1235 = vsel %vm348, %v1122, 0
        %v1238 = vsel %vm348, %v1123, 0
        %v1241 = vsel %vm348, %v1124, 0
        %v1244 = vsel %vm348, %v1125, 0
        %v1247 = vsel %vm348, %v1126, 0
        %v1250 = vsel %vm348, %v1127, 0
        %v1253 = vsel %vm348, %v1128, 0
        %v1256 = vsel %vm348, %v1129, 0
        %v1259 = vsel %vm348, %v1130, 0
        %v1262 = vsel %vm348, %v1131, 0
        %v1265 = vsel %vm348, %v1132, 0
        %v1268 = vsel %vm348, %v1133, 0
        %v1271 = vsel %vm348, %v1134, 0
        %v1274 = vsel %vm348, %v1135, 0
        %v1277 = vsel %vm348, %v1136, 0
        %v1280 = vsel %vm348, %v1137, 0
        %v1283 = vsel %vm348, %v1138, 0
        %v1286 = vsel %vm348, %v1139, 0
        %v1289 = vsel %vm348, %v1140, 0
        %v1292 = vsel %vm348, %v1141, 0
        %v1295 = vsel %vm348, %v1142, 0
        %v1298 = vsel %vm348, %v1143, 0
        %v1301 = vsel %vm348, %v1144, 0
        %v1304 = vsel %vm348, %v1145, 0
        %v1307 = vsel %vm348, %v1146, 0
        %v1310 = vsel %vm750, %v1212, 0
        %1312 = vmatpush.bf16.msra.mxu0 0
        %1313 = vmatpush.bf16.msra.mxu0 0
        %1314 = vmatpush.bf16.msra.mxu0 0
        %1315 = vmatpush.bf16.msra.mxu0 0
        %1316 = vmatpush.bf16.msra.mxu0 0
        %1317 = vmatpush.bf16.msra.mxu0 0
        %1318 = vmatpush.bf16.msra.mxu0 0
        %1319 = vmatpush.bf16.msra.mxu0 %v1310
        %1320 = vmatmul.bf16.gmra.mxu0 %v1214
        %v1321 = vpop.f32.mrf.mxu0
        %v1322 = vadd.f32 0.0, %v1321
        %v1323 = vpop.f32.mrf.mxu0
        %v1324 = vadd.f32 0.0, %v1323
        %1325 = vmatmul.bf16.gmra.mxu0 %v1217
        %v1326 = vpop.f32.mrf.mxu0
        %v1327 = vadd.f32 0.0, %v1326
        %v1328 = vpop.f32.mrf.mxu0
        %v1329 = vadd.f32 0.0, %v1328
        %1330 = vmatmul.bf16.gmra.mxu0 %v1220
        %v1331 = vpop.f32.mrf.mxu0
        %v1332 = vadd.f32 0.0, %v1331
        %v1333 = vpop.f32.mrf.mxu0
        %v1334 = vadd.f32 0.0, %v1333
        %1335 = vmatmul.bf16.gmra.mxu0 %v1223
        %v1336 = vpop.f32.mrf.mxu0
        %v1337 = vadd.f32 0.0, %v1336
        %v1338 = vpop.f32.mrf.mxu0
        %v1339 = vadd.f32 0.0, %v1338
        %1340 = vmatmul.bf16.gmra.mxu0 %v1226
        %v1341 = vpop.f32.mrf.mxu0
        %v1342 = vadd.f32 0.0, %v1341
        %v1343 = vpop.f32.mrf.mxu0
        %v1344 = vadd.f32 0.0, %v1343
        %1345 = vmatmul.bf16.gmra.mxu0 %v1229
        %v1346 = vpop.f32.mrf.mxu0
        %v1347 = vadd.f32 0.0, %v1346
        %v1348 = vpop.f32.mrf.mxu0
        %v1349 = vadd.f32 0.0, %v1348
        %1350 = vmatmul.bf16.gmra.mxu0 %v1232
        %v1351 = vpop.f32.mrf.mxu0
        %v1352 = vadd.f32 0.0, %v1351
        %v1353 = vpop.f32.mrf.mxu0
        %v1354 = vadd.f32 0.0, %v1353
        %1355 = vmatmul.bf16.gmra.mxu0 %v1235
        %v1356 = vpop.f32.mrf.mxu0
        %v1357 = vadd.f32 0.0, %v1356
        %v1358 = vpop.f32.mrf.mxu0
        %v1359 = vadd.f32 0.0, %v1358
        %1360 = vmatmul.bf16.gmra.mxu0 %v1238
        %v1361 = vpop.f32.mrf.mxu0
        %v1362 = vadd.f32 0.0, %v1361
        %v1363 = vpop.f32.mrf.mxu0
        %v1364 = vadd.f32 0.0, %v1363
        %1365 = vmatmul.bf16.gmra.mxu0 %v1241
        %v1366 = vpop.f32.mrf.mxu0
        %v1367 = vadd.f32 0.0, %v1366
        %v1368 = vpop.f32.mrf.mxu0
        %v1369 = vadd.f32 0.0, %v1368
        %1370 = vmatmul.bf16.gmra.mxu0 %v1244
        %v1371 = vpop.f32.mrf.mxu0
        %v1372 = vadd.f32 0.0, %v1371
        %v1373 = vpop.f32.mrf.mxu0
        %v1374 = vadd.f32 0.0, %v1373
        %1375 = vmatmul.bf16.gmra.mxu0 %v1247
        %v1376 = vpop.f32.mrf.mxu0
        %v1377 = vadd.f32 0.0, %v1376
        %v1378 = vpop.f32.mrf.mxu0
        %v1379 = vadd.f32 0.0, %v1378
        %1380 = vmatmul.bf16.gmra.mxu0 %v1250
        %v1381 = vpop.f32.mrf.mxu0
        %v1382 = vadd.f32 0.0, %v1381
        %v1383 = vpop.f32.mrf.mxu0
        %v1384 = vadd.f32 0.0, %v1383
        %1385 = vmatmul.bf16.gmra.mxu0 %v1253
        %v1386 = vpop.f32.mrf.mxu0
        %v1387 = vadd.f32 0.0, %v1386
        %v1388 = vpop.f32.mrf.mxu0
        %v1389 = vadd.f32 0.0, %v1388
        %1390 = vmatmul.bf16.gmra.mxu0 %v1256
        %v1391 = vpop.f32.mrf.mxu0
        %v1392 = vadd.f32 0.0, %v1391
        %v1393 = vpop.f32.mrf.mxu0
        %v1394 = vadd.f32 0.0, %v1393
        %1395 = vmatmul.bf16.gmra.mxu0 %v1259
        %v1396 = vpop.f32.mrf.mxu0
        %v1397 = vadd.f32 0.0, %v1396
        %v1398 = vpop.f32.mrf.mxu0
        %v1399 = vadd.f32 0.0, %v1398
        %1400 = vmatmul.bf16.gmra.mxu0 %v1262
        %v1401 = vpop.f32.mrf.mxu0
        %v1402 = vadd.f32 0.0, %v1401
        %v1403 = vpop.f32.mrf.mxu0
        %v1404 = vadd.f32 0.0, %v1403
        %1405 = vmatmul.bf16.gmra.mxu0 %v1265
        %v1406 = vpop.f32.mrf.mxu0
        %v1407 = vadd.f32 0.0, %v1406
        %v1408 = vpop.f32.mrf.mxu0
        %v1409 = vadd.f32 0.0, %v1408
        %1410 = vmatmul.bf16.gmra.mxu0 %v1268
        %v1411 = vpop.f32.mrf.mxu0
        %v1412 = vadd.f32 0.0, %v1411
        %v1413 = vpop.f32.mrf.mxu0
        %v1414 = vadd.f32 0.0, %v1413
        %1415 = vmatmul.bf16.gmra.mxu0 %v1271
        %v1416 = vpop.f32.mrf.mxu0
        %v1417 = vadd.f32 0.0, %v1416
        %v1418 = vpop.f32.mrf.mxu0
        %v1419 = vadd.f32 0.0, %v1418
        %1420 = vmatmul.bf16.gmra.mxu0 %v1274
        %v1421 = vpop.f32.mrf.mxu0
        %v1422 = vadd.f32 0.0, %v1421
        %v1423 = vpop.f32.mrf.mxu0
        %v1424 = vadd.f32 0.0, %v1423
        %1425 = vmatmul.bf16.gmra.mxu0 %v1277
        %v1426 = vpop.f32.mrf.mxu0
        %v1427 = vadd.f32 0.0, %v1426
        %v1428 = vpop.f32.mrf.mxu0
        %v1429 = vadd.f32 0.0, %v1428
        %1430 = vmatmul.bf16.gmra.mxu0 %v1280
        %v1431 = vpop.f32.mrf.mxu0
        %v1432 = vadd.f32 0.0, %v1431
        %v1433 = vpop.f32.mrf.mxu0
        %v1434 = vadd.f32 0.0, %v1433
        %1435 = vmatmul.bf16.gmra.mxu0 %v1283
        %v1436 = vpop.f32.mrf.mxu0
        %v1437 = vadd.f32 0.0, %v1436
        %v1438 = vpop.f32.mrf.mxu0
        %v1439 = vadd.f32 0.0, %v1438
        %1440 = vmatmul.bf16.gmra.mxu0 %v1286
        %v1441 = vpop.f32.mrf.mxu0
        %v1442 = vadd.f32 0.0, %v1441
        %v1443 = vpop.f32.mrf.mxu0
        %v1444 = vadd.f32 0.0, %v1443
        %1445 = vmatmul.bf16.gmra.mxu0 %v1289
        %v1446 = vpop.f32.mrf.mxu0
        %v1447 = vadd.f32 0.0, %v1446
        %v1448 = vpop.f32.mrf.mxu0
        %v1449 = vadd.f32 0.0, %v1448
        %1450 = vmatmul.bf16.gmra.mxu0 %v1292
        %v1451 = vpop.f32.mrf.mxu0
        %v1452 = vadd.f32 0.0, %v1451
        %v1453 = vpop.f32.mrf.mxu0
        %v1454 = vadd.f32 0.0, %v1453
        %1455 = vmatmul.bf16.gmra.mxu0 %v1295
        %v1456 = vpop.f32.mrf.mxu0
        %v1457 = vadd.f32 0.0, %v1456
        %v1458 = vpop.f32.mrf.mxu0
        %v1459 = vadd.f32 0.0, %v1458
        %1460 = vmatmul.bf16.gmra.mxu0 %v1298
        %v1461 = vpop.f32.mrf.mxu0
        %v1462 = vadd.f32 0.0, %v1461
        %v1463 = vpop.f32.mrf.mxu0
        %v1464 = vadd.f32 0.0, %v1463
        %1465 = vmatmul.bf16.gmra.mxu0 %v1301
        %v1466 = vpop.f32.mrf.mxu0
        %v1467 = vadd.f32 0.0, %v1466
        %v1468 = vpop.f32.mrf.mxu0
        %v1469 = vadd.f32 0.0, %v1468
        %1470 = vmatmul.bf16.gmra.mxu0 %v1304
        %v1471 = vpop.f32.mrf.mxu0
        %v1472 = vadd.f32 0.0, %v1471
        %v1473 = vpop.f32.mrf.mxu0
        %v1474 = vadd.f32 0.0, %v1473
        %1475 = vmatmul.bf16.gmra.mxu0 %v1307
        %v1476 = vpop.f32.mrf.mxu0
        %v1477 = vadd.f32 0.0, %v1476
        %v1478 = vpop.f32.mrf.mxu0
        %v1479 = vadd.f32 0.0, %v1478
        %1480 = vdwg.mxu0
        %v1481 = vadd.f32 %v1147, %v1322
        %v1482 = vadd.f32 %v1148, %v1324
        %v1483 = vadd.f32 %v1149, %v1327
        %v1484 = vadd.f32 %v1150, %v1329
        %v1485 = vadd.f32 %v1151, %v1332
        %v1486 = vadd.f32 %v1152, %v1334
        %v1487 = vadd.f32 %v1153, %v1337
        %v1488 = vadd.f32 %v1154, %v1339
        %v1489 = vadd.f32 %v1155, %v1342
        %v1490 = vadd.f32 %v1156, %v1344
        %v1491 = vadd.f32 %v1157, %v1347
        %v1492 = vadd.f32 %v1158, %v1349
        %v1493 = vadd.f32 %v1159, %v1352
        %v1494 = vadd.f32 %v1160, %v1354
        %v1495 = vadd.f32 %v1161, %v1357
        %v1496 = vadd.f32 %v1162, %v1359
        %v1497 = vadd.f32 %v1163, %v1362
        %v1498 = vadd.f32 %v1164, %v1364
        %v1499 = vadd.f32 %v1165, %v1367
        %v1500 = vadd.f32 %v1166, %v1369
        %v1501 = vadd.f32 %v1167, %v1372
        %v1502 = vadd.f32 %v1168, %v1374
        %v1503 = vadd.f32 %v1169, %v1377
        %v1504 = vadd.f32 %v1170, %v1379
        %v1505 = vadd.f32 %v1171, %v1382
        %v1506 = vadd.f32 %v1172, %v1384
        %v1507 = vadd.f32 %v1173, %v1387
        %v1508 = vadd.f32 %v1174, %v1389
        %v1509 = vadd.f32 %v1175, %v1392
        %v1510 = vadd.f32 %v1176, %v1394
        %v1511 = vadd.f32 %v1177, %v1397
        %v1512 = vadd.f32 %v1178, %v1399
        %v1513 = vadd.f32 %v1179, %v1402
        %v1514 = vadd.f32 %v1180, %v1404
        %v1515 = vadd.f32 %v1181, %v1407
        %v1516 = vadd.f32 %v1182, %v1409
        %v1517 = vadd.f32 %v1183, %v1412
        %v1518 = vadd.f32 %v1184, %v1414
        %v1519 = vadd.f32 %v1185, %v1417
        %v1520 = vadd.f32 %v1186, %v1419
        %v1521 = vadd.f32 %v1187, %v1422
        %v1522 = vadd.f32 %v1188, %v1424
        %v1523 = vadd.f32 %v1189, %v1427
        %v1524 = vadd.f32 %v1190, %v1429
        %v1525 = vadd.f32 %v1191, %v1432
        %v1526 = vadd.f32 %v1192, %v1434
        %v1527 = vadd.f32 %v1193, %v1437
        %v1528 = vadd.f32 %v1194, %v1439
        %v1529 = vadd.f32 %v1195, %v1442
        %v1530 = vadd.f32 %v1196, %v1444
        %v1531 = vadd.f32 %v1197, %v1447
        %v1532 = vadd.f32 %v1198, %v1449
        %v1533 = vadd.f32 %v1199, %v1452
        %v1534 = vadd.f32 %v1200, %v1454
        %v1535 = vadd.f32 %v1201, %v1457
        %v1536 = vadd.f32 %v1202, %v1459
        %v1537 = vadd.f32 %v1203, %v1462
        %v1538 = vadd.f32 %v1204, %v1464
        %v1539 = vadd.f32 %v1205, %v1467
        %v1540 = vadd.f32 %v1206, %v1469
        %v1541 = vadd.f32 %v1207, %v1472
        %v1542 = vadd.f32 %v1208, %v1474
        %v1543 = vadd.f32 %v1209, %v1477
        %v1544 = vadd.f32 %v1210, %v1479
        %1545 = vst [vmem:[#allocation3] sm:$0xff] %v1481
        %1546 = vst [vmem:[#allocation3 + $0x8] sm:$0xff] %v1482
        %1547 = vst [vmem:[#allocation3 + $0x10] sm:$0xff] %v1483
        %1548 = vst [vmem:[#allocation3 + $0x18] sm:$0xff] %v1484
        %1549 = vst [vmem:[#allocation3 + $0x20] sm:$0xff] %v1485
        %1550 = vst [vmem:[#allocation3 + $0x28] sm:$0xff] %v1486
        %1551 = vst [vmem:[#allocation3 + $0x30] sm:$0xff] %v1487
        %1552 = vst [vmem:[#allocation3 + $0x38] sm:$0xff] %v1488
        %1553 = vst [vmem:[#allocation3 + $0x40] sm:$0xff] %v1489
        %1554 = vst [vmem:[#allocation3 + $0x48] sm:$0xff] %v1490
        %1555 = vst [vmem:[#allocation3 + $0x50] sm:$0xff] %v1491
        %1556 = vst [vmem:[#allocation3 + $0x58] sm:$0xff] %v1492
        %1557 = vst [vmem:[#allocation3 + $0x60] sm:$0xff] %v1493
        %1558 = vst [vmem:[#allocation3 + $0x68] sm:$0xff] %v1494
        %1559 = vst [vmem:[#allocation3 + $0x70] sm:$0xff] %v1495
        %1560 = vst [vmem:[#allocation3 + $0x78] sm:$0xff] %v1496
        %1561 = vst [vmem:[#allocation3 + $0x80] sm:$0xff] %v1497
        %1562 = vst [vmem:[#allocation3 + $0x88] sm:$0xff] %v1498
        %1563 = vst [vmem:[#allocation3 + $0x90] sm:$0xff] %v1499
        %1564 = vst [vmem:[#allocation3 + $0x98] sm:$0xff] %v1500
        %1565 = vst [vmem:[#allocation3 + $0xa0] sm:$0xff] %v1501
        %1566 = vst [vmem:[#allocation3 + $0xa8] sm:$0xff] %v1502
        %1567 = vst [vmem:[#allocation3 + $0xb0] sm:$0xff] %v1503
        %1568 = vst [vmem:[#allocation3 + $0xb8] sm:$0xff] %v1504
        %1569 = vst [vmem:[#allocation3 + $0xc0] sm:$0xff] %v1505
        %1570 = vst [vmem:[#allocation3 + $0xc8] sm:$0xff] %v1506
        %1571 = vst [vmem:[#allocation3 + $0xd0] sm:$0xff] %v1507
        %1572 = vst [vmem:[#allocation3 + $0xd8] sm:$0xff] %v1508
        %1573 = vst [vmem:[#allocation3 + $0xe0] sm:$0xff] %v1509
        %1574 = vst [vmem:[#allocation3 + $0xe8] sm:$0xff] %v1510
        %1575 = vst [vmem:[#allocation3 + $0xf0] sm:$0xff] %v1511
        %1576 = vst [vmem:[#allocation3 + $0xf8] sm:$0xff] %v1512
        %1577 = vst [vmem:[#allocation3 + $0x100] sm:$0xff] %v1513
        %1578 = vst [vmem:[#allocation3 + $0x108] sm:$0xff] %v1514
        %1579 = vst [vmem:[#allocation3 + $0x110] sm:$0xff] %v1515
        %1580 = vst [vmem:[#allocation3 + $0x118] sm:$0xff] %v1516
        %1581 = vst [vmem:[#allocation3 + $0x120] sm:$0xff] %v1517
        %1582 = vst [vmem:[#allocation3 + $0x128] sm:$0xff] %v1518
        %1583 = vst [vmem:[#allocation3 + $0x130] sm:$0xff] %v1519
        %1584 = vst [vmem:[#allocation3 + $0x138] sm:$0xff] %v1520
        %1585 = vst [vmem:[#allocation3 + $0x140] sm:$0xff] %v1521
        %1586 = vst [vmem:[#allocation3 + $0x148] sm:$0xff] %v1522
        %1587 = vst [vmem:[#allocation3 + $0x150] sm:$0xff] %v1523
        %1588 = vst [vmem:[#allocation3 + $0x158] sm:$0xff] %v1524
        %1589 = vst [vmem:[#allocation3 + $0x160] sm:$0xff] %v1525
        %1590 = vst [vmem:[#allocation3 + $0x168] sm:$0xff] %v1526
        %1591 = vst [vmem:[#allocation3 + $0x170] sm:$0xff] %v1527
        %1592 = vst [vmem:[#allocation3 + $0x178] sm:$0xff] %v1528
        %1593 = vst [vmem:[#allocation3 + $0x180] sm:$0xff] %v1529
        %1594 = vst [vmem:[#allocation3 + $0x188] sm:$0xff] %v1530
        %1595 = vst [vmem:[#allocation3 + $0x190] sm:$0xff] %v1531
        %1596 = vst [vmem:[#allocation3 + $0x198] sm:$0xff] %v1532
        %1597 = vst [vmem:[#allocation3 + $0x1a0] sm:$0xff] %v1533
        %1598 = vst [vmem:[#allocation3 + $0x1a8] sm:$0xff] %v1534
        %1599 = vst [vmem:[#allocation3 + $0x1b0] sm:$0xff] %v1535
        %1600 = vst [vmem:[#allocation3 + $0x1b8] sm:$0xff] %v1536
        %1601 = vst [vmem:[#allocation3 + $0x1c0] sm:$0xff] %v1537
        %1602 = vst [vmem:[#allocation3 + $0x1c8] sm:$0xff] %v1538
        %1603 = vst [vmem:[#allocation3 + $0x1d0] sm:$0xff] %v1539
        %1604 = vst [vmem:[#allocation3 + $0x1d8] sm:$0xff] %v1540
        %1605 = vst [vmem:[#allocation3 + $0x1e0] sm:$0xff] %v1541
        %1606 = vst [vmem:[#allocation3 + $0x1e8] sm:$0xff] %v1542
        %1607 = vst [vmem:[#allocation3 + $0x1f0] sm:$0xff] %v1543
        %1608 = vst [vmem:[#allocation3 + $0x1f8] sm:$0xff] %v1544
        %v1609 = vld [vmem:[#allocation2 + $0x2] sm:$0xff]
        %v1610 = vld [vmem:[#allocation2 + $0xa] sm:$0xff]
        %v1611 = vld [vmem:[#allocation2 + $0x12] sm:$0xff]
        %v1612 = vld [vmem:[#allocation2 + $0x1a] sm:$0xff]
        %v1613 = vld [vmem:[#allocation2 + $0x22] sm:$0xff]
        %v1614 = vld [vmem:[#allocation2 + $0x2a] sm:$0xff]
        %v1615 = vld [vmem:[#allocation2 + $0x32] sm:$0xff]
        %v1616 = vld [vmem:[#allocation2 + $0x3a] sm:$0xff]
        %v1617 = vld [vmem:[#allocation2 + $0x42] sm:$0xff]
        %v1618 = vld [vmem:[#allocation2 + $0x4a] sm:$0xff]
        %v1619 = vld [vmem:[#allocation2 + $0x52] sm:$0xff]
        %v1620 = vld [vmem:[#allocation2 + $0x5a] sm:$0xff]
        %v1621 = vld [vmem:[#allocation2 + $0x62] sm:$0xff]
        %v1622 = vld [vmem:[#allocation2 + $0x6a] sm:$0xff]
        %v1623 = vld [vmem:[#allocation2 + $0x72] sm:$0xff]
        %v1624 = vld [vmem:[#allocation2 + $0x7a] sm:$0xff]
        %v1625 = vld [vmem:[#allocation2 + $0x82] sm:$0xff]
        %v1626 = vld [vmem:[#allocation2 + $0x8a] sm:$0xff]
        %v1627 = vld [vmem:[#allocation2 + $0x92] sm:$0xff]
        %v1628 = vld [vmem:[#allocation2 + $0x9a] sm:$0xff]
        %v1629 = vld [vmem:[#allocation2 + $0xa2] sm:$0xff]
        %v1630 = vld [vmem:[#allocation2 + $0xaa] sm:$0xff]
        %v1631 = vld [vmem:[#allocation2 + $0xb2] sm:$0xff]
        %v1632 = vld [vmem:[#allocation2 + $0xba] sm:$0xff]
        %v1633 = vld [vmem:[#allocation2 + $0xc2] sm:$0xff]
        %v1634 = vld [vmem:[#allocation2 + $0xca] sm:$0xff]
        %v1635 = vld [vmem:[#allocation2 + $0xd2] sm:$0xff]
        %v1636 = vld [vmem:[#allocation2 + $0xda] sm:$0xff]
        %v1637 = vld [vmem:[#allocation2 + $0xe2] sm:$0xff]
        %v1638 = vld [vmem:[#allocation2 + $0xea] sm:$0xff]
        %v1639 = vld [vmem:[#allocation2 + $0xf2] sm:$0xff]
        %v1640 = vld [vmem:[#allocation2 + $0xfa] sm:$0xff]
        %v1641 = vld [vmem:[#allocation2 + $0x102] sm:$0xff]
        %v1642 = vld [vmem:[#allocation2 + $0x10a] sm:$0xff]
        %v1643 = vld [vmem:[#allocation2 + $0x112] sm:$0xff]
        %v1644 = vld [vmem:[#allocation2 + $0x11a] sm:$0xff]
        %v1645 = vld [vmem:[#allocation2 + $0x122] sm:$0xff]
        %v1646 = vld [vmem:[#allocation2 + $0x12a] sm:$0xff]
        %v1647 = vld [vmem:[#allocation2 + $0x132] sm:$0xff]
        %v1648 = vld [vmem:[#allocation2 + $0x13a] sm:$0xff]
        %v1649 = vld [vmem:[#allocation2 + $0x142] sm:$0xff]
        %v1650 = vld [vmem:[#allocation2 + $0x14a] sm:$0xff]
        %v1651 = vld [vmem:[#allocation2 + $0x152] sm:$0xff]
        %v1652 = vld [vmem:[#allocation2 + $0x15a] sm:$0xff]
        %v1653 = vld [vmem:[#allocation2 + $0x162] sm:$0xff]
        %v1654 = vld [vmem:[#allocation2 + $0x16a] sm:$0xff]
        %v1655 = vld [vmem:[#allocation2 + $0x172] sm:$0xff]
        %v1656 = vld [vmem:[#allocation2 + $0x17a] sm:$0xff]
        %v1657 = vld [vmem:[#allocation2 + $0x182] sm:$0xff]
        %v1658 = vld [vmem:[#allocation2 + $0x18a] sm:$0xff]
        %v1659 = vld [vmem:[#allocation2 + $0x192] sm:$0xff]
        %v1660 = vld [vmem:[#allocation2 + $0x19a] sm:$0xff]
        %v1661 = vld [vmem:[#allocation2 + $0x1a2] sm:$0xff]
        %v1662 = vld [vmem:[#allocation2 + $0x1aa] sm:$0xff]
        %v1663 = vld [vmem:[#allocation2 + $0x1b2] sm:$0xff]
        %v1664 = vld [vmem:[#allocation2 + $0x1ba] sm:$0xff]
        %v1665 = vld [vmem:[#allocation2 + $0x1c2] sm:$0xff]
        %v1666 = vld [vmem:[#allocation2 + $0x1ca] sm:$0xff]
        %v1667 = vld [vmem:[#allocation2 + $0x1d2] sm:$0xff]
        %v1668 = vld [vmem:[#allocation2 + $0x1da] sm:$0xff]
        %v1669 = vld [vmem:[#allocation2 + $0x1e2] sm:$0xff]
        %v1670 = vld [vmem:[#allocation2 + $0x1ea] sm:$0xff]
        %v1671 = vld [vmem:[#allocation2 + $0x1f2] sm:$0xff]
        %v1672 = vld [vmem:[#allocation2 + $0x1fa] sm:$0xff]
        %v1673 = vpack.c.bf16 %v1610, %v1609
        %v1674 = vpack.c.bf16 %v1612, %v1611
        %v1675 = vpack.c.bf16 %v1614, %v1613
        %v1676 = vpack.c.bf16 %v1616, %v1615
        %v1677 = vpack.c.bf16 %v1618, %v1617
        %v1678 = vpack.c.bf16 %v1620, %v1619
        %v1679 = vpack.c.bf16 %v1622, %v1621
        %v1680 = vpack.c.bf16 %v1624, %v1623
        %v1681 = vpack.c.bf16 %v1626, %v1625
        %v1682 = vpack.c.bf16 %v1628, %v1627
        %v1683 = vpack.c.bf16 %v1630, %v1629
        %v1684 = vpack.c.bf16 %v1632, %v1631
        %v1685 = vpack.c.bf16 %v1634, %v1633
        %v1686 = vpack.c.bf16 %v1636, %v1635
        %v1687 = vpack.c.bf16 %v1638, %v1637
        %v1688 = vpack.c.bf16 %v1640, %v1639
        %v1689 = vpack.c.bf16 %v1642, %v1641
        %v1690 = vpack.c.bf16 %v1644, %v1643
        %v1691 = vpack.c.bf16 %v1646, %v1645
        %v1692 = vpack.c.bf16 %v1648, %v1647
        %v1693 = vpack.c.bf16 %v1650, %v1649
        %v1694 = vpack.c.bf16 %v1652, %v1651
        %v1695 = vpack.c.bf16 %v1654, %v1653
        %v1696 = vpack.c.bf16 %v1656, %v1655
        %v1697 = vpack.c.bf16 %v1658, %v1657
        %v1698 = vpack.c.bf16 %v1660, %v1659
        %v1699 = vpack.c.bf16 %v1662, %v1661
        %v1700 = vpack.c.bf16 %v1664, %v1663
        %v1701 = vpack.c.bf16 %v1666, %v1665
        %v1702 = vpack.c.bf16 %v1668, %v1667
        %v1703 = vpack.c.bf16 %v1670, %v1669
        %v1704 = vpack.c.bf16 %v1672, %v1671
        %v1705 = vld [vmem:[#allocation3] sm:$0xff]
        %v1706 = vld [vmem:[#allocation3 + $0x8] sm:$0xff]
        %v1707 = vld [vmem:[#allocation3 + $0x10] sm:$0xff]
        %v1708 = vld [vmem:[#allocation3 + $0x18] sm:$0xff]
        %v1709 = vld [vmem:[#allocation3 + $0x20] sm:$0xff]
        %v1710 = vld [vmem:[#allocation3 + $0x28] sm:$0xff]
        %v1711 = vld [vmem:[#allocation3 + $0x30] sm:$0xff]
        %v1712 = vld [vmem:[#allocation3 + $0x38] sm:$0xff]
        %v1713 = vld [vmem:[#allocation3 + $0x40] sm:$0xff]
        %v1714 = vld [vmem:[#allocation3 + $0x48] sm:$0xff]
        %v1715 = vld [vmem:[#allocation3 + $0x50] sm:$0xff]
        %v1716 = vld [vmem:[#allocation3 + $0x58] sm:$0xff]
        %v1717 = vld [vmem:[#allocation3 + $0x60] sm:$0xff]
        %v1718 = vld [vmem:[#allocation3 + $0x68] sm:$0xff]
        %v1719 = vld [vmem:[#allocation3 + $0x70] sm:$0xff]
        %v1720 = vld [vmem:[#allocation3 + $0x78] sm:$0xff]
        %v1721 = vld [vmem:[#allocation3 + $0x80] sm:$0xff]
        %v1722 = vld [vmem:[#allocation3 + $0x88] sm:$0xff]
        %v1723 = vld [vmem:[#allocation3 + $0x90] sm:$0xff]
        %v1724 = vld [vmem:[#allocation3 + $0x98] sm:$0xff]
        %v1725 = vld [vmem:[#allocation3 + $0xa0] sm:$0xff]
        %v1726 = vld [vmem:[#allocation3 + $0xa8] sm:$0xff]
        %v1727 = vld [vmem:[#allocation3 + $0xb0] sm:$0xff]
        %v1728 = vld [vmem:[#allocation3 + $0xb8] sm:$0xff]
        %v1729 = vld [vmem:[#allocation3 + $0xc0] sm:$0xff]
        %v1730 = vld [vmem:[#allocation3 + $0xc8] sm:$0xff]
        %v1731 = vld [vmem:[#allocation3 + $0xd0] sm:$0xff]
        %v1732 = vld [vmem:[#allocation3 + $0xd8] sm:$0xff]
        %v1733 = vld [vmem:[#allocation3 + $0xe0] sm:$0xff]
        %v1734 = vld [vmem:[#allocation3 + $0xe8] sm:$0xff]
        %v1735 = vld [vmem:[#allocation3 + $0xf0] sm:$0xff]
        %v1736 = vld [vmem:[#allocation3 + $0xf8] sm:$0xff]
        %v1737 = vld [vmem:[#allocation3 + $0x100] sm:$0xff]
        %v1738 = vld [vmem:[#allocation3 + $0x108] sm:$0xff]
        %v1739 = vld [vmem:[#allocation3 + $0x110] sm:$0xff]
        %v1740 = vld [vmem:[#allocation3 + $0x118] sm:$0xff]
        %v1741 = vld [vmem:[#allocation3 + $0x120] sm:$0xff]
        %v1742 = vld [vmem:[#allocation3 + $0x128] sm:$0xff]
        %v1743 = vld [vmem:[#allocation3 + $0x130] sm:$0xff]
        %v1744 = vld [vmem:[#allocation3 + $0x138] sm:$0xff]
        %v1745 = vld [vmem:[#allocation3 + $0x140] sm:$0xff]
        %v1746 = vld [vmem:[#allocation3 + $0x148] sm:$0xff]
        %v1747 = vld [vmem:[#allocation3 + $0x150] sm:$0xff]
        %v1748 = vld [vmem:[#allocation3 + $0x158] sm:$0xff]
        %v1749 = vld [vmem:[#allocation3 + $0x160] sm:$0xff]
        %v1750 = vld [vmem:[#allocation3 + $0x168] sm:$0xff]
        %v1751 = vld [vmem:[#allocation3 + $0x170] sm:$0xff]
        %v1752 = vld [vmem:[#allocation3 + $0x178] sm:$0xff]
        %v1753 = vld [vmem:[#allocation3 + $0x180] sm:$0xff]
        %v1754 = vld [vmem:[#allocation3 + $0x188] sm:$0xff]
        %v1755 = vld [vmem:[#allocation3 + $0x190] sm:$0xff]
        %v1756 = vld [vmem:[#allocation3 + $0x198] sm:$0xff]
        %v1757 = vld [vmem:[#allocation3 + $0x1a0] sm:$0xff]
        %v1758 = vld [vmem:[#allocation3 + $0x1a8] sm:$0xff]
        %v1759 = vld [vmem:[#allocation3 + $0x1b0] sm:$0xff]
        %v1760 = vld [vmem:[#allocation3 + $0x1b8] sm:$0xff]
        %v1761 = vld [vmem:[#allocation3 + $0x1c0] sm:$0xff]
        %v1762 = vld [vmem:[#allocation3 + $0x1c8] sm:$0xff]
        %v1763 = vld [vmem:[#allocation3 + $0x1d0] sm:$0xff]
        %v1764 = vld [vmem:[#allocation3 + $0x1d8] sm:$0xff]
        %v1765 = vld [vmem:[#allocation3 + $0x1e0] sm:$0xff]
        %v1766 = vld [vmem:[#allocation3 + $0x1e8] sm:$0xff]
        %v1767 = vld [vmem:[#allocation3 + $0x1f0] sm:$0xff]
        %v1768 = vld [vmem:[#allocation3 + $0x1f8] sm:$0xff]
        %s1769 = scalar_lea.vmem %s2, 4
        %v1770 = vld [vmem:[%s1769] sm:$0x3]
        %v1772 = vsel %vm348, %v1673, 0
        %v1775 = vsel %vm348, %v1674, 0
        %v1778 = vsel %vm348, %v1675, 0
        %v1781 = vsel %vm348, %v1676, 0
        %v1784 = vsel %vm348, %v1677, 0
        %v1787 = vsel %vm348, %v1678, 0
        %v1790 = vsel %vm348, %v1679, 0
        %v1793 = vsel %vm348, %v1680, 0
        %v1796 = vsel %vm348, %v1681, 0
        %v1799 = vsel %vm348, %v1682, 0
        %v1802 = vsel %vm348, %v1683, 0
        %v1805 = vsel %vm348, %v1684, 0
        %v1808 = vsel %vm348, %v1685, 0
        %v1811 = vsel %vm348, %v1686, 0
        %v1814 = vsel %vm348, %v1687, 0
        %v1817 = vsel %vm348, %v1688, 0
        %v1820 = vsel %vm348, %v1689, 0
        %v1823 = vsel %vm348, %v1690, 0
        %v1826 = vsel %vm348, %v1691, 0
        %v1829 = vsel %vm348, %v1692, 0
        %v1832 = vsel %vm348, %v1693, 0
        %v1835 = vsel %vm348, %v1694, 0
        %v1838 = vsel %vm348, %v1695, 0
        %v1841 = vsel %vm348, %v1696, 0
        %v1844 = vsel %vm348, %v1697, 0
        %v1847 = vsel %vm348, %v1698, 0
        %v1850 = vsel %vm348, %v1699, 0
        %v1853 = vsel %vm348, %v1700, 0
        %v1856 = vsel %vm348, %v1701, 0
        %v1859 = vsel %vm348, %v1702, 0
        %v1862 = vsel %vm348, %v1703, 0
        %v1865 = vsel %vm348, %v1704, 0
        %v1868 = vsel %vm750, %v1770, 0
        %1870 = vmatpush.bf16.msra.mxu0 0
        %1871 = vmatpush.bf16.msra.mxu0 0
        %1872 = vmatpush.bf16.msra.mxu0 0
        %1873 = vmatpush.bf16.msra.mxu0 0
        %1874 = vmatpush.bf16.msra.mxu0 0
        %1875 = vmatpush.bf16.msra.mxu0 0
        %1876 = vmatpush.bf16.msra.mxu0 0
        %1877 = vmatpush.bf16.msra.mxu0 %v1868
        %1878 = vmatmul.bf16.gmra.mxu0 %v1772
        %v1879 = vpop.f32.mrf.mxu0
        %v1880 = vadd.f32 0.0, %v1879
        %v1881 = vpop.f32.mrf.mxu0
        %v1882 = vadd.f32 0.0, %v1881
        %1883 = vmatmul.bf16.gmra.mxu0 %v1775
        %v1884 = vpop.f32.mrf.mxu0
        %v1885 = vadd.f32 0.0, %v1884
        %v1886 = vpop.f32.mrf.mxu0
        %v1887 = vadd.f32 0.0, %v1886
        %1888 = vmatmul.bf16.gmra.mxu0 %v1778
        %v1889 = vpop.f32.mrf.mxu0
        %v1890 = vadd.f32 0.0, %v1889
        %v1891 = vpop.f32.mrf.mxu0
        %v1892 = vadd.f32 0.0, %v1891
        %1893 = vmatmul.bf16.gmra.mxu0 %v1781
        %v1894 = vpop.f32.mrf.mxu0
        %v1895 = vadd.f32 0.0, %v1894
        %v1896 = vpop.f32.mrf.mxu0
        %v1897 = vadd.f32 0.0, %v1896
        %1898 = vmatmul.bf16.gmra.mxu0 %v1784
        %v1899 = vpop.f32.mrf.mxu0
        %v1900 = vadd.f32 0.0, %v1899
        %v1901 = vpop.f32.mrf.mxu0
        %v1902 = vadd.f32 0.0, %v1901
        %1903 = vmatmul.bf16.gmra.mxu0 %v1787
        %v1904 = vpop.f32.mrf.mxu0
        %v1905 = vadd.f32 0.0, %v1904
        %v1906 = vpop.f32.mrf.mxu0
        %v1907 = vadd.f32 0.0, %v1906
        %1908 = vmatmul.bf16.gmra.mxu0 %v1790
        %v1909 = vpop.f32.mrf.mxu0
        %v1910 = vadd.f32 0.0, %v1909
        %v1911 = vpop.f32.mrf.mxu0
        %v1912 = vadd.f32 0.0, %v1911
        %1913 = vmatmul.bf16.gmra.mxu0 %v1793
        %v1914 = vpop.f32.mrf.mxu0
        %v1915 = vadd.f32 0.0, %v1914
        %v1916 = vpop.f32.mrf.mxu0
        %v1917 = vadd.f32 0.0, %v1916
        %1918 = vmatmul.bf16.gmra.mxu0 %v1796
        %v1919 = vpop.f32.mrf.mxu0
        %v1920 = vadd.f32 0.0, %v1919
        %v1921 = vpop.f32.mrf.mxu0
        %v1922 = vadd.f32 0.0, %v1921
        %1923 = vmatmul.bf16.gmra.mxu0 %v1799
        %v1924 = vpop.f32.mrf.mxu0
        %v1925 = vadd.f32 0.0, %v1924
        %v1926 = vpop.f32.mrf.mxu0
        %v1927 = vadd.f32 0.0, %v1926
        %1928 = vmatmul.bf16.gmra.mxu0 %v1802
        %v1929 = vpop.f32.mrf.mxu0
        %v1930 = vadd.f32 0.0, %v1929
        %v1931 = vpop.f32.mrf.mxu0
        %v1932 = vadd.f32 0.0, %v1931
        %1933 = vmatmul.bf16.gmra.mxu0 %v1805
        %v1934 = vpop.f32.mrf.mxu0
        %v1935 = vadd.f32 0.0, %v1934
        %v1936 = vpop.f32.mrf.mxu0
        %v1937 = vadd.f32 0.0, %v1936
        %1938 = vmatmul.bf16.gmra.mxu0 %v1808
        %v1939 = vpop.f32.mrf.mxu0
        %v1940 = vadd.f32 0.0, %v1939
        %v1941 = vpop.f32.mrf.mxu0
        %v1942 = vadd.f32 0.0, %v1941
        %1943 = vmatmul.bf16.gmra.mxu0 %v1811
        %v1944 = vpop.f32.mrf.mxu0
        %v1945 = vadd.f32 0.0, %v1944
        %v1946 = vpop.f32.mrf.mxu0
        %v1947 = vadd.f32 0.0, %v1946
        %1948 = vmatmul.bf16.gmra.mxu0 %v1814
        %v1949 = vpop.f32.mrf.mxu0
        %v1950 = vadd.f32 0.0, %v1949
        %v1951 = vpop.f32.mrf.mxu0
        %v1952 = vadd.f32 0.0, %v1951
        %1953 = vmatmul.bf16.gmra.mxu0 %v1817
        %v1954 = vpop.f32.mrf.mxu0
        %v1955 = vadd.f32 0.0, %v1954
        %v1956 = vpop.f32.mrf.mxu0
        %v1957 = vadd.f32 0.0, %v1956
        %1958 = vmatmul.bf16.gmra.mxu0 %v1820
        %v1959 = vpop.f32.mrf.mxu0
        %v1960 = vadd.f32 0.0, %v1959
        %v1961 = vpop.f32.mrf.mxu0
        %v1962 = vadd.f32 0.0, %v1961
        %1963 = vmatmul.bf16.gmra.mxu0 %v1823
        %v1964 = vpop.f32.mrf.mxu0
        %v1965 = vadd.f32 0.0, %v1964
        %v1966 = vpop.f32.mrf.mxu0
        %v1967 = vadd.f32 0.0, %v1966
        %1968 = vmatmul.bf16.gmra.mxu0 %v1826
        %v1969 = vpop.f32.mrf.mxu0
        %v1970 = vadd.f32 0.0, %v1969
        %v1971 = vpop.f32.mrf.mxu0
        %v1972 = vadd.f32 0.0, %v1971
        %1973 = vmatmul.bf16.gmra.mxu0 %v1829
        %v1974 = vpop.f32.mrf.mxu0
        %v1975 = vadd.f32 0.0, %v1974
        %v1976 = vpop.f32.mrf.mxu0
        %v1977 = vadd.f32 0.0, %v1976
        %1978 = vmatmul.bf16.gmra.mxu0 %v1832
        %v1979 = vpop.f32.mrf.mxu0
        %v1980 = vadd.f32 0.0, %v1979
        %v1981 = vpop.f32.mrf.mxu0
        %v1982 = vadd.f32 0.0, %v1981
        %1983 = vmatmul.bf16.gmra.mxu0 %v1835
        %v1984 = vpop.f32.mrf.mxu0
        %v1985 = vadd.f32 0.0, %v1984
        %v1986 = vpop.f32.mrf.mxu0
        %v1987 = vadd.f32 0.0, %v1986
        %1988 = vmatmul.bf16.gmra.mxu0 %v1838
        %v1989 = vpop.f32.mrf.mxu0
        %v1990 = vadd.f32 0.0, %v1989
        %v1991 = vpop.f32.mrf.mxu0
        %v1992 = vadd.f32 0.0, %v1991
        %1993 = vmatmul.bf16.gmra.mxu0 %v1841
        %v1994 = vpop.f32.mrf.mxu0
        %v1995 = vadd.f32 0.0, %v1994
        %v1996 = vpop.f32.mrf.mxu0
        %v1997 = vadd.f32 0.0, %v1996
        %1998 = vmatmul.bf16.gmra.mxu0 %v1844
        %v1999 = vpop.f32.mrf.mxu0
        %v2000 = vadd.f32 0.0, %v1999
        %v2001 = vpop.f32.mrf.mxu0
        %v2002 = vadd.f32 0.0, %v2001
        %2003 = vmatmul.bf16.gmra.mxu0 %v1847
        %v2004 = vpop.f32.mrf.mxu0
        %v2005 = vadd.f32 0.0, %v2004
        %v2006 = vpop.f32.mrf.mxu0
        %v2007 = vadd.f32 0.0, %v2006
        %2008 = vmatmul.bf16.gmra.mxu0 %v1850
        %v2009 = vpop.f32.mrf.mxu0
        %v2010 = vadd.f32 0.0, %v2009
        %v2011 = vpop.f32.mrf.mxu0
        %v2012 = vadd.f32 0.0, %v2011
        %2013 = vmatmul.bf16.gmra.mxu0 %v1853
        %v2014 = vpop.f32.mrf.mxu0
        %v2015 = vadd.f32 0.0, %v2014
        %v2016 = vpop.f32.mrf.mxu0
        %v2017 = vadd.f32 0.0, %v2016
        %2018 = vmatmul.bf16.gmra.mxu0 %v1856
        %v2019 = vpop.f32.mrf.mxu0
        %v2020 = vadd.f32 0.0, %v2019
        %v2021 = vpop.f32.mrf.mxu0
        %v2022 = vadd.f32 0.0, %v2021
        %2023 = vmatmul.bf16.gmra.mxu0 %v1859
        %v2024 = vpop.f32.mrf.mxu0
        %v2025 = vadd.f32 0.0, %v2024
        %v2026 = vpop.f32.mrf.mxu0
        %v2027 = vadd.f32 0.0, %v2026
        %2028 = vmatmul.bf16.gmra.mxu0 %v1862
        %v2029 = vpop.f32.mrf.mxu0
        %v2030 = vadd.f32 0.0, %v2029
        %v2031 = vpop.f32.mrf.mxu0
        %v2032 = vadd.f32 0.0, %v2031
        %2033 = vmatmul.bf16.gmra.mxu0 %v1865
        %v2034 = vpop.f32.mrf.mxu0
        %v2035 = vadd.f32 0.0, %v2034
        %v2036 = vpop.f32.mrf.mxu0
        %v2037 = vadd.f32 0.0, %v2036
        %2038 = vdwg.mxu0
        %v2039 = vadd.f32 %v1705, %v1880
        %v2040 = vadd.f32 %v1706, %v1882
        %v2041 = vadd.f32 %v1707, %v1885
        %v2042 = vadd.f32 %v1708, %v1887
        %v2043 = vadd.f32 %v1709, %v1890
        %v2044 = vadd.f32 %v1710, %v1892
        %v2045 = vadd.f32 %v1711, %v1895
        %v2046 = vadd.f32 %v1712, %v1897
        %v2047 = vadd.f32 %v1713, %v1900
        %v2048 = vadd.f32 %v1714, %v1902
        %v2049 = vadd.f32 %v1715, %v1905
        %v2050 = vadd.f32 %v1716, %v1907
        %v2051 = vadd.f32 %v1717, %v1910
        %v2052 = vadd.f32 %v1718, %v1912
        %v2053 = vadd.f32 %v1719, %v1915
        %v2054 = vadd.f32 %v1720, %v1917
        %v2055 = vadd.f32 %v1721, %v1920
        %v2056 = vadd.f32 %v1722, %v1922
        %v2057 = vadd.f32 %v1723, %v1925
        %v2058 = vadd.f32 %v1724, %v1927
        %v2059 = vadd.f32 %v1725, %v1930
        %v2060 = vadd.f32 %v1726, %v1932
        %v2061 = vadd.f32 %v1727, %v1935
        %v2062 = vadd.f32 %v1728, %v1937
        %v2063 = vadd.f32 %v1729, %v1940
        %v2064 = vadd.f32 %v1730, %v1942
        %v2065 = vadd.f32 %v1731, %v1945
        %v2066 = vadd.f32 %v1732, %v1947
        %v2067 = vadd.f32 %v1733, %v1950
        %v2068 = vadd.f32 %v1734, %v1952
        %v2069 = vadd.f32 %v1735, %v1955
        %v2070 = vadd.f32 %v1736, %v1957
        %v2071 = vadd.f32 %v1737, %v1960
        %v2072 = vadd.f32 %v1738, %v1962
        %v2073 = vadd.f32 %v1739, %v1965
        %v2074 = vadd.f32 %v1740, %v1967
        %v2075 = vadd.f32 %v1741, %v1970
        %v2076 = vadd.f32 %v1742, %v1972
        %v2077 = vadd.f32 %v1743, %v1975
        %v2078 = vadd.f32 %v1744, %v1977
        %v2079 = vadd.f32 %v1745, %v1980
        %v2080 = vadd.f32 %v1746, %v1982
        %v2081 = vadd.f32 %v1747, %v1985
        %v2082 = vadd.f32 %v1748, %v1987
        %v2083 = vadd.f32 %v1749, %v1990
        %v2084 = vadd.f32 %v1750, %v1992
        %v2085 = vadd.f32 %v1751, %v1995
        %v2086 = vadd.f32 %v1752, %v1997
        %v2087 = vadd.f32 %v1753, %v2000
        %v2088 = vadd.f32 %v1754, %v2002
        %v2089 = vadd.f32 %v1755, %v2005
        %v2090 = vadd.f32 %v1756, %v2007
        %v2091 = vadd.f32 %v1757, %v2010
        %v2092 = vadd.f32 %v1758, %v2012
        %v2093 = vadd.f32 %v1759, %v2015
        %v2094 = vadd.f32 %v1760, %v2017
        %v2095 = vadd.f32 %v1761, %v2020
        %v2096 = vadd.f32 %v1762, %v2022
        %v2097 = vadd.f32 %v1763, %v2025
        %v2098 = vadd.f32 %v1764, %v2027
        %v2099 = vadd.f32 %v1765, %v2030
        %v2100 = vadd.f32 %v1766, %v2032
        %v2101 = vadd.f32 %v1767, %v2035
        %v2102 = vadd.f32 %v1768, %v2037
        %2103 = vst [vmem:[#allocation3] sm:$0xff] %v2039
        %2104 = vst [vmem:[#allocation3 + $0x8] sm:$0xff] %v2040
        %2105 = vst [vmem:[#allocation3 + $0x10] sm:$0xff] %v2041
        %2106 = vst [vmem:[#allocation3 + $0x18] sm:$0xff] %v2042
        %2107 = vst [vmem:[#allocation3 + $0x20] sm:$0xff] %v2043
        %2108 = vst [vmem:[#allocation3 + $0x28] sm:$0xff] %v2044
        %2109 = vst [vmem:[#allocation3 + $0x30] sm:$0xff] %v2045
        %2110 = vst [vmem:[#allocation3 + $0x38] sm:$0xff] %v2046
        %2111 = vst [vmem:[#allocation3 + $0x40] sm:$0xff] %v2047
        %2112 = vst [vmem:[#allocation3 + $0x48] sm:$0xff] %v2048
        %2113 = vst [vmem:[#allocation3 + $0x50] sm:$0xff] %v2049
        %2114 = vst [vmem:[#allocation3 + $0x58] sm:$0xff] %v2050
        %2115 = vst [vmem:[#allocation3 + $0x60] sm:$0xff] %v2051
        %2116 = vst [vmem:[#allocation3 + $0x68] sm:$0xff] %v2052
        %2117 = vst [vmem:[#allocation3 + $0x70] sm:$0xff] %v2053
        %2118 = vst [vmem:[#allocation3 + $0x78] sm:$0xff] %v2054
        %2119 = vst [vmem:[#allocation3 + $0x80] sm:$0xff] %v2055
        %2120 = vst [vmem:[#allocation3 + $0x88] sm:$0xff] %v2056
        %2121 = vst [vmem:[#allocation3 + $0x90] sm:$0xff] %v2057
        %2122 = vst [vmem:[#allocation3 + $0x98] sm:$0xff] %v2058
        %2123 = vst [vmem:[#allocation3 + $0xa0] sm:$0xff] %v2059
        %2124 = vst [vmem:[#allocation3 + $0xa8] sm:$0xff] %v2060
        %2125 = vst [vmem:[#allocation3 + $0xb0] sm:$0xff] %v2061
        %2126 = vst [vmem:[#allocation3 + $0xb8] sm:$0xff] %v2062
        %2127 = vst [vmem:[#allocation3 + $0xc0] sm:$0xff] %v2063
        %2128 = vst [vmem:[#allocation3 + $0xc8] sm:$0xff] %v2064
        %2129 = vst [vmem:[#allocation3 + $0xd0] sm:$0xff] %v2065
        %2130 = vst [vmem:[#allocation3 + $0xd8] sm:$0xff] %v2066
        %2131 = vst [vmem:[#allocation3 + $0xe0] sm:$0xff] %v2067
        %2132 = vst [vmem:[#allocation3 + $0xe8] sm:$0xff] %v2068
        %2133 = vst [vmem:[#allocation3 + $0xf0] sm:$0xff] %v2069
        %2134 = vst [vmem:[#allocation3 + $0xf8] sm:$0xff] %v2070
        %2135 = vst [vmem:[#allocation3 + $0x100] sm:$0xff] %v2071
        %2136 = vst [vmem:[#allocation3 + $0x108] sm:$0xff] %v2072
        %2137 = vst [vmem:[#allocation3 + $0x110] sm:$0xff] %v2073
        %2138 = vst [vmem:[#allocation3 + $0x118] sm:$0xff] %v2074
        %2139 = vst [vmem:[#allocation3 + $0x120] sm:$0xff] %v2075
        %2140 = vst [vmem:[#allocation3 + $0x128] sm:$0xff] %v2076
        %2141 = vst [vmem:[#allocation3 + $0x130] sm:$0xff] %v2077
        %2142 = vst [vmem:[#allocation3 + $0x138] sm:$0xff] %v2078
        %2143 = vst [vmem:[#allocation3 + $0x140] sm:$0xff] %v2079
        %2144 = vst [vmem:[#allocation3 + $0x148] sm:$0xff] %v2080
        %2145 = vst [vmem:[#allocation3 + $0x150] sm:$0xff] %v2081
        %2146 = vst [vmem:[#allocation3 + $0x158] sm:$0xff] %v2082
        %2147 = vst [vmem:[#allocation3 + $0x160] sm:$0xff] %v2083
        %2148 = vst [vmem:[#allocation3 + $0x168] sm:$0xff] %v2084
        %2149 = vst [vmem:[#allocation3 + $0x170] sm:$0xff] %v2085
        %2150 = vst [vmem:[#allocation3 + $0x178] sm:$0xff] %v2086
        %2151 = vst [vmem:[#allocation3 + $0x180] sm:$0xff] %v2087
        %2152 = vst [vmem:[#allocation3 + $0x188] sm:$0xff] %v2088
        %2153 = vst [vmem:[#allocation3 + $0x190] sm:$0xff] %v2089
        %2154 = vst [vmem:[#allocation3 + $0x198] sm:$0xff] %v2090
        %2155 = vst [vmem:[#allocation3 + $0x1a0] sm:$0xff] %v2091
        %2156 = vst [vmem:[#allocation3 + $0x1a8] sm:$0xff] %v2092
        %2157 = vst [vmem:[#allocation3 + $0x1b0] sm:$0xff] %v2093
        %2158 = vst [vmem:[#allocation3 + $0x1b8] sm:$0xff] %v2094
        %2159 = vst [vmem:[#allocation3 + $0x1c0] sm:$0xff] %v2095
        %2160 = vst [vmem:[#allocation3 + $0x1c8] sm:$0xff] %v2096
        %2161 = vst [vmem:[#allocation3 + $0x1d0] sm:$0xff] %v2097
        %2162 = vst [vmem:[#allocation3 + $0x1d8] sm:$0xff] %v2098
        %2163 = vst [vmem:[#allocation3 + $0x1e0] sm:$0xff] %v2099
        %2164 = vst [vmem:[#allocation3 + $0x1e8] sm:$0xff] %v2100
        %2165 = vst [vmem:[#allocation3 + $0x1f0] sm:$0xff] %v2101
        %2166 = vst [vmem:[#allocation3 + $0x1f8] sm:$0xff] %v2102
        %v2167 = vld [vmem:[#allocation2 + $0x12] sm:$0xff]
        %v2168 = vld [vmem:[#allocation2 + $0x1a] sm:$0xff]
        %v2169 = vld [vmem:[#allocation2 + $0x22] sm:$0xff]
        %v2170 = vld [vmem:[#allocation2 + $0x2a] sm:$0xff]
        %v2171 = vld [vmem:[#allocation2 + $0x32] sm:$0xff]
        %v2172 = vld [vmem:[#allocation2 + $0x3a] sm:$0xff]
        %v2173 = vld [vmem:[#allocation2 + $0x42] sm:$0xff]
        %v2174 = vld [vmem:[#allocation2 + $0x4a] sm:$0xff]
        %v2175 = vld [vmem:[#allocation2 + $0x52] sm:$0xff]
        %v2176 = vld [vmem:[#allocation2 + $0x5a] sm:$0xff]
        %v2177 = vld [vmem:[#allocation2 + $0x62] sm:$0xff]
        %v2178 = vld [vmem:[#allocation2 + $0x6a] sm:$0xff]
        %v2179 = vld [vmem:[#allocation2 + $0x72] sm:$0xff]
        %v2180 = vld [vmem:[#allocation2 + $0x7a] sm:$0xff]
        %v2181 = vld [vmem:[#allocation2 + $0x82] sm:$0xff]
        %v2182 = vld [vmem:[#allocation2 + $0x8a] sm:$0xff]
        %v2183 = vld [vmem:[#allocation2 + $0x92] sm:$0xff]
        %v2184 = vld [vmem:[#allocation2 + $0x9a] sm:$0xff]
        %v2185 = vld [vmem:[#allocation2 + $0xa2] sm:$0xff]
        %v2186 = vld [vmem:[#allocation2 + $0xaa] sm:$0xff]
        %v2187 = vld [vmem:[#allocation2 + $0xb2] sm:$0xff]
        %v2188 = vld [vmem:[#allocation2 + $0xba] sm:$0xff]
        %v2189 = vld [vmem:[#allocation2 + $0xc2] sm:$0xff]
        %v2190 = vld [vmem:[#allocation2 + $0xca] sm:$0xff]
        %v2191 = vld [vmem:[#allocation2 + $0xd2] sm:$0xff]
        %v2192 = vld [vmem:[#allocation2 + $0xda] sm:$0xff]
        %v2193 = vld [vmem:[#allocation2 + $0xe2] sm:$0xff]
        %v2194 = vld [vmem:[#allocation2 + $0xea] sm:$0xff]
        %v2195 = vld [vmem:[#allocation2 + $0xf2] sm:$0xff]
        %v2196 = vld [vmem:[#allocation2 + $0xfa] sm:$0xff]
        %v2197 = vld [vmem:[#allocation2 + $0x102] sm:$0xff]
        %v2198 = vld [vmem:[#allocation2 + $0x10a] sm:$0xff]
        %v2199 = vld [vmem:[#allocation2 + $0x112] sm:$0xff]
        %v2200 = vld [vmem:[#allocation2 + $0x11a] sm:$0xff]
        %v2201 = vld [vmem:[#allocation2 + $0x122] sm:$0xff]
        %v2202 = vld [vmem:[#allocation2 + $0x12a] sm:$0xff]
        %v2203 = vld [vmem:[#allocation2 + $0x132] sm:$0xff]
        %v2204 = vld [vmem:[#allocation2 + $0x13a] sm:$0xff]
        %v2205 = vld [vmem:[#allocation2 + $0x142] sm:$0xff]
        %v2206 = vld [vmem:[#allocation2 + $0x14a] sm:$0xff]
        %v2207 = vld [vmem:[#allocation2 + $0x152] sm:$0xff]
        %v2208 = vld [vmem:[#allocation2 + $0x15a] sm:$0xff]
        %v2209 = vld [vmem:[#allocation2 + $0x162] sm:$0xff]
        %v2210 = vld [vmem:[#allocation2 + $0x16a] sm:$0xff]
        %v2211 = vld [vmem:[#allocation2 + $0x172] sm:$0xff]
        %v2212 = vld [vmem:[#allocation2 + $0x17a] sm:$0xff]
        %v2213 = vld [vmem:[#allocation2 + $0x182] sm:$0xff]
        %v2214 = vld [vmem:[#allocation2 + $0x18a] sm:$0xff]
        %v2215 = vld [vmem:[#allocation2 + $0x192] sm:$0xff]
        %v2216 = vld [vmem:[#allocation2 + $0x19a] sm:$0xff]
        %v2217 = vld [vmem:[#allocation2 + $0x1a2] sm:$0xff]
        %v2218 = vld [vmem:[#allocation2 + $0x1aa] sm:$0xff]
        %v2219 = vld [vmem:[#allocation2 + $0x1b2] sm:$0xff]
        %v2220 = vld [vmem:[#allocation2 + $0x1ba] sm:$0xff]
        %v2221 = vld [vmem:[#allocation2 + $0x1c2] sm:$0xff]
        %v2222 = vld [vmem:[#allocation2 + $0x1ca] sm:$0xff]
        %v2223 = vld [vmem:[#allocation2 + $0x1d2] sm:$0xff]
        %v2224 = vld [vmem:[#allocation2 + $0x1da] sm:$0xff]
        %v2225 = vld [vmem:[#allocation2 + $0x1e2] sm:$0xff]
        %v2226 = vld [vmem:[#allocation2 + $0x1ea] sm:$0xff]
        %v2227 = vld [vmem:[#allocation2 + $0x1f2] sm:$0xff]
        %v2228 = vld [vmem:[#allocation2 + $0x1fa] sm:$0xff]
        %v2229 = vld [vmem:[#allocation2 + $0x202] sm:$0xff]
        %v2230 = vld [vmem:[#allocation2 + $0x20a] sm:$0xff]
        %v2231 = vpack.c.bf16 %v2168, %v2167
        %v2232 = vpack.c.bf16 %v2170, %v2169
        %v2233 = vpack.c.bf16 %v2172, %v2171
        %v2234 = vpack.c.bf16 %v2174, %v2173
        %v2235 = vpack.c.bf16 %v2176, %v2175
        %v2236 = vpack.c.bf16 %v2178, %v2177
        %v2237 = vpack.c.bf16 %v2180, %v2179
        %v2238 = vpack.c.bf16 %v2182, %v2181
        %v2239 = vpack.c.bf16 %v2184, %v2183
        %v2240 = vpack.c.bf16 %v2186, %v2185
        %v2241 = vpack.c.bf16 %v2188, %v2187
        %v2242 = vpack.c.bf16 %v2190, %v2189
        %v2243 = vpack.c.bf16 %v2192, %v2191
        %v2244 = vpack.c.bf16 %v2194, %v2193
        %v2245 = vpack.c.bf16 %v2196, %v2195
        %v2246 = vpack.c.bf16 %v2198, %v2197
        %v2247 = vpack.c.bf16 %v2200, %v2199
        %v2248 = vpack.c.bf16 %v2202, %v2201
        %v2249 = vpack.c.bf16 %v2204, %v2203
        %v2250 = vpack.c.bf16 %v2206, %v2205
        %v2251 = vpack.c.bf16 %v2208, %v2207
        %v2252 = vpack.c.bf16 %v2210, %v2209
        %v2253 = vpack.c.bf16 %v2212, %v2211
        %v2254 = vpack.c.bf16 %v2214, %v2213
        %v2255 = vpack.c.bf16 %v2216, %v2215
        %v2256 = vpack.c.bf16 %v2218, %v2217
        %v2257 = vpack.c.bf16 %v2220, %v2219
        %v2258 = vpack.c.bf16 %v2222, %v2221
        %v2259 = vpack.c.bf16 %v2224, %v2223
        %v2260 = vpack.c.bf16 %v2226, %v2225
        %v2261 = vpack.c.bf16 %v2228, %v2227
        %v2262 = vpack.c.bf16 %v2230, %v2229
        %v2263 = vld [vmem:[#allocation3] sm:$0xff]
        %v2264 = vld [vmem:[#allocation3 + $0x8] sm:$0xff]
        %v2265 = vld [vmem:[#allocation3 + $0x10] sm:$0xff]
        %v2266 = vld [vmem:[#allocation3 + $0x18] sm:$0xff]
        %v2267 = vld [vmem:[#allocation3 + $0x20] sm:$0xff]
        %v2268 = vld [vmem:[#allocation3 + $0x28] sm:$0xff]
        %v2269 = vld [vmem:[#allocation3 + $0x30] sm:$0xff]
        %v2270 = vld [vmem:[#allocation3 + $0x38] sm:$0xff]
        %v2271 = vld [vmem:[#allocation3 + $0x40] sm:$0xff]
        %v2272 = vld [vmem:[#allocation3 + $0x48] sm:$0xff]
        %v2273 = vld [vmem:[#allocation3 + $0x50] sm:$0xff]
        %v2274 = vld [vmem:[#allocation3 + $0x58] sm:$0xff]
        %v2275 = vld [vmem:[#allocation3 + $0x60] sm:$0xff]
        %v2276 = vld [vmem:[#allocation3 + $0x68] sm:$0xff]
        %v2277 = vld [vmem:[#allocation3 + $0x70] sm:$0xff]
        %v2278 = vld [vmem:[#allocation3 + $0x78] sm:$0xff]
        %v2279 = vld [vmem:[#allocation3 + $0x80] sm:$0xff]
        %v2280 = vld [vmem:[#allocation3 + $0x88] sm:$0xff]
        %v2281 = vld [vmem:[#allocation3 + $0x90] sm:$0xff]
        %v2282 = vld [vmem:[#allocation3 + $0x98] sm:$0xff]
        %v2283 = vld [vmem:[#allocation3 + $0xa0] sm:$0xff]
        %v2284 = vld [vmem:[#allocation3 + $0xa8] sm:$0xff]
        %v2285 = vld [vmem:[#allocation3 + $0xb0] sm:$0xff]
        %v2286 = vld [vmem:[#allocation3 + $0xb8] sm:$0xff]
        %v2287 = vld [vmem:[#allocation3 + $0xc0] sm:$0xff]
        %v2288 = vld [vmem:[#allocation3 + $0xc8] sm:$0xff]
        %v2289 = vld [vmem:[#allocation3 + $0xd0] sm:$0xff]
        %v2290 = vld [vmem:[#allocation3 + $0xd8] sm:$0xff]
        %v2291 = vld [vmem:[#allocation3 + $0xe0] sm:$0xff]
        %v2292 = vld [vmem:[#allocation3 + $0xe8] sm:$0xff]
        %v2293 = vld [vmem:[#allocation3 + $0xf0] sm:$0xff]
        %v2294 = vld [vmem:[#allocation3 + $0xf8] sm:$0xff]
        %v2295 = vld [vmem:[#allocation3 + $0x100] sm:$0xff]
        %v2296 = vld [vmem:[#allocation3 + $0x108] sm:$0xff]
        %v2297 = vld [vmem:[#allocation3 + $0x110] sm:$0xff]
        %v2298 = vld [vmem:[#allocation3 + $0x118] sm:$0xff]
        %v2299 = vld [vmem:[#allocation3 + $0x120] sm:$0xff]
        %v2300 = vld [vmem:[#allocation3 + $0x128] sm:$0xff]
        %v2301 = vld [vmem:[#allocation3 + $0x130] sm:$0xff]
        %v2302 = vld [vmem:[#allocation3 + $0x138] sm:$0xff]
        %v2303 = vld [vmem:[#allocation3 + $0x140] sm:$0xff]
        %v2304 = vld [vmem:[#allocation3 + $0x148] sm:$0xff]
        %v2305 = vld [vmem:[#allocation3 + $0x150] sm:$0xff]
        %v2306 = vld [vmem:[#allocation3 + $0x158] sm:$0xff]
        %v2307 = vld [vmem:[#allocation3 + $0x160] sm:$0xff]
        %v2308 = vld [vmem:[#allocation3 + $0x168] sm:$0xff]
        %v2309 = vld [vmem:[#allocation3 + $0x170] sm:$0xff]
        %v2310 = vld [vmem:[#allocation3 + $0x178] sm:$0xff]
        %v2311 = vld [vmem:[#allocation3 + $0x180] sm:$0xff]
        %v2312 = vld [vmem:[#allocation3 + $0x188] sm:$0xff]
        %v2313 = vld [vmem:[#allocation3 + $0x190] sm:$0xff]
        %v2314 = vld [vmem:[#allocation3 + $0x198] sm:$0xff]
        %v2315 = vld [vmem:[#allocation3 + $0x1a0] sm:$0xff]
        %v2316 = vld [vmem:[#allocation3 + $0x1a8] sm:$0xff]
        %v2317 = vld [vmem:[#allocation3 + $0x1b0] sm:$0xff]
        %v2318 = vld [vmem:[#allocation3 + $0x1b8] sm:$0xff]
        %v2319 = vld [vmem:[#allocation3 + $0x1c0] sm:$0xff]
        %v2320 = vld [vmem:[#allocation3 + $0x1c8] sm:$0xff]
        %v2321 = vld [vmem:[#allocation3 + $0x1d0] sm:$0xff]
        %v2322 = vld [vmem:[#allocation3 + $0x1d8] sm:$0xff]
        %v2323 = vld [vmem:[#allocation3 + $0x1e0] sm:$0xff]
        %v2324 = vld [vmem:[#allocation3 + $0x1e8] sm:$0xff]
        %v2325 = vld [vmem:[#allocation3 + $0x1f0] sm:$0xff]
        %v2326 = vld [vmem:[#allocation3 + $0x1f8] sm:$0xff]
        %s2327 = scalar_lea.vmem %s2, 6
        %v2328 = vld [vmem:[%s2327] sm:$0x3]
        %v2330 = vsel %vm348, %v2231, 0
        %v2333 = vsel %vm348, %v2232, 0
        %v2336 = vsel %vm348, %v2233, 0
        %v2339 = vsel %vm348, %v2234, 0
        %v2342 = vsel %vm348, %v2235, 0
        %v2345 = vsel %vm348, %v2236, 0
        %v2348 = vsel %vm348, %v2237, 0
        %v2351 = vsel %vm348, %v2238, 0
        %v2354 = vsel %vm348, %v2239, 0
        %v2357 = vsel %vm348, %v2240, 0
        %v2360 = vsel %vm348, %v2241, 0
        %v2363 = vsel %vm348, %v2242, 0
        %v2366 = vsel %vm348, %v2243, 0
        %v2369 = vsel %vm348, %v2244, 0
        %v2372 = vsel %vm348, %v2245, 0
        %v2375 = vsel %vm348, %v2246, 0
        %v2378 = vsel %vm348, %v2247, 0
        %v2381 = vsel %vm348, %v2248, 0
        %v2384 = vsel %vm348, %v2249, 0
        %v2387 = vsel %vm348, %v2250, 0
        %v2390 = vsel %vm348, %v2251, 0
        %v2393 = vsel %vm348, %v2252, 0
        %v2396 = vsel %vm348, %v2253, 0
        %v2399 = vsel %vm348, %v2254, 0
        %v2402 = vsel %vm348, %v2255, 0
        %v2405 = vsel %vm348, %v2256, 0
        %v2408 = vsel %vm348, %v2257, 0
        %v2411 = vsel %vm348, %v2258, 0
        %v2414 = vsel %vm348, %v2259, 0
        %v2417 = vsel %vm348, %v2260, 0
        %v2420 = vsel %vm348, %v2261, 0
        %v2423 = vsel %vm348, %v2262, 0
        %v2426 = vsel %vm750, %v2328, 0
        %2428 = vmatpush.bf16.msra.mxu0 0
        %2429 = vmatpush.bf16.msra.mxu0 0
        %2430 = vmatpush.bf16.msra.mxu0 0
        %2431 = vmatpush.bf16.msra.mxu0 0
        %2432 = vmatpush.bf16.msra.mxu0 0
        %2433 = vmatpush.bf16.msra.mxu0 0
        %2434 = vmatpush.bf16.msra.mxu0 0
        %2435 = vmatpush.bf16.msra.mxu0 %v2426
        %2436 = vmatmul.bf16.gmra.mxu0 %v2330
        %v2437 = vpop.f32.mrf.mxu0
        %v2438 = vadd.f32 0.0, %v2437
        %v2439 = vpop.f32.mrf.mxu0
        %v2440 = vadd.f32 0.0, %v2439
        %2441 = vmatmul.bf16.gmra.mxu0 %v2333
        %v2442 = vpop.f32.mrf.mxu0
        %v2443 = vadd.f32 0.0, %v2442
        %v2444 = vpop.f32.mrf.mxu0
        %v2445 = vadd.f32 0.0, %v2444
        %2446 = vmatmul.bf16.gmra.mxu0 %v2336
        %v2447 = vpop.f32.mrf.mxu0
        %v2448 = vadd.f32 0.0, %v2447
        %v2449 = vpop.f32.mrf.mxu0
        %v2450 = vadd.f32 0.0, %v2449
        %2451 = vmatmul.bf16.gmra.mxu0 %v2339
        %v2452 = vpop.f32.mrf.mxu0
        %v2453 = vadd.f32 0.0, %v2452
        %v2454 = vpop.f32.mrf.mxu0
        %v2455 = vadd.f32 0.0, %v2454
        %2456 = vmatmul.bf16.gmra.mxu0 %v2342
        %v2457 = vpop.f32.mrf.mxu0
        %v2458 = vadd.f32 0.0, %v2457
        %v2459 = vpop.f32.mrf.mxu0
        %v2460 = vadd.f32 0.0, %v2459
        %2461 = vmatmul.bf16.gmra.mxu0 %v2345
        %v2462 = vpop.f32.mrf.mxu0
        %v2463 = vadd.f32 0.0, %v2462
        %v2464 = vpop.f32.mrf.mxu0
        %v2465 = vadd.f32 0.0, %v2464
        %2466 = vmatmul.bf16.gmra.mxu0 %v2348
        %v2467 = vpop.f32.mrf.mxu0
        %v2468 = vadd.f32 0.0, %v2467
        %v2469 = vpop.f32.mrf.mxu0
        %v2470 = vadd.f32 0.0, %v2469
        %2471 = vmatmul.bf16.gmra.mxu0 %v2351
        %v2472 = vpop.f32.mrf.mxu0
        %v2473 = vadd.f32 0.0, %v2472
        %v2474 = vpop.f32.mrf.mxu0
        %v2475 = vadd.f32 0.0, %v2474
        %2476 = vmatmul.bf16.gmra.mxu0 %v2354
        %v2477 = vpop.f32.mrf.mxu0
        %v2478 = vadd.f32 0.0, %v2477
        %v2479 = vpop.f32.mrf.mxu0
        %v2480 = vadd.f32 0.0, %v2479
        %2481 = vmatmul.bf16.gmra.mxu0 %v2357
        %v2482 = vpop.f32.mrf.mxu0
        %v2483 = vadd.f32 0.0, %v2482
        %v2484 = vpop.f32.mrf.mxu0
        %v2485 = vadd.f32 0.0, %v2484
        %2486 = vmatmul.bf16.gmra.mxu0 %v2360
        %v2487 = vpop.f32.mrf.mxu0
        %v2488 = vadd.f32 0.0, %v2487
        %v2489 = vpop.f32.mrf.mxu0
        %v2490 = vadd.f32 0.0, %v2489
        %2491 = vmatmul.bf16.gmra.mxu0 %v2363
        %v2492 = vpop.f32.mrf.mxu0
        %v2493 = vadd.f32 0.0, %v2492
        %v2494 = vpop.f32.mrf.mxu0
        %v2495 = vadd.f32 0.0, %v2494
        %2496 = vmatmul.bf16.gmra.mxu0 %v2366
        %v2497 = vpop.f32.mrf.mxu0
        %v2498 = vadd.f32 0.0, %v2497
        %v2499 = vpop.f32.mrf.mxu0
        %v2500 = vadd.f32 0.0, %v2499
        %2501 = vmatmul.bf16.gmra.mxu0 %v2369
        %v2502 = vpop.f32.mrf.mxu0
        %v2503 = vadd.f32 0.0, %v2502
        %v2504 = vpop.f32.mrf.mxu0
        %v2505 = vadd.f32 0.0, %v2504
        %2506 = vmatmul.bf16.gmra.mxu0 %v2372
        %v2507 = vpop.f32.mrf.mxu0
        %v2508 = vadd.f32 0.0, %v2507
        %v2509 = vpop.f32.mrf.mxu0
        %v2510 = vadd.f32 0.0, %v2509
        %2511 = vmatmul.bf16.gmra.mxu0 %v2375
        %v2512 = vpop.f32.mrf.mxu0
        %v2513 = vadd.f32 0.0, %v2512
        %v2514 = vpop.f32.mrf.mxu0
        %v2515 = vadd.f32 0.0, %v2514
        %2516 = vmatmul.bf16.gmra.mxu0 %v2378
        %v2517 = vpop.f32.mrf.mxu0
        %v2518 = vadd.f32 0.0, %v2517
        %v2519 = vpop.f32.mrf.mxu0
        %v2520 = vadd.f32 0.0, %v2519
        %2521 = vmatmul.bf16.gmra.mxu0 %v2381
        %v2522 = vpop.f32.mrf.mxu0
        %v2523 = vadd.f32 0.0, %v2522
        %v2524 = vpop.f32.mrf.mxu0
        %v2525 = vadd.f32 0.0, %v2524
        %2526 = vmatmul.bf16.gmra.mxu0 %v2384
        %v2527 = vpop.f32.mrf.mxu0
        %v2528 = vadd.f32 0.0, %v2527
        %v2529 = vpop.f32.mrf.mxu0
        %v2530 = vadd.f32 0.0, %v2529
        %2531 = vmatmul.bf16.gmra.mxu0 %v2387
        %v2532 = vpop.f32.mrf.mxu0
        %v2533 = vadd.f32 0.0, %v2532
        %v2534 = vpop.f32.mrf.mxu0
        %v2535 = vadd.f32 0.0, %v2534
        %2536 = vmatmul.bf16.gmra.mxu0 %v2390
        %v2537 = vpop.f32.mrf.mxu0
        %v2538 = vadd.f32 0.0, %v2537
        %v2539 = vpop.f32.mrf.mxu0
        %v2540 = vadd.f32 0.0, %v2539
        %2541 = vmatmul.bf16.gmra.mxu0 %v2393
        %v2542 = vpop.f32.mrf.mxu0
        %v2543 = vadd.f32 0.0, %v2542
        %v2544 = vpop.f32.mrf.mxu0
        %v2545 = vadd.f32 0.0, %v2544
        %2546 = vmatmul.bf16.gmra.mxu0 %v2396
        %v2547 = vpop.f32.mrf.mxu0
        %v2548 = vadd.f32 0.0, %v2547
        %v2549 = vpop.f32.mrf.mxu0
        %v2550 = vadd.f32 0.0, %v2549
        %2551 = vmatmul.bf16.gmra.mxu0 %v2399
        %v2552 = vpop.f32.mrf.mxu0
        %v2553 = vadd.f32 0.0, %v2552
        %v2554 = vpop.f32.mrf.mxu0
        %v2555 = vadd.f32 0.0, %v2554
        %2556 = vmatmul.bf16.gmra.mxu0 %v2402
        %v2557 = vpop.f32.mrf.mxu0
        %v2558 = vadd.f32 0.0, %v2557
        %v2559 = vpop.f32.mrf.mxu0
        %v2560 = vadd.f32 0.0, %v2559
        %2561 = vmatmul.bf16.gmra.mxu0 %v2405
        %v2562 = vpop.f32.mrf.mxu0
        %v2563 = vadd.f32 0.0, %v2562
        %v2564 = vpop.f32.mrf.mxu0
        %v2565 = vadd.f32 0.0, %v2564
        %2566 = vmatmul.bf16.gmra.mxu0 %v2408
        %v2567 = vpop.f32.mrf.mxu0
        %v2568 = vadd.f32 0.0, %v2567
        %v2569 = vpop.f32.mrf.mxu0
        %v2570 = vadd.f32 0.0, %v2569
        %2571 = vmatmul.bf16.gmra.mxu0 %v2411
        %v2572 = vpop.f32.mrf.mxu0
        %v2573 = vadd.f32 0.0, %v2572
        %v2574 = vpop.f32.mrf.mxu0
        %v2575 = vadd.f32 0.0, %v2574
        %2576 = vmatmul.bf16.gmra.mxu0 %v2414
        %v2577 = vpop.f32.mrf.mxu0
        %v2578 = vadd.f32 0.0, %v2577
        %v2579 = vpop.f32.mrf.mxu0
        %v2580 = vadd.f32 0.0, %v2579
        %2581 = vmatmul.bf16.gmra.mxu0 %v2417
        %v2582 = vpop.f32.mrf.mxu0
        %v2583 = vadd.f32 0.0, %v2582
        %v2584 = vpop.f32.mrf.mxu0
        %v2585 = vadd.f32 0.0, %v2584
        %2586 = vmatmul.bf16.gmra.mxu0 %v2420
        %v2587 = vpop.f32.mrf.mxu0
        %v2588 = vadd.f32 0.0, %v2587
        %v2589 = vpop.f32.mrf.mxu0
        %v2590 = vadd.f32 0.0, %v2589
        %2591 = vmatmul.bf16.gmra.mxu0 %v2423
        %v2592 = vpop.f32.mrf.mxu0
        %v2593 = vadd.f32 0.0, %v2592
        %v2594 = vpop.f32.mrf.mxu0
        %v2595 = vadd.f32 0.0, %v2594
        %2596 = vdwg.mxu0
        %v2597 = vadd.f32 %v2263, %v2438
        %v2598 = vadd.f32 %v2264, %v2440
        %v2599 = vadd.f32 %v2265, %v2443
        %v2600 = vadd.f32 %v2266, %v2445
        %v2601 = vadd.f32 %v2267, %v2448
        %v2602 = vadd.f32 %v2268, %v2450
        %v2603 = vadd.f32 %v2269, %v2453
        %v2604 = vadd.f32 %v2270, %v2455
        %v2605 = vadd.f32 %v2271, %v2458
        %v2606 = vadd.f32 %v2272, %v2460
        %v2607 = vadd.f32 %v2273, %v2463
        %v2608 = vadd.f32 %v2274, %v2465
        %v2609 = vadd.f32 %v2275, %v2468
        %v2610 = vadd.f32 %v2276, %v2470
        %v2611 = vadd.f32 %v2277, %v2473
        %v2612 = vadd.f32 %v2278, %v2475
        %v2613 = vadd.f32 %v2279, %v2478
        %v2614 = vadd.f32 %v2280, %v2480
        %v2615 = vadd.f32 %v2281, %v2483
        %v2616 = vadd.f32 %v2282, %v2485
        %v2617 = vadd.f32 %v2283, %v2488
        %v2618 = vadd.f32 %v2284, %v2490
        %v2619 = vadd.f32 %v2285, %v2493
        %v2620 = vadd.f32 %v2286, %v2495
        %v2621 = vadd.f32 %v2287, %v2498
        %v2622 = vadd.f32 %v2288, %v2500
        %v2623 = vadd.f32 %v2289, %v2503
        %v2624 = vadd.f32 %v2290, %v2505
        %v2625 = vadd.f32 %v2291, %v2508
        %v2626 = vadd.f32 %v2292, %v2510
        %v2627 = vadd.f32 %v2293, %v2513
        %v2628 = vadd.f32 %v2294, %v2515
        %v2629 = vadd.f32 %v2295, %v2518
        %v2630 = vadd.f32 %v2296, %v2520
        %v2631 = vadd.f32 %v2297, %v2523
        %v2632 = vadd.f32 %v2298, %v2525
        %v2633 = vadd.f32 %v2299, %v2528
        %v2634 = vadd.f32 %v2300, %v2530
        %v2635 = vadd.f32 %v2301, %v2533
        %v2636 = vadd.f32 %v2302, %v2535
        %v2637 = vadd.f32 %v2303, %v2538
        %v2638 = vadd.f32 %v2304, %v2540
        %v2639 = vadd.f32 %v2305, %v2543
        %v2640 = vadd.f32 %v2306, %v2545
        %v2641 = vadd.f32 %v2307, %v2548
        %v2642 = vadd.f32 %v2308, %v2550
        %v2643 = vadd.f32 %v2309, %v2553
        %v2644 = vadd.f32 %v2310, %v2555
        %v2645 = vadd.f32 %v2311, %v2558
        %v2646 = vadd.f32 %v2312, %v2560
        %v2647 = vadd.f32 %v2313, %v2563
        %v2648 = vadd.f32 %v2314, %v2565
        %v2649 = vadd.f32 %v2315, %v2568
        %v2650 = vadd.f32 %v2316, %v2570
        %v2651 = vadd.f32 %v2317, %v2573
        %v2652 = vadd.f32 %v2318, %v2575
        %v2653 = vadd.f32 %v2319, %v2578
        %v2654 = vadd.f32 %v2320, %v2580
        %v2655 = vadd.f32 %v2321, %v2583
        %v2656 = vadd.f32 %v2322, %v2585
        %v2657 = vadd.f32 %v2323, %v2588
        %v2658 = vadd.f32 %v2324, %v2590
        %v2659 = vadd.f32 %v2325, %v2593
        %v2660 = vadd.f32 %v2326, %v2595
        %2661 = vst [vmem:[#allocation3] sm:$0xff] %v2597
        %2662 = vst [vmem:[#allocation3 + $0x8] sm:$0xff] %v2598
        %2663 = vst [vmem:[#allocation3 + $0x10] sm:$0xff] %v2599
        %2664 = vst [vmem:[#allocation3 + $0x18] sm:$0xff] %v2600
        %2665 = vst [vmem:[#allocation3 + $0x20] sm:$0xff] %v2601
        %2666 = vst [vmem:[#allocation3 + $0x28] sm:$0xff] %v2602
        %2667 = vst [vmem:[#allocation3 + $0x30] sm:$0xff] %v2603
        %2668 = vst [vmem:[#allocation3 + $0x38] sm:$0xff] %v2604
        %2669 = vst [vmem:[#allocation3 + $0x40] sm:$0xff] %v2605
        %2670 = vst [vmem:[#allocation3 + $0x48] sm:$0xff] %v2606
        %2671 = vst [vmem:[#allocation3 + $0x50] sm:$0xff] %v2607
        %2672 = vst [vmem:[#allocation3 + $0x58] sm:$0xff] %v2608
        %2673 = vst [vmem:[#allocation3 + $0x60] sm:$0xff] %v2609
        %2674 = vst [vmem:[#allocation3 + $0x68] sm:$0xff] %v2610
        %2675 = vst [vmem:[#allocation3 + $0x70] sm:$0xff] %v2611
        %2676 = vst [vmem:[#allocation3 + $0x78] sm:$0xff] %v2612
        %2677 = vst [vmem:[#allocation3 + $0x80] sm:$0xff] %v2613
        %2678 = vst [vmem:[#allocation3 + $0x88] sm:$0xff] %v2614
        %2679 = vst [vmem:[#allocation3 + $0x90] sm:$0xff] %v2615
        %2680 = vst [vmem:[#allocation3 + $0x98] sm:$0xff] %v2616
        %2681 = vst [vmem:[#allocation3 + $0xa0] sm:$0xff] %v2617
        %2682 = vst [vmem:[#allocation3 + $0xa8] sm:$0xff] %v2618
        %2683 = vst [vmem:[#allocation3 + $0xb0] sm:$0xff] %v2619
        %2684 = vst [vmem:[#allocation3 + $0xb8] sm:$0xff] %v2620
        %2685 = vst [vmem:[#allocation3 + $0xc0] sm:$0xff] %v2621
        %2686 = vst [vmem:[#allocation3 + $0xc8] sm:$0xff] %v2622
        %2687 = vst [vmem:[#allocation3 + $0xd0] sm:$0xff] %v2623
        %2688 = vst [vmem:[#allocation3 + $0xd8] sm:$0xff] %v2624
        %2689 = vst [vmem:[#allocation3 + $0xe0] sm:$0xff] %v2625
        %2690 = vst [vmem:[#allocation3 + $0xe8] sm:$0xff] %v2626
        %2691 = vst [vmem:[#allocation3 + $0xf0] sm:$0xff] %v2627
        %2692 = vst [vmem:[#allocation3 + $0xf8] sm:$0xff] %v2628
        %2693 = vst [vmem:[#allocation3 + $0x100] sm:$0xff] %v2629
        %2694 = vst [vmem:[#allocation3 + $0x108] sm:$0xff] %v2630
        %2695 = vst [vmem:[#allocation3 + $0x110] sm:$0xff] %v2631
        %2696 = vst [vmem:[#allocation3 + $0x118] sm:$0xff] %v2632
        %2697 = vst [vmem:[#allocation3 + $0x120] sm:$0xff] %v2633
        %2698 = vst [vmem:[#allocation3 + $0x128] sm:$0xff] %v2634
        %2699 = vst [vmem:[#allocation3 + $0x130] sm:$0xff] %v2635
        %2700 = vst [vmem:[#allocation3 + $0x138] sm:$0xff] %v2636
        %2701 = vst [vmem:[#allocation3 + $0x140] sm:$0xff] %v2637
        %2702 = vst [vmem:[#allocation3 + $0x148] sm:$0xff] %v2638
        %2703 = vst [vmem:[#allocation3 + $0x150] sm:$0xff] %v2639
        %2704 = vst [vmem:[#allocation3 + $0x158] sm:$0xff] %v2640
        %2705 = vst [vmem:[#allocation3 + $0x160] sm:$0xff] %v2641
        %2706 = vst [vmem:[#allocation3 + $0x168] sm:$0xff] %v2642
        %2707 = vst [vmem:[#allocation3 + $0x170] sm:$0xff] %v2643
        %2708 = vst [vmem:[#allocation3 + $0x178] sm:$0xff] %v2644
        %2709 = vst [vmem:[#allocation3 + $0x180] sm:$0xff] %v2645
        %2710 = vst [vmem:[#allocation3 + $0x188] sm:$0xff] %v2646
        %2711 = vst [vmem:[#allocation3 + $0x190] sm:$0xff] %v2647
        %2712 = vst [vmem:[#allocation3 + $0x198] sm:$0xff] %v2648
        %2713 = vst [vmem:[#allocation3 + $0x1a0] sm:$0xff] %v2649
        %2714 = vst [vmem:[#allocation3 + $0x1a8] sm:$0xff] %v2650
        %2715 = vst [vmem:[#allocation3 + $0x1b0] sm:$0xff] %v2651
        %2716 = vst [vmem:[#allocation3 + $0x1b8] sm:$0xff] %v2652
        %2717 = vst [vmem:[#allocation3 + $0x1c0] sm:$0xff] %v2653
        %2718 = vst [vmem:[#allocation3 + $0x1c8] sm:$0xff] %v2654
        %2719 = vst [vmem:[#allocation3 + $0x1d0] sm:$0xff] %v2655
        %2720 = vst [vmem:[#allocation3 + $0x1d8] sm:$0xff] %v2656
        %2721 = vst [vmem:[#allocation3 + $0x1e0] sm:$0xff] %v2657
        %2722 = vst [vmem:[#allocation3 + $0x1e8] sm:$0xff] %v2658
        %2723 = vst [vmem:[#allocation3 + $0x1f0] sm:$0xff] %v2659
        %2724 = vst [vmem:[#allocation3 + $0x1f8] sm:$0xff] %v2660
        %v2725 = vld [vmem:[#allocation2 + $0x13] sm:$0xff]
        %v2726 = vld [vmem:[#allocation2 + $0x1b] sm:$0xff]
        %v2727 = vld [vmem:[#allocation2 + $0x23] sm:$0xff]
        %v2728 = vld [vmem:[#allocation2 + $0x2b] sm:$0xff]
        %v2729 = vld [vmem:[#allocation2 + $0x33] sm:$0xff]
        %v2730 = vld [vmem:[#allocation2 + $0x3b] sm:$0xff]
        %v2731 = vld [vmem:[#allocation2 + $0x43] sm:$0xff]
        %v2732 = vld [vmem:[#allocation2 + $0x4b] sm:$0xff]
        %v2733 = vld [vmem:[#allocation2 + $0x53] sm:$0xff]
        %v2734 = vld [vmem:[#allocation2 + $0x5b] sm:$0xff]
        %v2735 = vld [vmem:[#allocation2 + $0x63] sm:$0xff]
        %v2736 = vld [vmem:[#allocation2 + $0x6b] sm:$0xff]
        %v2737 = vld [vmem:[#allocation2 + $0x73] sm:$0xff]
        %v2738 = vld [vmem:[#allocation2 + $0x7b] sm:$0xff]
        %v2739 = vld [vmem:[#allocation2 + $0x83] sm:$0xff]
        %v2740 = vld [vmem:[#allocation2 + $0x8b] sm:$0xff]
        %v2741 = vld [vmem:[#allocation2 + $0x93] sm:$0xff]
        %v2742 = vld [vmem:[#allocation2 + $0x9b] sm:$0xff]
        %v2743 = vld [vmem:[#allocation2 + $0xa3] sm:$0xff]
        %v2744 = vld [vmem:[#allocation2 + $0xab] sm:$0xff]
        %v2745 = vld [vmem:[#allocation2 + $0xb3] sm:$0xff]
        %v2746 = vld [vmem:[#allocation2 + $0xbb] sm:$0xff]
        %v2747 = vld [vmem:[#allocation2 + $0xc3] sm:$0xff]
        %v2748 = vld [vmem:[#allocation2 + $0xcb] sm:$0xff]
        %v2749 = vld [vmem:[#allocation2 + $0xd3] sm:$0xff]
        %v2750 = vld [vmem:[#allocation2 + $0xdb] sm:$0xff]
        %v2751 = vld [vmem:[#allocation2 + $0xe3] sm:$0xff]
        %v2752 = vld [vmem:[#allocation2 + $0xeb] sm:$0xff]
        %v2753 = vld [vmem:[#allocation2 + $0xf3] sm:$0xff]
        %v2754 = vld [vmem:[#allocation2 + $0xfb] sm:$0xff]
        %v2755 = vld [vmem:[#allocation2 + $0x103] sm:$0xff]
        %v2756 = vld [vmem:[#allocation2 + $0x10b] sm:$0xff]
        %v2757 = vld [vmem:[#allocation2 + $0x113] sm:$0xff]
        %v2758 = vld [vmem:[#allocation2 + $0x11b] sm:$0xff]
        %v2759 = vld [vmem:[#allocation2 + $0x123] sm:$0xff]
        %v2760 = vld [vmem:[#allocation2 + $0x12b] sm:$0xff]
        %v2761 = vld [vmem:[#allocation2 + $0x133] sm:$0xff]
        %v2762 = vld [vmem:[#allocation2 + $0x13b] sm:$0xff]
        %v2763 = vld [vmem:[#allocation2 + $0x143] sm:$0xff]
        %v2764 = vld [vmem:[#allocation2 + $0x14b] sm:$0xff]
        %v2765 = vld [vmem:[#allocation2 + $0x153] sm:$0xff]
        %v2766 = vld [vmem:[#allocation2 + $0x15b] sm:$0xff]
        %v2767 = vld [vmem:[#allocation2 + $0x163] sm:$0xff]
        %v2768 = vld [vmem:[#allocation2 + $0x16b] sm:$0xff]
        %v2769 = vld [vmem:[#allocation2 + $0x173] sm:$0xff]
        %v2770 = vld [vmem:[#allocation2 + $0x17b] sm:$0xff]
        %v2771 = vld [vmem:[#allocation2 + $0x183] sm:$0xff]
        %v2772 = vld [vmem:[#allocation2 + $0x18b] sm:$0xff]
        %v2773 = vld [vmem:[#allocation2 + $0x193] sm:$0xff]
        %v2774 = vld [vmem:[#allocation2 + $0x19b] sm:$0xff]
        %v2775 = vld [vmem:[#allocation2 + $0x1a3] sm:$0xff]
        %v2776 = vld [vmem:[#allocation2 + $0x1ab] sm:$0xff]
        %v2777 = vld [vmem:[#allocation2 + $0x1b3] sm:$0xff]
        %v2778 = vld [vmem:[#allocation2 + $0x1bb] sm:$0xff]
        %v2779 = vld [vmem:[#allocation2 + $0x1c3] sm:$0xff]
        %v2780 = vld [vmem:[#allocation2 + $0x1cb] sm:$0xff]
        %v2781 = vld [vmem:[#allocation2 + $0x1d3] sm:$0xff]
        %v2782 = vld [vmem:[#allocation2 + $0x1db] sm:$0xff]
        %v2783 = vld [vmem:[#allocation2 + $0x1e3] sm:$0xff]
        %v2784 = vld [vmem:[#allocation2 + $0x1eb] sm:$0xff]
        %v2785 = vld [vmem:[#allocation2 + $0x1f3] sm:$0xff]
        %v2786 = vld [vmem:[#allocation2 + $0x1fb] sm:$0xff]
        %v2787 = vld [vmem:[#allocation2 + $0x203] sm:$0xff]
        %v2788 = vld [vmem:[#allocation2 + $0x20b] sm:$0xff]
        %v2789 = vpack.c.bf16 %v2726, %v2725
        %v2790 = vpack.c.bf16 %v2728, %v2727
        %v2791 = vpack.c.bf16 %v2730, %v2729
        %v2792 = vpack.c.bf16 %v2732, %v2731
        %v2793 = vpack.c.bf16 %v2734, %v2733
        %v2794 = vpack.c.bf16 %v2736, %v2735
        %v2795 = vpack.c.bf16 %v2738, %v2737
        %v2796 = vpack.c.bf16 %v2740, %v2739
        %v2797 = vpack.c.bf16 %v2742, %v2741
        %v2798 = vpack.c.bf16 %v2744, %v2743
        %v2799 = vpack.c.bf16 %v2746, %v2745
        %v2800 = vpack.c.bf16 %v2748, %v2747
        %v2801 = vpack.c.bf16 %v2750, %v2749
        %v2802 = vpack.c.bf16 %v2752, %v2751
        %v2803 = vpack.c.bf16 %v2754, %v2753
        %v2804 = vpack.c.bf16 %v2756, %v2755
        %v2805 = vpack.c.bf16 %v2758, %v2757
        %v2806 = vpack.c.bf16 %v2760, %v2759
        %v2807 = vpack.c.bf16 %v2762, %v2761
        %v2808 = vpack.c.bf16 %v2764, %v2763
        %v2809 = vpack.c.bf16 %v2766, %v2765
        %v2810 = vpack.c.bf16 %v2768, %v2767
        %v2811 = vpack.c.bf16 %v2770, %v2769
        %v2812 = vpack.c.bf16 %v2772, %v2771
        %v2813 = vpack.c.bf16 %v2774, %v2773
        %v2814 = vpack.c.bf16 %v2776, %v2775
        %v2815 = vpack.c.bf16 %v2778, %v2777
        %v2816 = vpack.c.bf16 %v2780, %v2779
        %v2817 = vpack.c.bf16 %v2782, %v2781
        %v2818 = vpack.c.bf16 %v2784, %v2783
        %v2819 = vpack.c.bf16 %v2786, %v2785
        %v2820 = vpack.c.bf16 %v2788, %v2787
        %v2821 = vld [vmem:[#allocation3] sm:$0xff]
        %v2822 = vld [vmem:[#allocation3 + $0x8] sm:$0xff]
        %v2823 = vld [vmem:[#allocation3 + $0x10] sm:$0xff]
        %v2824 = vld [vmem:[#allocation3 + $0x18] sm:$0xff]
        %v2825 = vld [vmem:[#allocation3 + $0x20] sm:$0xff]
        %v2826 = vld [vmem:[#allocation3 + $0x28] sm:$0xff]
        %v2827 = vld [vmem:[#allocation3 + $0x30] sm:$0xff]
        %v2828 = vld [vmem:[#allocation3 + $0x38] sm:$0xff]
        %v2829 = vld [vmem:[#allocation3 + $0x40] sm:$0xff]
        %v2830 = vld [vmem:[#allocation3 + $0x48] sm:$0xff]
        %v2831 = vld [vmem:[#allocation3 + $0x50] sm:$0xff]
        %v2832 = vld [vmem:[#allocation3 + $0x58] sm:$0xff]
        %v2833 = vld [vmem:[#allocation3 + $0x60] sm:$0xff]
        %v2834 = vld [vmem:[#allocation3 + $0x68] sm:$0xff]
        %v2835 = vld [vmem:[#allocation3 + $0x70] sm:$0xff]
        %v2836 = vld [vmem:[#allocation3 + $0x78] sm:$0xff]
        %v2837 = vld [vmem:[#allocation3 + $0x80] sm:$0xff]
        %v2838 = vld [vmem:[#allocation3 + $0x88] sm:$0xff]
        %v2839 = vld [vmem:[#allocation3 + $0x90] sm:$0xff]
        %v2840 = vld [vmem:[#allocation3 + $0x98] sm:$0xff]
        %v2841 = vld [vmem:[#allocation3 + $0xa0] sm:$0xff]
        %v2842 = vld [vmem:[#allocation3 + $0xa8] sm:$0xff]
        %v2843 = vld [vmem:[#allocation3 + $0xb0] sm:$0xff]
        %v2844 = vld [vmem:[#allocation3 + $0xb8] sm:$0xff]
        %v2845 = vld [vmem:[#allocation3 + $0xc0] sm:$0xff]
        %v2846 = vld [vmem:[#allocation3 + $0xc8] sm:$0xff]
        %v2847 = vld [vmem:[#allocation3 + $0xd0] sm:$0xff]
        %v2848 = vld [vmem:[#allocation3 + $0xd8] sm:$0xff]
        %v2849 = vld [vmem:[#allocation3 + $0xe0] sm:$0xff]
        %v2850 = vld [vmem:[#allocation3 + $0xe8] sm:$0xff]
        %v2851 = vld [vmem:[#allocation3 + $0xf0] sm:$0xff]
        %v2852 = vld [vmem:[#allocation3 + $0xf8] sm:$0xff]
        %v2853 = vld [vmem:[#allocation3 + $0x100] sm:$0xff]
        %v2854 = vld [vmem:[#allocation3 + $0x108] sm:$0xff]
        %v2855 = vld [vmem:[#allocation3 + $0x110] sm:$0xff]
        %v2856 = vld [vmem:[#allocation3 + $0x118] sm:$0xff]
        %v2857 = vld [vmem:[#allocation3 + $0x120] sm:$0xff]
        %v2858 = vld [vmem:[#allocation3 + $0x128] sm:$0xff]
        %v2859 = vld [vmem:[#allocation3 + $0x130] sm:$0xff]
        %v2860 = vld [vmem:[#allocation3 + $0x138] sm:$0xff]
        %v2861 = vld [vmem:[#allocation3 + $0x140] sm:$0xff]
        %v2862 = vld [vmem:[#allocation3 + $0x148] sm:$0xff]
        %v2863 = vld [vmem:[#allocation3 + $0x150] sm:$0xff]
        %v2864 = vld [vmem:[#allocation3 + $0x158] sm:$0xff]
        %v2865 = vld [vmem:[#allocation3 + $0x160] sm:$0xff]
        %v2866 = vld [vmem:[#allocation3 + $0x168] sm:$0xff]
        %v2867 = vld [vmem:[#allocation3 + $0x170] sm:$0xff]
        %v2868 = vld [vmem:[#allocation3 + $0x178] sm:$0xff]
        %v2869 = vld [vmem:[#allocation3 + $0x180] sm:$0xff]
        %v2870 = vld [vmem:[#allocation3 + $0x188] sm:$0xff]
        %v2871 = vld [vmem:[#allocation3 + $0x190] sm:$0xff]
        %v2872 = vld [vmem:[#allocation3 + $0x198] sm:$0xff]
        %v2873 = vld [vmem:[#allocation3 + $0x1a0] sm:$0xff]
        %v2874 = vld [vmem:[#allocation3 + $0x1a8] sm:$0xff]
        %v2875 = vld [vmem:[#allocation3 + $0x1b0] sm:$0xff]
        %v2876 = vld [vmem:[#allocation3 + $0x1b8] sm:$0xff]
        %v2877 = vld [vmem:[#allocation3 + $0x1c0] sm:$0xff]
        %v2878 = vld [vmem:[#allocation3 + $0x1c8] sm:$0xff]
        %v2879 = vld [vmem:[#allocation3 + $0x1d0] sm:$0xff]
        %v2880 = vld [vmem:[#allocation3 + $0x1d8] sm:$0xff]
        %v2881 = vld [vmem:[#allocation3 + $0x1e0] sm:$0xff]
        %v2882 = vld [vmem:[#allocation3 + $0x1e8] sm:$0xff]
        %v2883 = vld [vmem:[#allocation3 + $0x1f0] sm:$0xff]
        %v2884 = vld [vmem:[#allocation3 + $0x1f8] sm:$0xff]
        %s2885 = scalar_lea.vmem %s2, 8
        %v2886 = vld [vmem:[%s2885] sm:$0x3]
        %v2888 = vsel %vm348, %v2789, 0
        %v2891 = vsel %vm348, %v2790, 0
        %v2894 = vsel %vm348, %v2791, 0
        %v2897 = vsel %vm348, %v2792, 0
        %v2900 = vsel %vm348, %v2793, 0
        %v2903 = vsel %vm348, %v2794, 0
        %v2906 = vsel %vm348, %v2795, 0
        %v2909 = vsel %vm348, %v2796, 0
        %v2912 = vsel %vm348, %v2797, 0
        %v2915 = vsel %vm348, %v2798, 0
        %v2918 = vsel %vm348, %v2799, 0
        %v2921 = vsel %vm348, %v2800, 0
        %v2924 = vsel %vm348, %v2801, 0
        %v2927 = vsel %vm348, %v2802, 0
        %v2930 = vsel %vm348, %v2803, 0
        %v2933 = vsel %vm348, %v2804, 0
        %v2936 = vsel %vm348, %v2805, 0
        %v2939 = vsel %vm348, %v2806, 0
        %v2942 = vsel %vm348, %v2807, 0
        %v2945 = vsel %vm348, %v2808, 0
        %v2948 = vsel %vm348, %v2809, 0
        %v2951 = vsel %vm348, %v2810, 0
        %v2954 = vsel %vm348, %v2811, 0
        %v2957 = vsel %vm348, %v2812, 0
        %v2960 = vsel %vm348, %v2813, 0
        %v2963 = vsel %vm348, %v2814, 0
        %v2966 = vsel %vm348, %v2815, 0
        %v2969 = vsel %vm348, %v2816, 0
        %v2972 = vsel %vm348, %v2817, 0
        %v2975 = vsel %vm348, %v2818, 0
        %v2978 = vsel %vm348, %v2819, 0
        %v2981 = vsel %vm348, %v2820, 0
        %v2984 = vsel %vm750, %v2886, 0
        %2986 = vmatpush.bf16.msra.mxu0 0
        %2987 = vmatpush.bf16.msra.mxu0 0
        %2988 = vmatpush.bf16.msra.mxu0 0
        %2989 = vmatpush.bf16.msra.mxu0 0
        %2990 = vmatpush.bf16.msra.mxu0 0
        %2991 = vmatpush.bf16.msra.mxu0 0
        %2992 = vmatpush.bf16.msra.mxu0 0
        %2993 = vmatpush.bf16.msra.mxu0 %v2984
        %2994 = vmatmul.bf16.gmra.mxu0 %v2888
        %v2995 = vpop.f32.mrf.mxu0
        %v2996 = vadd.f32 0.0, %v2995
        %v2997 = vpop.f32.mrf.mxu0
        %v2998 = vadd.f32 0.0, %v2997
        %2999 = vmatmul.bf16.gmra.mxu0 %v2891
        %v3000 = vpop.f32.mrf.mxu0
        %v3001 = vadd.f32 0.0, %v3000
        %v3002 = vpop.f32.mrf.mxu0
        %v3003 = vadd.f32 0.0, %v3002
        %3004 = vmatmul.bf16.gmra.mxu0 %v2894
        %v3005 = vpop.f32.mrf.mxu0
        %v3006 = vadd.f32 0.0, %v3005
        %v3007 = vpop.f32.mrf.mxu0
        %v3008 = vadd.f32 0.0, %v3007
        %3009 = vmatmul.bf16.gmra.mxu0 %v2897
        %v3010 = vpop.f32.mrf.mxu0
        %v3011 = vadd.f32 0.0, %v3010
        %v3012 = vpop.f32.mrf.mxu0
        %v3013 = vadd.f32 0.0, %v3012
        %3014 = vmatmul.bf16.gmra.mxu0 %v2900
        %v3015 = vpop.f32.mrf.mxu0
        %v3016 = vadd.f32 0.0, %v3015
        %v3017 = vpop.f32.mrf.mxu0
        %v3018 = vadd.f32 0.0, %v3017
        %3019 = vmatmul.bf16.gmra.mxu0 %v2903
        %v3020 = vpop.f32.mrf.mxu0
        %v3021 = vadd.f32 0.0, %v3020
        %v3022 = vpop.f32.mrf.mxu0
        %v3023 = vadd.f32 0.0, %v3022
        %3024 = vmatmul.bf16.gmra.mxu0 %v2906
        %v3025 = vpop.f32.mrf.mxu0
        %v3026 = vadd.f32 0.0, %v3025
        %v3027 = vpop.f32.mrf.mxu0
        %v3028 = vadd.f32 0.0, %v3027
        %3029 = vmatmul.bf16.gmra.mxu0 %v2909
        %v3030 = vpop.f32.mrf.mxu0
        %v3031 = vadd.f32 0.0, %v3030
        %v3032 = vpop.f32.mrf.mxu0
        %v3033 = vadd.f32 0.0, %v3032
        %3034 = vmatmul.bf16.gmra.mxu0 %v2912
        %v3035 = vpop.f32.mrf.mxu0
        %v3036 = vadd.f32 0.0, %v3035
        %v3037 = vpop.f32.mrf.mxu0
        %v3038 = vadd.f32 0.0, %v3037
        %3039 = vmatmul.bf16.gmra.mxu0 %v2915
        %v3040 = vpop.f32.mrf.mxu0
        %v3041 = vadd.f32 0.0, %v3040
        %v3042 = vpop.f32.mrf.mxu0
        %v3043 = vadd.f32 0.0, %v3042
        %3044 = vmatmul.bf16.gmra.mxu0 %v2918
        %v3045 = vpop.f32.mrf.mxu0
        %v3046 = vadd.f32 0.0, %v3045
        %v3047 = vpop.f32.mrf.mxu0
        %v3048 = vadd.f32 0.0, %v3047
        %3049 = vmatmul.bf16.gmra.mxu0 %v2921
        %v3050 = vpop.f32.mrf.mxu0
        %v3051 = vadd.f32 0.0, %v3050
        %v3052 = vpop.f32.mrf.mxu0
        %v3053 = vadd.f32 0.0, %v3052
        %3054 = vmatmul.bf16.gmra.mxu0 %v2924
        %v3055 = vpop.f32.mrf.mxu0
        %v3056 = vadd.f32 0.0, %v3055
        %v3057 = vpop.f32.mrf.mxu0
        %v3058 = vadd.f32 0.0, %v3057
        %3059 = vmatmul.bf16.gmra.mxu0 %v2927
        %v3060 = vpop.f32.mrf.mxu0
        %v3061 = vadd.f32 0.0, %v3060
        %v3062 = vpop.f32.mrf.mxu0
        %v3063 = vadd.f32 0.0, %v3062
        %3064 = vmatmul.bf16.gmra.mxu0 %v2930
        %v3065 = vpop.f32.mrf.mxu0
        %v3066 = vadd.f32 0.0, %v3065
        %v3067 = vpop.f32.mrf.mxu0
        %v3068 = vadd.f32 0.0, %v3067
        %3069 = vmatmul.bf16.gmra.mxu0 %v2933
        %v3070 = vpop.f32.mrf.mxu0
        %v3071 = vadd.f32 0.0, %v3070
        %v3072 = vpop.f32.mrf.mxu0
        %v3073 = vadd.f32 0.0, %v3072
        %3074 = vmatmul.bf16.gmra.mxu0 %v2936
        %v3075 = vpop.f32.mrf.mxu0
        %v3076 = vadd.f32 0.0, %v3075
        %v3077 = vpop.f32.mrf.mxu0
        %v3078 = vadd.f32 0.0, %v3077
        %3079 = vmatmul.bf16.gmra.mxu0 %v2939
        %v3080 = vpop.f32.mrf.mxu0
        %v3081 = vadd.f32 0.0, %v3080
        %v3082 = vpop.f32.mrf.mxu0
        %v3083 = vadd.f32 0.0, %v3082
        %3084 = vmatmul.bf16.gmra.mxu0 %v2942
        %v3085 = vpop.f32.mrf.mxu0
        %v3086 = vadd.f32 0.0, %v3085
        %v3087 = vpop.f32.mrf.mxu0
        %v3088 = vadd.f32 0.0, %v3087
        %3089 = vmatmul.bf16.gmra.mxu0 %v2945
        %v3090 = vpop.f32.mrf.mxu0
        %v3091 = vadd.f32 0.0, %v3090
        %v3092 = vpop.f32.mrf.mxu0
        %v3093 = vadd.f32 0.0, %v3092
        %3094 = vmatmul.bf16.gmra.mxu0 %v2948
        %v3095 = vpop.f32.mrf.mxu0
        %v3096 = vadd.f32 0.0, %v3095
        %v3097 = vpop.f32.mrf.mxu0
        %v3098 = vadd.f32 0.0, %v3097
        %3099 = vmatmul.bf16.gmra.mxu0 %v2951
        %v3100 = vpop.f32.mrf.mxu0
        %v3101 = vadd.f32 0.0, %v3100
        %v3102 = vpop.f32.mrf.mxu0
        %v3103 = vadd.f32 0.0, %v3102
        %3104 = vmatmul.bf16.gmra.mxu0 %v2954
        %v3105 = vpop.f32.mrf.mxu0
        %v3106 = vadd.f32 0.0, %v3105
        %v3107 = vpop.f32.mrf.mxu0
        %v3108 = vadd.f32 0.0, %v3107
        %3109 = vmatmul.bf16.gmra.mxu0 %v2957
        %v3110 = vpop.f32.mrf.mxu0
        %v3111 = vadd.f32 0.0, %v3110
        %v3112 = vpop.f32.mrf.mxu0
        %v3113 = vadd.f32 0.0, %v3112
        %3114 = vmatmul.bf16.gmra.mxu0 %v2960
        %v3115 = vpop.f32.mrf.mxu0
        %v3116 = vadd.f32 0.0, %v3115
        %v3117 = vpop.f32.mrf.mxu0
        %v3118 = vadd.f32 0.0, %v3117
        %3119 = vmatmul.bf16.gmra.mxu0 %v2963
        %v3120 = vpop.f32.mrf.mxu0
        %v3121 = vadd.f32 0.0, %v3120
        %v3122 = vpop.f32.mrf.mxu0
        %v3123 = vadd.f32 0.0, %v3122
        %3124 = vmatmul.bf16.gmra.mxu0 %v2966
        %v3125 = vpop.f32.mrf.mxu0
        %v3126 = vadd.f32 0.0, %v3125
        %v3127 = vpop.f32.mrf.mxu0
        %v3128 = vadd.f32 0.0, %v3127
        %3129 = vmatmul.bf16.gmra.mxu0 %v2969
        %v3130 = vpop.f32.mrf.mxu0
        %v3131 = vadd.f32 0.0, %v3130
        %v3132 = vpop.f32.mrf.mxu0
        %v3133 = vadd.f32 0.0, %v3132
        %3134 = vmatmul.bf16.gmra.mxu0 %v2972
        %v3135 = vpop.f32.mrf.mxu0
        %v3136 = vadd.f32 0.0, %v3135
        %v3137 = vpop.f32.mrf.mxu0
        %v3138 = vadd.f32 0.0, %v3137
        %3139 = vmatmul.bf16.gmra.mxu0 %v2975
        %v3140 = vpop.f32.mrf.mxu0
        %v3141 = vadd.f32 0.0, %v3140
        %v3142 = vpop.f32.mrf.mxu0
        %v3143 = vadd.f32 0.0, %v3142
        %3144 = vmatmul.bf16.gmra.mxu0 %v2978
        %v3145 = vpop.f32.mrf.mxu0
        %v3146 = vadd.f32 0.0, %v3145
        %v3147 = vpop.f32.mrf.mxu0
        %v3148 = vadd.f32 0.0, %v3147
        %3149 = vmatmul.bf16.gmra.mxu0 %v2981
        %v3150 = vpop.f32.mrf.mxu0
        %v3151 = vadd.f32 0.0, %v3150
        %v3152 = vpop.f32.mrf.mxu0
        %v3153 = vadd.f32 0.0, %v3152
        %3154 = vdwg.mxu0
        %v3155 = vadd.f32 %v2821, %v2996
        %v3156 = vadd.f32 %v2822, %v2998
        %v3157 = vadd.f32 %v2823, %v3001
        %v3158 = vadd.f32 %v2824, %v3003
        %v3159 = vadd.f32 %v2825, %v3006
        %v3160 = vadd.f32 %v2826, %v3008
        %v3161 = vadd.f32 %v2827, %v3011
        %v3162 = vadd.f32 %v2828, %v3013
        %v3163 = vadd.f32 %v2829, %v3016
        %v3164 = vadd.f32 %v2830, %v3018
        %v3165 = vadd.f32 %v2831, %v3021
        %v3166 = vadd.f32 %v2832, %v3023
        %v3167 = vadd.f32 %v2833, %v3026
        %v3168 = vadd.f32 %v2834, %v3028
        %v3169 = vadd.f32 %v2835, %v3031
        %v3170 = vadd.f32 %v2836, %v3033
        %v3171 = vadd.f32 %v2837, %v3036
        %v3172 = vadd.f32 %v2838, %v3038
        %v3173 = vadd.f32 %v2839, %v3041
        %v3174 = vadd.f32 %v2840, %v3043
        %v3175 = vadd.f32 %v2841, %v3046
        %v3176 = vadd.f32 %v2842, %v3048
        %v3177 = vadd.f32 %v2843, %v3051
        %v3178 = vadd.f32 %v2844, %v3053
        %v3179 = vadd.f32 %v2845, %v3056
        %v3180 = vadd.f32 %v2846, %v3058
        %v3181 = vadd.f32 %v2847, %v3061
        %v3182 = vadd.f32 %v2848, %v3063
        %v3183 = vadd.f32 %v2849, %v3066
        %v3184 = vadd.f32 %v2850, %v3068
        %v3185 = vadd.f32 %v2851, %v3071
        %v3186 = vadd.f32 %v2852, %v3073
        %v3187 = vadd.f32 %v2853, %v3076
        %v3188 = vadd.f32 %v2854, %v3078
        %v3189 = vadd.f32 %v2855, %v3081
        %v3190 = vadd.f32 %v2856, %v3083
        %v3191 = vadd.f32 %v2857, %v3086
        %v3192 = vadd.f32 %v2858, %v3088
        %v3193 = vadd.f32 %v2859, %v3091
        %v3194 = vadd.f32 %v2860, %v3093
        %v3195 = vadd.f32 %v2861, %v3096
        %v3196 = vadd.f32 %v2862, %v3098
        %v3197 = vadd.f32 %v2863, %v3101
        %v3198 = vadd.f32 %v2864, %v3103
        %v3199 = vadd.f32 %v2865, %v3106
        %v3200 = vadd.f32 %v2866, %v3108
        %v3201 = vadd.f32 %v2867, %v3111
        %v3202 = vadd.f32 %v2868, %v3113
        %v3203 = vadd.f32 %v2869, %v3116
        %v3204 = vadd.f32 %v2870, %v3118
        %v3205 = vadd.f32 %v2871, %v3121
        %v3206 = vadd.f32 %v2872, %v3123
        %v3207 = vadd.f32 %v2873, %v3126
        %v3208 = vadd.f32 %v2874, %v3128
        %v3209 = vadd.f32 %v2875, %v3131
        %v3210 = vadd.f32 %v2876, %v3133
        %v3211 = vadd.f32 %v2877, %v3136
        %v3212 = vadd.f32 %v2878, %v3138
        %v3213 = vadd.f32 %v2879, %v3141
        %v3214 = vadd.f32 %v2880, %v3143
        %v3215 = vadd.f32 %v2881, %v3146
        %v3216 = vadd.f32 %v2882, %v3148
        %v3217 = vadd.f32 %v2883, %v3151
        %v3218 = vadd.f32 %v2884, %v3153
        %3219 = vst [vmem:[#allocation3] sm:$0xff] %v3155
        %3220 = vst [vmem:[#allocation3 + $0x8] sm:$0xff] %v3156
        %3221 = vst [vmem:[#allocation3 + $0x10] sm:$0xff] %v3157
        %3222 = vst [vmem:[#allocation3 + $0x18] sm:$0xff] %v3158
        %3223 = vst [vmem:[#allocation3 + $0x20] sm:$0xff] %v3159
        %3224 = vst [vmem:[#allocation3 + $0x28] sm:$0xff] %v3160
        %3225 = vst [vmem:[#allocation3 + $0x30] sm:$0xff] %v3161
        %3226 = vst [vmem:[#allocation3 + $0x38] sm:$0xff] %v3162
        %3227 = vst [vmem:[#allocation3 + $0x40] sm:$0xff] %v3163
        %3228 = vst [vmem:[#allocation3 + $0x48] sm:$0xff] %v3164
        %3229 = vst [vmem:[#allocation3 + $0x50] sm:$0xff] %v3165
        %3230 = vst [vmem:[#allocation3 + $0x58] sm:$0xff] %v3166
        %3231 = vst [vmem:[#allocation3 + $0x60] sm:$0xff] %v3167
        %3232 = vst [vmem:[#allocation3 + $0x68] sm:$0xff] %v3168
        %3233 = vst [vmem:[#allocation3 + $0x70] sm:$0xff] %v3169
        %3234 = vst [vmem:[#allocation3 + $0x78] sm:$0xff] %v3170
        %3235 = vst [vmem:[#allocation3 + $0x80] sm:$0xff] %v3171
        %3236 = vst [vmem:[#allocation3 + $0x88] sm:$0xff] %v3172
        %3237 = vst [vmem:[#allocation3 + $0x90] sm:$0xff] %v3173
        %3238 = vst [vmem:[#allocation3 + $0x98] sm:$0xff] %v3174
        %3239 = vst [vmem:[#allocation3 + $0xa0] sm:$0xff] %v3175
        %3240 = vst [vmem:[#allocation3 + $0xa8] sm:$0xff] %v3176
        %3241 = vst [vmem:[#allocation3 + $0xb0] sm:$0xff] %v3177
        %3242 = vst [vmem:[#allocation3 + $0xb8] sm:$0xff] %v3178
        %3243 = vst [vmem:[#allocation3 + $0xc0] sm:$0xff] %v3179
        %3244 = vst [vmem:[#allocation3 + $0xc8] sm:$0xff] %v3180
        %3245 = vst [vmem:[#allocation3 + $0xd0] sm:$0xff] %v3181
        %3246 = vst [vmem:[#allocation3 + $0xd8] sm:$0xff] %v3182
        %3247 = vst [vmem:[#allocation3 + $0xe0] sm:$0xff] %v3183
        %3248 = vst [vmem:[#allocation3 + $0xe8] sm:$0xff] %v3184
        %3249 = vst [vmem:[#allocation3 + $0xf0] sm:$0xff] %v3185
        %3250 = vst [vmem:[#allocation3 + $0xf8] sm:$0xff] %v3186
        %3251 = vst [vmem:[#allocation3 + $0x100] sm:$0xff] %v3187
        %3252 = vst [vmem:[#allocation3 + $0x108] sm:$0xff] %v3188
        %3253 = vst [vmem:[#allocation3 + $0x110] sm:$0xff] %v3189
        %3254 = vst [vmem:[#allocation3 + $0x118] sm:$0xff] %v3190
        %3255 = vst [vmem:[#allocation3 + $0x120] sm:$0xff] %v3191
        %3256 = vst [vmem:[#allocation3 + $0x128] sm:$0xff] %v3192
        %3257 = vst [vmem:[#allocation3 + $0x130] sm:$0xff] %v3193
        %3258 = vst [vmem:[#allocation3 + $0x138] sm:$0xff] %v3194
        %3259 = vst [vmem:[#allocation3 + $0x140] sm:$0xff] %v3195
        %3260 = vst [vmem:[#allocation3 + $0x148] sm:$0xff] %v3196
        %3261 = vst [vmem:[#allocation3 + $0x150] sm:$0xff] %v3197
        %3262 = vst [vmem:[#allocation3 + $0x158] sm:$0xff] %v3198
        %3263 = vst [vmem:[#allocation3 + $0x160] sm:$0xff] %v3199
        %3264 = vst [vmem:[#allocation3 + $0x168] sm:$0xff] %v3200
        %3265 = vst [vmem:[#allocation3 + $0x170] sm:$0xff] %v3201
        %3266 = vst [vmem:[#allocation3 + $0x178] sm:$0xff] %v3202
        %3267 = vst [vmem:[#allocation3 + $0x180] sm:$0xff] %v3203
        %3268 = vst [vmem:[#allocation3 + $0x188] sm:$0xff] %v3204
        %3269 = vst [vmem:[#allocation3 + $0x190] sm:$0xff] %v3205
        %3270 = vst [vmem:[#allocation3 + $0x198] sm:$0xff] %v3206
        %3271 = vst [vmem:[#allocation3 + $0x1a0] sm:$0xff] %v3207
        %3272 = vst [vmem:[#allocation3 + $0x1a8] sm:$0xff] %v3208
        %3273 = vst [vmem:[#allocation3 + $0x1b0] sm:$0xff] %v3209
        %3274 = vst [vmem:[#allocation3 + $0x1b8] sm:$0xff] %v3210
        %3275 = vst [vmem:[#allocation3 + $0x1c0] sm:$0xff] %v3211
        %3276 = vst [vmem:[#allocation3 + $0x1c8] sm:$0xff] %v3212
        %3277 = vst [vmem:[#allocation3 + $0x1d0] sm:$0xff] %v3213
        %3278 = vst [vmem:[#allocation3 + $0x1d8] sm:$0xff] %v3214
        %3279 = vst [vmem:[#allocation3 + $0x1e0] sm:$0xff] %v3215
        %3280 = vst [vmem:[#allocation3 + $0x1e8] sm:$0xff] %v3216
        %3281 = vst [vmem:[#allocation3 + $0x1f0] sm:$0xff] %v3217
        %3282 = vst [vmem:[#allocation3 + $0x1f8] sm:$0xff] %v3218
        %v3283 = vld [vmem:[#allocation2 + $0x14] sm:$0xff]
        %v3284 = vld [vmem:[#allocation2 + $0x1c] sm:$0xff]
        %v3285 = vld [vmem:[#allocation2 + $0x24] sm:$0xff]
        %v3286 = vld [vmem:[#allocation2 + $0x2c] sm:$0xff]
        %v3287 = vld [vmem:[#allocation2 + $0x34] sm:$0xff]
        %v3288 = vld [vmem:[#allocation2 + $0x3c] sm:$0xff]
        %v3289 = vld [vmem:[#allocation2 + $0x44] sm:$0xff]
        %v3290 = vld [vmem:[#allocation2 + $0x4c] sm:$0xff]
        %v3291 = vld [vmem:[#allocation2 + $0x54] sm:$0xff]
        %v3292 = vld [vmem:[#allocation2 + $0x5c] sm:$0xff]
        %v3293 = vld [vmem:[#allocation2 + $0x64] sm:$0xff]
        %v3294 = vld [vmem:[#allocation2 + $0x6c] sm:$0xff]
        %v3295 = vld [vmem:[#allocation2 + $0x74] sm:$0xff]
        %v3296 = vld [vmem:[#allocation2 + $0x7c] sm:$0xff]
        %v3297 = vld [vmem:[#allocation2 + $0x84] sm:$0xff]
        %v3298 = vld [vmem:[#allocation2 + $0x8c] sm:$0xff]
        %v3299 = vld [vmem:[#allocation2 + $0x94] sm:$0xff]
        %v3300 = vld [vmem:[#allocation2 + $0x9c] sm:$0xff]
        %v3301 = vld [vmem:[#allocation2 + $0xa4] sm:$0xff]
        %v3302 = vld [vmem:[#allocation2 + $0xac] sm:$0xff]
        %v3303 = vld [vmem:[#allocation2 + $0xb4] sm:$0xff]
        %v3304 = vld [vmem:[#allocation2 + $0xbc] sm:$0xff]
        %v3305 = vld [vmem:[#allocation2 + $0xc4] sm:$0xff]
        %v3306 = vld [vmem:[#allocation2 + $0xcc] sm:$0xff]
        %v3307 = vld [vmem:[#allocation2 + $0xd4] sm:$0xff]
        %v3308 = vld [vmem:[#allocation2 + $0xdc] sm:$0xff]
        %v3309 = vld [vmem:[#allocation2 + $0xe4] sm:$0xff]
        %v3310 = vld [vmem:[#allocation2 + $0xec] sm:$0xff]
        %v3311 = vld [vmem:[#allocation2 + $0xf4] sm:$0xff]
        %v3312 = vld [vmem:[#allocation2 + $0xfc] sm:$0xff]
        %v3313 = vld [vmem:[#allocation2 + $0x104] sm:$0xff]
        %v3314 = vld [vmem:[#allocation2 + $0x10c] sm:$0xff]
        %v3315 = vld [vmem:[#allocation2 + $0x114] sm:$0xff]
        %v3316 = vld [vmem:[#allocation2 + $0x11c] sm:$0xff]
        %v3317 = vld [vmem:[#allocation2 + $0x124] sm:$0xff]
        %v3318 = vld [vmem:[#allocation2 + $0x12c] sm:$0xff]
        %v3319 = vld [vmem:[#allocation2 + $0x134] sm:$0xff]
        %v3320 = vld [vmem:[#allocation2 + $0x13c] sm:$0xff]
        %v3321 = vld [vmem:[#allocation2 + $0x144] sm:$0xff]
        %v3322 = vld [vmem:[#allocation2 + $0x14c] sm:$0xff]
        %v3323 = vld [vmem:[#allocation2 + $0x154] sm:$0xff]
        %v3324 = vld [vmem:[#allocation2 + $0x15c] sm:$0xff]
        %v3325 = vld [vmem:[#allocation2 + $0x164] sm:$0xff]
        %v3326 = vld [vmem:[#allocation2 + $0x16c] sm:$0xff]
        %v3327 = vld [vmem:[#allocation2 + $0x174] sm:$0xff]
        %v3328 = vld [vmem:[#allocation2 + $0x17c] sm:$0xff]
        %v3329 = vld [vmem:[#allocation2 + $0x184] sm:$0xff]
        %v3330 = vld [vmem:[#allocation2 + $0x18c] sm:$0xff]
        %v3331 = vld [vmem:[#allocation2 + $0x194] sm:$0xff]
        %v3332 = vld [vmem:[#allocation2 + $0x19c] sm:$0xff]
        %v3333 = vld [vmem:[#allocation2 + $0x1a4] sm:$0xff]
        %v3334 = vld [vmem:[#allocation2 + $0x1ac] sm:$0xff]
        %v3335 = vld [vmem:[#allocation2 + $0x1b4] sm:$0xff]
        %v3336 = vld [vmem:[#allocation2 + $0x1bc] sm:$0xff]
        %v3337 = vld [vmem:[#allocation2 + $0x1c4] sm:$0xff]
        %v3338 = vld [vmem:[#allocation2 + $0x1cc] sm:$0xff]
        %v3339 = vld [vmem:[#allocation2 + $0x1d4] sm:$0xff]
        %v3340 = vld [vmem:[#allocation2 + $0x1dc] sm:$0xff]
        %v3341 = vld [vmem:[#allocation2 + $0x1e4] sm:$0xff]
        %v3342 = vld [vmem:[#allocation2 + $0x1ec] sm:$0xff]
        %v3343 = vld [vmem:[#allocation2 + $0x1f4] sm:$0xff]
        %v3344 = vld [vmem:[#allocation2 + $0x1fc] sm:$0xff]
        %v3345 = vld [vmem:[#allocation2 + $0x204] sm:$0xff]
        %v3346 = vld [vmem:[#allocation2 + $0x20c] sm:$0xff]
        %v3347 = vpack.c.bf16 %v3284, %v3283
        %v3348 = vpack.c.bf16 %v3286, %v3285
        %v3349 = vpack.c.bf16 %v3288, %v3287
        %v3350 = vpack.c.bf16 %v3290, %v3289
        %v3351 = vpack.c.bf16 %v3292, %v3291
        %v3352 = vpack.c.bf16 %v3294, %v3293
        %v3353 = vpack.c.bf16 %v3296, %v3295
        %v3354 = vpack.c.bf16 %v3298, %v3297
        %v3355 = vpack.c.bf16 %v3300, %v3299
        %v3356 = vpack.c.bf16 %v3302, %v3301
        %v3357 = vpack.c.bf16 %v3304, %v3303
        %v3358 = vpack.c.bf16 %v3306, %v3305
        %v3359 = vpack.c.bf16 %v3308, %v3307
        %v3360 = vpack.c.bf16 %v3310, %v3309
        %v3361 = vpack.c.bf16 %v3312, %v3311
        %v3362 = vpack.c.bf16 %v3314, %v3313
        %v3363 = vpack.c.bf16 %v3316, %v3315
        %v3364 = vpack.c.bf16 %v3318, %v3317
        %v3365 = vpack.c.bf16 %v3320, %v3319
        %v3366 = vpack.c.bf16 %v3322, %v3321
        %v3367 = vpack.c.bf16 %v3324, %v3323
        %v3368 = vpack.c.bf16 %v3326, %v3325
        %v3369 = vpack.c.bf16 %v3328, %v3327
        %v3370 = vpack.c.bf16 %v3330, %v3329
        %v3371 = vpack.c.bf16 %v3332, %v3331
        %v3372 = vpack.c.bf16 %v3334, %v3333
        %v3373 = vpack.c.bf16 %v3336, %v3335
        %v3374 = vpack.c.bf16 %v3338, %v3337
        %v3375 = vpack.c.bf16 %v3340, %v3339
        %v3376 = vpack.c.bf16 %v3342, %v3341
        %v3377 = vpack.c.bf16 %v3344, %v3343
        %v3378 = vpack.c.bf16 %v3346, %v3345
        %v3379 = vld [vmem:[#allocation3] sm:$0xff]
        %v3380 = vld [vmem:[#allocation3 + $0x8] sm:$0xff]
        %v3381 = vld [vmem:[#allocation3 + $0x10] sm:$0xff]
        %v3382 = vld [vmem:[#allocation3 + $0x18] sm:$0xff]
        %v3383 = vld [vmem:[#allocation3 + $0x20] sm:$0xff]
        %v3384 = vld [vmem:[#allocation3 + $0x28] sm:$0xff]
        %v3385 = vld [vmem:[#allocation3 + $0x30] sm:$0xff]
        %v3386 = vld [vmem:[#allocation3 + $0x38] sm:$0xff]
        %v3387 = vld [vmem:[#allocation3 + $0x40] sm:$0xff]
        %v3388 = vld [vmem:[#allocation3 + $0x48] sm:$0xff]
        %v3389 = vld [vmem:[#allocation3 + $0x50] sm:$0xff]
        %v3390 = vld [vmem:[#allocation3 + $0x58] sm:$0xff]
        %v3391 = vld [vmem:[#allocation3 + $0x60] sm:$0xff]
        %v3392 = vld [vmem:[#allocation3 + $0x68] sm:$0xff]
        %v3393 = vld [vmem:[#allocation3 + $0x70] sm:$0xff]
        %v3394 = vld [vmem:[#allocation3 + $0x78] sm:$0xff]
        %v3395 = vld [vmem:[#allocation3 + $0x80] sm:$0xff]
        %v3396 = vld [vmem:[#allocation3 + $0x88] sm:$0xff]
        %v3397 = vld [vmem:[#allocation3 + $0x90] sm:$0xff]
        %v3398 = vld [vmem:[#allocation3 + $0x98] sm:$0xff]
        %v3399 = vld [vmem:[#allocation3 + $0xa0] sm:$0xff]
        %v3400 = vld [vmem:[#allocation3 + $0xa8] sm:$0xff]
        %v3401 = vld [vmem:[#allocation3 + $0xb0] sm:$0xff]
        %v3402 = vld [vmem:[#allocation3 + $0xb8] sm:$0xff]
        %v3403 = vld [vmem:[#allocation3 + $0xc0] sm:$0xff]
        %v3404 = vld [vmem:[#allocation3 + $0xc8] sm:$0xff]
        %v3405 = vld [vmem:[#allocation3 + $0xd0] sm:$0xff]
        %v3406 = vld [vmem:[#allocation3 + $0xd8] sm:$0xff]
        %v3407 = vld [vmem:[#allocation3 + $0xe0] sm:$0xff]
        %v3408 = vld [vmem:[#allocation3 + $0xe8] sm:$0xff]
        %v3409 = vld [vmem:[#allocation3 + $0xf0] sm:$0xff]
        %v3410 = vld [vmem:[#allocation3 + $0xf8] sm:$0xff]
        %v3411 = vld [vmem:[#allocation3 + $0x100] sm:$0xff]
        %v3412 = vld [vmem:[#allocation3 + $0x108] sm:$0xff]
        %v3413 = vld [vmem:[#allocation3 + $0x110] sm:$0xff]
        %v3414 = vld [vmem:[#allocation3 + $0x118] sm:$0xff]
        %v3415 = vld [vmem:[#allocation3 + $0x120] sm:$0xff]
        %v3416 = vld [vmem:[#allocation3 + $0x128] sm:$0xff]
        %v3417 = vld [vmem:[#allocation3 + $0x130] sm:$0xff]
        %v3418 = vld [vmem:[#allocation3 + $0x138] sm:$0xff]
        %v3419 = vld [vmem:[#allocation3 + $0x140] sm:$0xff]
        %v3420 = vld [vmem:[#allocation3 + $0x148] sm:$0xff]
        %v3421 = vld [vmem:[#allocation3 + $0x150] sm:$0xff]
        %v3422 = vld [vmem:[#allocation3 + $0x158] sm:$0xff]
        %v3423 = vld [vmem:[#allocation3 + $0x160] sm:$0xff]
        %v3424 = vld [vmem:[#allocation3 + $0x168] sm:$0xff]
        %v3425 = vld [vmem:[#allocation3 + $0x170] sm:$0xff]
        %v3426 = vld [vmem:[#allocation3 + $0x178] sm:$0xff]
        %v3427 = vld [vmem:[#allocation3 + $0x180] sm:$0xff]
        %v3428 = vld [vmem:[#allocation3 + $0x188] sm:$0xff]
        %v3429 = vld [vmem:[#allocation3 + $0x190] sm:$0xff]
        %v3430 = vld [vmem:[#allocation3 + $0x198] sm:$0xff]
        %v3431 = vld [vmem:[#allocation3 + $0x1a0] sm:$0xff]
        %v3432 = vld [vmem:[#allocation3 + $0x1a8] sm:$0xff]
        %v3433 = vld [vmem:[#allocation3 + $0x1b0] sm:$0xff]
        %v3434 = vld [vmem:[#allocation3 + $0x1b8] sm:$0xff]
        %v3435 = vld [vmem:[#allocation3 + $0x1c0] sm:$0xff]
        %v3436 = vld [vmem:[#allocation3 + $0x1c8] sm:$0xff]
        %v3437 = vld [vmem:[#allocation3 + $0x1d0] sm:$0xff]
        %v3438 = vld [vmem:[#allocation3 + $0x1d8] sm:$0xff]
        %v3439 = vld [vmem:[#allocation3 + $0x1e0] sm:$0xff]
        %v3440 = vld [vmem:[#allocation3 + $0x1e8] sm:$0xff]
        %v3441 = vld [vmem:[#allocation3 + $0x1f0] sm:$0xff]
        %v3442 = vld [vmem:[#allocation3 + $0x1f8] sm:$0xff]
        %s3443 = scalar_lea.vmem %s2, 10
        %v3444 = vld [vmem:[%s3443] sm:$0x3]
        %v3446 = vsel %vm348, %v3347, 0
        %v3449 = vsel %vm348, %v3348, 0
        %v3452 = vsel %vm348, %v3349, 0
        %v3455 = vsel %vm348, %v3350, 0
        %v3458 = vsel %vm348, %v3351, 0
        %v3461 = vsel %vm348, %v3352, 0
        %v3464 = vsel %vm348, %v3353, 0
        %v3467 = vsel %vm348, %v3354, 0
        %v3470 = vsel %vm348, %v3355, 0
        %v3473 = vsel %vm348, %v3356, 0
        %v3476 = vsel %vm348, %v3357, 0
        %v3479 = vsel %vm348, %v3358, 0
        %v3482 = vsel %vm348, %v3359, 0
        %v3485 = vsel %vm348, %v3360, 0
        %v3488 = vsel %vm348, %v3361, 0
        %v3491 = vsel %vm348, %v3362, 0
        %v3494 = vsel %vm348, %v3363, 0
        %v3497 = vsel %vm348, %v3364, 0
        %v3500 = vsel %vm348, %v3365, 0
        %v3503 = vsel %vm348, %v3366, 0
        %v3506 = vsel %vm348, %v3367, 0
        %v3509 = vsel %vm348, %v3368, 0
        %v3512 = vsel %vm348, %v3369, 0
        %v3515 = vsel %vm348, %v3370, 0
        %v3518 = vsel %vm348, %v3371, 0
        %v3521 = vsel %vm348, %v3372, 0
        %v3524 = vsel %vm348, %v3373, 0
        %v3527 = vsel %vm348, %v3374, 0
        %v3530 = vsel %vm348, %v3375, 0
        %v3533 = vsel %vm348, %v3376, 0
        %v3536 = vsel %vm348, %v3377, 0
        %v3539 = vsel %vm348, %v3378, 0
        %v3542 = vsel %vm750, %v3444, 0
        %3544 = vmatpush.bf16.msra.mxu0 0
        %3545 = vmatpush.bf16.msra.mxu0 0
        %3546 = vmatpush.bf16.msra.mxu0 0
        %3547 = vmatpush.bf16.msra.mxu0 0
        %3548 = vmatpush.bf16.msra.mxu0 0
        %3549 = vmatpush.bf16.msra.mxu0 0
        %3550 = vmatpush.bf16.msra.mxu0 0
        %3551 = vmatpush.bf16.msra.mxu0 %v3542
        %3552 = vmatmul.bf16.gmra.mxu0 %v3446
        %v3553 = vpop.f32.mrf.mxu0
        %v3554 = vadd.f32 0.0, %v3553
        %v3555 = vpop.f32.mrf.mxu0
        %v3556 = vadd.f32 0.0, %v3555
        %3557 = vmatmul.bf16.gmra.mxu0 %v3449
        %v3558 = vpop.f32.mrf.mxu0
        %v3559 = vadd.f32 0.0, %v3558
        %v3560 = vpop.f32.mrf.mxu0
        %v3561 = vadd.f32 0.0, %v3560
        %3562 = vmatmul.bf16.gmra.mxu0 %v3452
        %v3563 = vpop.f32.mrf.mxu0
        %v3564 = vadd.f32 0.0, %v3563
        %v3565 = vpop.f32.mrf.mxu0
        %v3566 = vadd.f32 0.0, %v3565
        %3567 = vmatmul.bf16.gmra.mxu0 %v3455
        %v3568 = vpop.f32.mrf.mxu0
        %v3569 = vadd.f32 0.0, %v3568
        %v3570 = vpop.f32.mrf.mxu0
        %v3571 = vadd.f32 0.0, %v3570
        %3572 = vmatmul.bf16.gmra.mxu0 %v3458
        %v3573 = vpop.f32.mrf.mxu0
        %v3574 = vadd.f32 0.0, %v3573
        %v3575 = vpop.f32.mrf.mxu0
        %v3576 = vadd.f32 0.0, %v3575
        %3577 = vmatmul.bf16.gmra.mxu0 %v3461
        %v3578 = vpop.f32.mrf.mxu0
        %v3579 = vadd.f32 0.0, %v3578
        %v3580 = vpop.f32.mrf.mxu0
        %v3581 = vadd.f32 0.0, %v3580
        %3582 = vmatmul.bf16.gmra.mxu0 %v3464
        %v3583 = vpop.f32.mrf.mxu0
        %v3584 = vadd.f32 0.0, %v3583
        %v3585 = vpop.f32.mrf.mxu0
        %v3586 = vadd.f32 0.0, %v3585
        %3587 = vmatmul.bf16.gmra.mxu0 %v3467
        %v3588 = vpop.f32.mrf.mxu0
        %v3589 = vadd.f32 0.0, %v3588
        %v3590 = vpop.f32.mrf.mxu0
        %v3591 = vadd.f32 0.0, %v3590
        %3592 = vmatmul.bf16.gmra.mxu0 %v3470
        %v3593 = vpop.f32.mrf.mxu0
        %v3594 = vadd.f32 0.0, %v3593
        %v3595 = vpop.f32.mrf.mxu0
        %v3596 = vadd.f32 0.0, %v3595
        %3597 = vmatmul.bf16.gmra.mxu0 %v3473
        %v3598 = vpop.f32.mrf.mxu0
        %v3599 = vadd.f32 0.0, %v3598
        %v3600 = vpop.f32.mrf.mxu0
        %v3601 = vadd.f32 0.0, %v3600
        %3602 = vmatmul.bf16.gmra.mxu0 %v3476
        %v3603 = vpop.f32.mrf.mxu0
        %v3604 = vadd.f32 0.0, %v3603
        %v3605 = vpop.f32.mrf.mxu0
        %v3606 = vadd.f32 0.0, %v3605
        %3607 = vmatmul.bf16.gmra.mxu0 %v3479
        %v3608 = vpop.f32.mrf.mxu0
        %v3609 = vadd.f32 0.0, %v3608
        %v3610 = vpop.f32.mrf.mxu0
        %v3611 = vadd.f32 0.0, %v3610
        %3612 = vmatmul.bf16.gmra.mxu0 %v3482
        %v3613 = vpop.f32.mrf.mxu0
        %v3614 = vadd.f32 0.0, %v3613
        %v3615 = vpop.f32.mrf.mxu0
        %v3616 = vadd.f32 0.0, %v3615
        %3617 = vmatmul.bf16.gmra.mxu0 %v3485
        %v3618 = vpop.f32.mrf.mxu0
        %v3619 = vadd.f32 0.0, %v3618
        %v3620 = vpop.f32.mrf.mxu0
        %v3621 = vadd.f32 0.0, %v3620
        %3622 = vmatmul.bf16.gmra.mxu0 %v3488
        %v3623 = vpop.f32.mrf.mxu0
        %v3624 = vadd.f32 0.0, %v3623
        %v3625 = vpop.f32.mrf.mxu0
        %v3626 = vadd.f32 0.0, %v3625
        %3627 = vmatmul.bf16.gmra.mxu0 %v3491
        %v3628 = vpop.f32.mrf.mxu0
        %v3629 = vadd.f32 0.0, %v3628
        %v3630 = vpop.f32.mrf.mxu0
        %v3631 = vadd.f32 0.0, %v3630
        %3632 = vmatmul.bf16.gmra.mxu0 %v3494
        %v3633 = vpop.f32.mrf.mxu0
        %v3634 = vadd.f32 0.0, %v3633
        %v3635 = vpop.f32.mrf.mxu0
        %v3636 = vadd.f32 0.0, %v3635
        %3637 = vmatmul.bf16.gmra.mxu0 %v3497
        %v3638 = vpop.f32.mrf.mxu0
        %v3639 = vadd.f32 0.0, %v3638
        %v3640 = vpop.f32.mrf.mxu0
        %v3641 = vadd.f32 0.0, %v3640
        %3642 = vmatmul.bf16.gmra.mxu0 %v3500
        %v3643 = vpop.f32.mrf.mxu0
        %v3644 = vadd.f32 0.0, %v3643
        %v3645 = vpop.f32.mrf.mxu0
        %v3646 = vadd.f32 0.0, %v3645
        %3647 = vmatmul.bf16.gmra.mxu0 %v3503
        %v3648 = vpop.f32.mrf.mxu0
        %v3649 = vadd.f32 0.0, %v3648
        %v3650 = vpop.f32.mrf.mxu0
        %v3651 = vadd.f32 0.0, %v3650
        %3652 = vmatmul.bf16.gmra.mxu0 %v3506
        %v3653 = vpop.f32.mrf.mxu0
        %v3654 = vadd.f32 0.0, %v3653
        %v3655 = vpop.f32.mrf.mxu0
        %v3656 = vadd.f32 0.0, %v3655
        %3657 = vmatmul.bf16.gmra.mxu0 %v3509
        %v3658 = vpop.f32.mrf.mxu0
        %v3659 = vadd.f32 0.0, %v3658
        %v3660 = vpop.f32.mrf.mxu0
        %v3661 = vadd.f32 0.0, %v3660
        %3662 = vmatmul.bf16.gmra.mxu0 %v3512
        %v3663 = vpop.f32.mrf.mxu0
        %v3664 = vadd.f32 0.0, %v3663
        %v3665 = vpop.f32.mrf.mxu0
        %v3666 = vadd.f32 0.0, %v3665
        %3667 = vmatmul.bf16.gmra.mxu0 %v3515
        %v3668 = vpop.f32.mrf.mxu0
        %v3669 = vadd.f32 0.0, %v3668
        %v3670 = vpop.f32.mrf.mxu0
        %v3671 = vadd.f32 0.0, %v3670
        %3672 = vmatmul.bf16.gmra.mxu0 %v3518
        %v3673 = vpop.f32.mrf.mxu0
        %v3674 = vadd.f32 0.0, %v3673
        %v3675 = vpop.f32.mrf.mxu0
        %v3676 = vadd.f32 0.0, %v3675
        %3677 = vmatmul.bf16.gmra.mxu0 %v3521
        %v3678 = vpop.f32.mrf.mxu0
        %v3679 = vadd.f32 0.0, %v3678
        %v3680 = vpop.f32.mrf.mxu0
        %v3681 = vadd.f32 0.0, %v3680
        %3682 = vmatmul.bf16.gmra.mxu0 %v3524
        %v3683 = vpop.f32.mrf.mxu0
        %v3684 = vadd.f32 0.0, %v3683
        %v3685 = vpop.f32.mrf.mxu0
        %v3686 = vadd.f32 0.0, %v3685
        %3687 = vmatmul.bf16.gmra.mxu0 %v3527
        %v3688 = vpop.f32.mrf.mxu0
        %v3689 = vadd.f32 0.0, %v3688
        %v3690 = vpop.f32.mrf.mxu0
        %v3691 = vadd.f32 0.0, %v3690
        %3692 = vmatmul.bf16.gmra.mxu0 %v3530
        %v3693 = vpop.f32.mrf.mxu0
        %v3694 = vadd.f32 0.0, %v3693
        %v3695 = vpop.f32.mrf.mxu0
        %v3696 = vadd.f32 0.0, %v3695
        %3697 = vmatmul.bf16.gmra.mxu0 %v3533
        %v3698 = vpop.f32.mrf.mxu0
        %v3699 = vadd.f32 0.0, %v3698
        %v3700 = vpop.f32.mrf.mxu0
        %v3701 = vadd.f32 0.0, %v3700
        %3702 = vmatmul.bf16.gmra.mxu0 %v3536
        %v3703 = vpop.f32.mrf.mxu0
        %v3704 = vadd.f32 0.0, %v3703
        %v3705 = vpop.f32.mrf.mxu0
        %v3706 = vadd.f32 0.0, %v3705
        %3707 = vmatmul.bf16.gmra.mxu0 %v3539
        %v3708 = vpop.f32.mrf.mxu0
        %v3709 = vadd.f32 0.0, %v3708
        %v3710 = vpop.f32.mrf.mxu0
        %v3711 = vadd.f32 0.0, %v3710
        %3712 = vdwg.mxu0
        %v3713 = vadd.f32 %v3379, %v3554
        %v3714 = vadd.f32 %v3380, %v3556
        %v3715 = vadd.f32 %v3381, %v3559
        %v3716 = vadd.f32 %v3382, %v3561
        %v3717 = vadd.f32 %v3383, %v3564
        %v3718 = vadd.f32 %v3384, %v3566
        %v3719 = vadd.f32 %v3385, %v3569
        %v3720 = vadd.f32 %v3386, %v3571
        %v3721 = vadd.f32 %v3387, %v3574
        %v3722 = vadd.f32 %v3388, %v3576
        %v3723 = vadd.f32 %v3389, %v3579
        %v3724 = vadd.f32 %v3390, %v3581
        %v3725 = vadd.f32 %v3391, %v3584
        %v3726 = vadd.f32 %v3392, %v3586
        %v3727 = vadd.f32 %v3393, %v3589
        %v3728 = vadd.f32 %v3394, %v3591
        %v3729 = vadd.f32 %v3395, %v3594
        %v3730 = vadd.f32 %v3396, %v3596
        %v3731 = vadd.f32 %v3397, %v3599
        %v3732 = vadd.f32 %v3398, %v3601
        %v3733 = vadd.f32 %v3399, %v3604
        %v3734 = vadd.f32 %v3400, %v3606
        %v3735 = vadd.f32 %v3401, %v3609
        %v3736 = vadd.f32 %v3402, %v3611
        %v3737 = vadd.f32 %v3403, %v3614
        %v3738 = vadd.f32 %v3404, %v3616
        %v3739 = vadd.f32 %v3405, %v3619
        %v3740 = vadd.f32 %v3406, %v3621
        %v3741 = vadd.f32 %v3407, %v3624
        %v3742 = vadd.f32 %v3408, %v3626
        %v3743 = vadd.f32 %v3409, %v3629
        %v3744 = vadd.f32 %v3410, %v3631
        %v3745 = vadd.f32 %v3411, %v3634
        %v3746 = vadd.f32 %v3412, %v3636
        %v3747 = vadd.f32 %v3413, %v3639
        %v3748 = vadd.f32 %v3414, %v3641
        %v3749 = vadd.f32 %v3415, %v3644
        %v3750 = vadd.f32 %v3416, %v3646
        %v3751 = vadd.f32 %v3417, %v3649
        %v3752 = vadd.f32 %v3418, %v3651
        %v3753 = vadd.f32 %v3419, %v3654
        %v3754 = vadd.f32 %v3420, %v3656
        %v3755 = vadd.f32 %v3421, %v3659
        %v3756 = vadd.f32 %v3422, %v3661
        %v3757 = vadd.f32 %v3423, %v3664
        %v3758 = vadd.f32 %v3424, %v3666
        %v3759 = vadd.f32 %v3425, %v3669
        %v3760 = vadd.f32 %v3426, %v3671
        %v3761 = vadd.f32 %v3427, %v3674
        %v3762 = vadd.f32 %v3428, %v3676
        %v3763 = vadd.f32 %v3429, %v3679
        %v3764 = vadd.f32 %v3430, %v3681
        %v3765 = vadd.f32 %v3431, %v3684
        %v3766 = vadd.f32 %v3432, %v3686
        %v3767 = vadd.f32 %v3433, %v3689
        %v3768 = vadd.f32 %v3434, %v3691
        %v3769 = vadd.f32 %v3435, %v3694
        %v3770 = vadd.f32 %v3436, %v3696
        %v3771 = vadd.f32 %v3437, %v3699
        %v3772 = vadd.f32 %v3438, %v3701
        %v3773 = vadd.f32 %v3439, %v3704
        %v3774 = vadd.f32 %v3440, %v3706
        %v3775 = vadd.f32 %v3441, %v3709
        %v3776 = vadd.f32 %v3442, %v3711
        %3777 = vst [vmem:[#allocation3] sm:$0xff] %v3713
        %3778 = vst [vmem:[#allocation3 + $0x8] sm:$0xff] %v3714
        %3779 = vst [vmem:[#allocation3 + $0x10] sm:$0xff] %v3715
        %3780 = vst [vmem:[#allocation3 + $0x18] sm:$0xff] %v3716
        %3781 = vst [vmem:[#allocation3 + $0x20] sm:$0xff] %v3717
        %3782 = vst [vmem:[#allocation3 + $0x28] sm:$0xff] %v3718
        %3783 = vst [vmem:[#allocation3 + $0x30] sm:$0xff] %v3719
        %3784 = vst [vmem:[#allocation3 + $0x38] sm:$0xff] %v3720
        %3785 = vst [vmem:[#allocation3 + $0x40] sm:$0xff] %v3721
        %3786 = vst [vmem:[#allocation3 + $0x48] sm:$0xff] %v3722
        %3787 = vst [vmem:[#allocation3 + $0x50] sm:$0xff] %v3723
        %3788 = vst [vmem:[#allocation3 + $0x58] sm:$0xff] %v3724
        %3789 = vst [vmem:[#allocation3 + $0x60] sm:$0xff] %v3725
        %3790 = vst [vmem:[#allocation3 + $0x68] sm:$0xff] %v3726
        %3791 = vst [vmem:[#allocation3 + $0x70] sm:$0xff] %v3727
        %3792 = vst [vmem:[#allocation3 + $0x78] sm:$0xff] %v3728
        %3793 = vst [vmem:[#allocation3 + $0x80] sm:$0xff] %v3729
        %3794 = vst [vmem:[#allocation3 + $0x88] sm:$0xff] %v3730
        %3795 = vst [vmem:[#allocation3 + $0x90] sm:$0xff] %v3731
        %3796 = vst [vmem:[#allocation3 + $0x98] sm:$0xff] %v3732
        %3797 = vst [vmem:[#allocation3 + $0xa0] sm:$0xff] %v3733
        %3798 = vst [vmem:[#allocation3 + $0xa8] sm:$0xff] %v3734
        %3799 = vst [vmem:[#allocation3 + $0xb0] sm:$0xff] %v3735
        %3800 = vst [vmem:[#allocation3 + $0xb8] sm:$0xff] %v3736
        %3801 = vst [vmem:[#allocation3 + $0xc0] sm:$0xff] %v3737
        %3802 = vst [vmem:[#allocation3 + $0xc8] sm:$0xff] %v3738
        %3803 = vst [vmem:[#allocation3 + $0xd0] sm:$0xff] %v3739
        %3804 = vst [vmem:[#allocation3 + $0xd8] sm:$0xff] %v3740
        %3805 = vst [vmem:[#allocation3 + $0xe0] sm:$0xff] %v3741
        %3806 = vst [vmem:[#allocation3 + $0xe8] sm:$0xff] %v3742
        %3807 = vst [vmem:[#allocation3 + $0xf0] sm:$0xff] %v3743
        %3808 = vst [vmem:[#allocation3 + $0xf8] sm:$0xff] %v3744
        %3809 = vst [vmem:[#allocation3 + $0x100] sm:$0xff] %v3745
        %3810 = vst [vmem:[#allocation3 + $0x108] sm:$0xff] %v3746
        %3811 = vst [vmem:[#allocation3 + $0x110] sm:$0xff] %v3747
        %3812 = vst [vmem:[#allocation3 + $0x118] sm:$0xff] %v3748
        %3813 = vst [vmem:[#allocation3 + $0x120] sm:$0xff] %v3749
        %3814 = vst [vmem:[#allocation3 + $0x128] sm:$0xff] %v3750
        %3815 = vst [vmem:[#allocation3 + $0x130] sm:$0xff] %v3751
        %3816 = vst [vmem:[#allocation3 + $0x138] sm:$0xff] %v3752
        %3817 = vst [vmem:[#allocation3 + $0x140] sm:$0xff] %v3753
        %3818 = vst [vmem:[#allocation3 + $0x148] sm:$0xff] %v3754
        %3819 = vst [vmem:[#allocation3 + $0x150] sm:$0xff] %v3755
        %3820 = vst [vmem:[#allocation3 + $0x158] sm:$0xff] %v3756
        %3821 = vst [vmem:[#allocation3 + $0x160] sm:$0xff] %v3757
        %3822 = vst [vmem:[#allocation3 + $0x168] sm:$0xff] %v3758
        %3823 = vst [vmem:[#allocation3 + $0x170] sm:$0xff] %v3759
        %3824 = vst [vmem:[#allocation3 + $0x178] sm:$0xff] %v3760
        %3825 = vst [vmem:[#allocation3 + $0x180] sm:$0xff] %v3761
        %3826 = vst [vmem:[#allocation3 + $0x188] sm:$0xff] %v3762
        %3827 = vst [vmem:[#allocation3 + $0x190] sm:$0xff] %v3763
        %3828 = vst [vmem:[#allocation3 + $0x198] sm:$0xff] %v3764
        %3829 = vst [vmem:[#allocation3 + $0x1a0] sm:$0xff] %v3765
        %3830 = vst [vmem:[#allocation3 + $0x1a8] sm:$0xff] %v3766
        %3831 = vst [vmem:[#allocation3 + $0x1b0] sm:$0xff] %v3767
        %3832 = vst [vmem:[#allocation3 + $0x1b8] sm:$0xff] %v3768
        %3833 = vst [vmem:[#allocation3 + $0x1c0] sm:$0xff] %v3769
        %3834 = vst [vmem:[#allocation3 + $0x1c8] sm:$0xff] %v3770
        %3835 = vst [vmem:[#allocation3 + $0x1d0] sm:$0xff] %v3771
        %3836 = vst [vmem:[#allocation3 + $0x1d8] sm:$0xff] %v3772
        %3837 = vst [vmem:[#allocation3 + $0x1e0] sm:$0xff] %v3773
        %3838 = vst [vmem:[#allocation3 + $0x1e8] sm:$0xff] %v3774
        %3839 = vst [vmem:[#allocation3 + $0x1f0] sm:$0xff] %v3775
        %3840 = vst [vmem:[#allocation3 + $0x1f8] sm:$0xff] %v3776
        %v3841 = vld [vmem:[#allocation2 + $0x24] sm:$0xff]
        %v3842 = vld [vmem:[#allocation2 + $0x2c] sm:$0xff]
        %v3843 = vld [vmem:[#allocation2 + $0x34] sm:$0xff]
        %v3844 = vld [vmem:[#allocation2 + $0x3c] sm:$0xff]
        %v3845 = vld [vmem:[#allocation2 + $0x44] sm:$0xff]
        %v3846 = vld [vmem:[#allocation2 + $0x4c] sm:$0xff]
        %v3847 = vld [vmem:[#allocation2 + $0x54] sm:$0xff]
        %v3848 = vld [vmem:[#allocation2 + $0x5c] sm:$0xff]
        %v3849 = vld [vmem:[#allocation2 + $0x64] sm:$0xff]
        %v3850 = vld [vmem:[#allocation2 + $0x6c] sm:$0xff]
        %v3851 = vld [vmem:[#allocation2 + $0x74] sm:$0xff]
        %v3852 = vld [vmem:[#allocation2 + $0x7c] sm:$0xff]
        %v3853 = vld [vmem:[#allocation2 + $0x84] sm:$0xff]
        %v3854 = vld [vmem:[#allocation2 + $0x8c] sm:$0xff]
        %v3855 = vld [vmem:[#allocation2 + $0x94] sm:$0xff]
        %v3856 = vld [vmem:[#allocation2 + $0x9c] sm:$0xff]
        %v3857 = vld [vmem:[#allocation2 + $0xa4] sm:$0xff]
        %v3858 = vld [vmem:[#allocation2 + $0xac] sm:$0xff]
        %v3859 = vld [vmem:[#allocation2 + $0xb4] sm:$0xff]
        %v3860 = vld [vmem:[#allocation2 + $0xbc] sm:$0xff]
        %v3861 = vld [vmem:[#allocation2 + $0xc4] sm:$0xff]
        %v3862 = vld [vmem:[#allocation2 + $0xcc] sm:$0xff]
        %v3863 = vld [vmem:[#allocation2 + $0xd4] sm:$0xff]
        %v3864 = vld [vmem:[#allocation2 + $0xdc] sm:$0xff]
        %v3865 = vld [vmem:[#allocation2 + $0xe4] sm:$0xff]
        %v3866 = vld [vmem:[#allocation2 + $0xec] sm:$0xff]
        %v3867 = vld [vmem:[#allocation2 + $0xf4] sm:$0xff]
        %v3868 = vld [vmem:[#allocation2 + $0xfc] sm:$0xff]
        %v3869 = vld [vmem:[#allocation2 + $0x104] sm:$0xff]
        %v3870 = vld [vmem:[#allocation2 + $0x10c] sm:$0xff]
        %v3871 = vld [vmem:[#allocation2 + $0x114] sm:$0xff]
        %v3872 = vld [vmem:[#allocation2 + $0x11c] sm:$0xff]
        %v3873 = vld [vmem:[#allocation2 + $0x124] sm:$0xff]
        %v3874 = vld [vmem:[#allocation2 + $0x12c] sm:$0xff]
        %v3875 = vld [vmem:[#allocation2 + $0x134] sm:$0xff]
        %v3876 = vld [vmem:[#allocation2 + $0x13c] sm:$0xff]
        %v3877 = vld [vmem:[#allocation2 + $0x144] sm:$0xff]
        %v3878 = vld [vmem:[#allocation2 + $0x14c] sm:$0xff]
        %v3879 = vld [vmem:[#allocation2 + $0x154] sm:$0xff]
        %v3880 = vld [vmem:[#allocation2 + $0x15c] sm:$0xff]
        %v3881 = vld [vmem:[#allocation2 + $0x164] sm:$0xff]
        %v3882 = vld [vmem:[#allocation2 + $0x16c] sm:$0xff]
        %v3883 = vld [vmem:[#allocation2 + $0x174] sm:$0xff]
        %v3884 = vld [vmem:[#allocation2 + $0x17c] sm:$0xff]
        %v3885 = vld [vmem:[#allocation2 + $0x184] sm:$0xff]
        %v3886 = vld [vmem:[#allocation2 + $0x18c] sm:$0xff]
        %v3887 = vld [vmem:[#allocation2 + $0x194] sm:$0xff]
        %v3888 = vld [vmem:[#allocation2 + $0x19c] sm:$0xff]
        %v3889 = vld [vmem:[#allocation2 + $0x1a4] sm:$0xff]
        %v3890 = vld [vmem:[#allocation2 + $0x1ac] sm:$0xff]
        %v3891 = vld [vmem:[#allocation2 + $0x1b4] sm:$0xff]
        %v3892 = vld [vmem:[#allocation2 + $0x1bc] sm:$0xff]
        %v3893 = vld [vmem:[#allocation2 + $0x1c4] sm:$0xff]
        %v3894 = vld [vmem:[#allocation2 + $0x1cc] sm:$0xff]
        %v3895 = vld [vmem:[#allocation2 + $0x1d4] sm:$0xff]
        %v3896 = vld [vmem:[#allocation2 + $0x1dc] sm:$0xff]
        %v3897 = vld [vmem:[#allocation2 + $0x1e4] sm:$0xff]
        %v3898 = vld [vmem:[#allocation2 + $0x1ec] sm:$0xff]
        %v3899 = vld [vmem:[#allocation2 + $0x1f4] sm:$0xff]
        %v3900 = vld [vmem:[#allocation2 + $0x1fc] sm:$0xff]
        %v3901 = vld [vmem:[#allocation2 + $0x204] sm:$0xff]
        %v3902 = vld [vmem:[#allocation2 + $0x20c] sm:$0xff]
        %v3903 = vld [vmem:[#allocation2 + $0x214] sm:$0xff]
        %v3904 = vld [vmem:[#allocation2 + $0x21c] sm:$0xff]
        %v3905 = vpack.c.bf16 %v3842, %v3841
        %v3906 = vpack.c.bf16 %v3844, %v3843
        %v3907 = vpack.c.bf16 %v3846, %v3845
        %v3908 = vpack.c.bf16 %v3848, %v3847
        %v3909 = vpack.c.bf16 %v3850, %v3849
        %v3910 = vpack.c.bf16 %v3852, %v3851
        %v3911 = vpack.c.bf16 %v3854, %v3853
        %v3912 = vpack.c.bf16 %v3856, %v3855
        %v3913 = vpack.c.bf16 %v3858, %v3857
        %v3914 = vpack.c.bf16 %v3860, %v3859
        %v3915 = vpack.c.bf16 %v3862, %v3861
        %v3916 = vpack.c.bf16 %v3864, %v3863
        %v3917 = vpack.c.bf16 %v3866, %v3865
        %v3918 = vpack.c.bf16 %v3868, %v3867
        %v3919 = vpack.c.bf16 %v3870, %v3869
        %v3920 = vpack.c.bf16 %v3872, %v3871
        %v3921 = vpack.c.bf16 %v3874, %v3873
        %v3922 = vpack.c.bf16 %v3876, %v3875
        %v3923 = vpack.c.bf16 %v3878, %v3877
        %v3924 = vpack.c.bf16 %v3880, %v3879
        %v3925 = vpack.c.bf16 %v3882, %v3881
        %v3926 = vpack.c.bf16 %v3884, %v3883
        %v3927 = vpack.c.bf16 %v3886, %v3885
        %v3928 = vpack.c.bf16 %v3888, %v3887
        %v3929 = vpack.c.bf16 %v3890, %v3889
        %v3930 = vpack.c.bf16 %v3892, %v3891
        %v3931 = vpack.c.bf16 %v3894, %v3893
        %v3932 = vpack.c.bf16 %v3896, %v3895
        %v3933 = vpack.c.bf16 %v3898, %v3897
        %v3934 = vpack.c.bf16 %v3900, %v3899
        %v3935 = vpack.c.bf16 %v3902, %v3901
        %v3936 = vpack.c.bf16 %v3904, %v3903
        %v3937 = vld [vmem:[#allocation3] sm:$0xff]
        %v3938 = vld [vmem:[#allocation3 + $0x8] sm:$0xff]
        %v3939 = vld [vmem:[#allocation3 + $0x10] sm:$0xff]
        %v3940 = vld [vmem:[#allocation3 + $0x18] sm:$0xff]
        %v3941 = vld [vmem:[#allocation3 + $0x20] sm:$0xff]
        %v3942 = vld [vmem:[#allocation3 + $0x28] sm:$0xff]
        %v3943 = vld [vmem:[#allocation3 + $0x30] sm:$0xff]
        %v3944 = vld [vmem:[#allocation3 + $0x38] sm:$0xff]
        %v3945 = vld [vmem:[#allocation3 + $0x40] sm:$0xff]
        %v3946 = vld [vmem:[#allocation3 + $0x48] sm:$0xff]
        %v3947 = vld [vmem:[#allocation3 + $0x50] sm:$0xff]
        %v3948 = vld [vmem:[#allocation3 + $0x58] sm:$0xff]
        %v3949 = vld [vmem:[#allocation3 + $0x60] sm:$0xff]
        %v3950 = vld [vmem:[#allocation3 + $0x68] sm:$0xff]
        %v3951 = vld [vmem:[#allocation3 + $0x70] sm:$0xff]
        %v3952 = vld [vmem:[#allocation3 + $0x78] sm:$0xff]
        %v3953 = vld [vmem:[#allocation3 + $0x80] sm:$0xff]
        %v3954 = vld [vmem:[#allocation3 + $0x88] sm:$0xff]
        %v3955 = vld [vmem:[#allocation3 + $0x90] sm:$0xff]
        %v3956 = vld [vmem:[#allocation3 + $0x98] sm:$0xff]
        %v3957 = vld [vmem:[#allocation3 + $0xa0] sm:$0xff]
        %v3958 = vld [vmem:[#allocation3 + $0xa8] sm:$0xff]
        %v3959 = vld [vmem:[#allocation3 + $0xb0] sm:$0xff]
        %v3960 = vld [vmem:[#allocation3 + $0xb8] sm:$0xff]
        %v3961 = vld [vmem:[#allocation3 + $0xc0] sm:$0xff]
        %v3962 = vld [vmem:[#allocation3 + $0xc8] sm:$0xff]
        %v3963 = vld [vmem:[#allocation3 + $0xd0] sm:$0xff]
        %v3964 = vld [vmem:[#allocation3 + $0xd8] sm:$0xff]
        %v3965 = vld [vmem:[#allocation3 + $0xe0] sm:$0xff]
        %v3966 = vld [vmem:[#allocation3 + $0xe8] sm:$0xff]
        %v3967 = vld [vmem:[#allocation3 + $0xf0] sm:$0xff]
        %v3968 = vld [vmem:[#allocation3 + $0xf8] sm:$0xff]
        %v3969 = vld [vmem:[#allocation3 + $0x100] sm:$0xff]
        %v3970 = vld [vmem:[#allocation3 + $0x108] sm:$0xff]
        %v3971 = vld [vmem:[#allocation3 + $0x110] sm:$0xff]
        %v3972 = vld [vmem:[#allocation3 + $0x118] sm:$0xff]
        %v3973 = vld [vmem:[#allocation3 + $0x120] sm:$0xff]
        %v3974 = vld [vmem:[#allocation3 + $0x128] sm:$0xff]
        %v3975 = vld [vmem:[#allocation3 + $0x130] sm:$0xff]
        %v3976 = vld [vmem:[#allocation3 + $0x138] sm:$0xff]
        %v3977 = vld [vmem:[#allocation3 + $0x140] sm:$0xff]
        %v3978 = vld [vmem:[#allocation3 + $0x148] sm:$0xff]
        %v3979 = vld [vmem:[#allocation3 + $0x150] sm:$0xff]
        %v3980 = vld [vmem:[#allocation3 + $0x158] sm:$0xff]
        %v3981 = vld [vmem:[#allocation3 + $0x160] sm:$0xff]
        %v3982 = vld [vmem:[#allocation3 + $0x168] sm:$0xff]
        %v3983 = vld [vmem:[#allocation3 + $0x170] sm:$0xff]
        %v3984 = vld [vmem:[#allocation3 + $0x178] sm:$0xff]
        %v3985 = vld [vmem:[#allocation3 + $0x180] sm:$0xff]
        %v3986 = vld [vmem:[#allocation3 + $0x188] sm:$0xff]
        %v3987 = vld [vmem:[#allocation3 + $0x190] sm:$0xff]
        %v3988 = vld [vmem:[#allocation3 + $0x198] sm:$0xff]
        %v3989 = vld [vmem:[#allocation3 + $0x1a0] sm:$0xff]
        %v3990 = vld [vmem:[#allocation3 + $0x1a8] sm:$0xff]
        %v3991 = vld [vmem:[#allocation3 + $0x1b0] sm:$0xff]
        %v3992 = vld [vmem:[#allocation3 + $0x1b8] sm:$0xff]
        %v3993 = vld [vmem:[#allocation3 + $0x1c0] sm:$0xff]
        %v3994 = vld [vmem:[#allocation3 + $0x1c8] sm:$0xff]
        %v3995 = vld [vmem:[#allocation3 + $0x1d0] sm:$0xff]
        %v3996 = vld [vmem:[#allocation3 + $0x1d8] sm:$0xff]
        %v3997 = vld [vmem:[#allocation3 + $0x1e0] sm:$0xff]
        %v3998 = vld [vmem:[#allocation3 + $0x1e8] sm:$0xff]
        %v3999 = vld [vmem:[#allocation3 + $0x1f0] sm:$0xff]
        %v4000 = vld [vmem:[#allocation3 + $0x1f8] sm:$0xff]
        %s4001 = scalar_lea.vmem %s2, 12
        %v4002 = vld [vmem:[%s4001] sm:$0x3]
        %v4004 = vsel %vm348, %v3905, 0
        %v4007 = vsel %vm348, %v3906, 0
        %v4010 = vsel %vm348, %v3907, 0
        %v4013 = vsel %vm348, %v3908, 0
        %v4016 = vsel %vm348, %v3909, 0
        %v4019 = vsel %vm348, %v3910, 0
        %v4022 = vsel %vm348, %v3911, 0
        %v4025 = vsel %vm348, %v3912, 0
        %v4028 = vsel %vm348, %v3913, 0
        %v4031 = vsel %vm348, %v3914, 0
        %v4034 = vsel %vm348, %v3915, 0
        %v4037 = vsel %vm348, %v3916, 0
        %v4040 = vsel %vm348, %v3917, 0
        %v4043 = vsel %vm348, %v3918, 0
        %v4046 = vsel %vm348, %v3919, 0
        %v4049 = vsel %vm348, %v3920, 0
        %v4052 = vsel %vm348, %v3921, 0
        %v4055 = vsel %vm348, %v3922, 0
        %v4058 = vsel %vm348, %v3923, 0
        %v4061 = vsel %vm348, %v3924, 0
        %v4064 = vsel %vm348, %v3925, 0
        %v4067 = vsel %vm348, %v3926, 0
        %v4070 = vsel %vm348, %v3927, 0
        %v4073 = vsel %vm348, %v3928, 0
        %v4076 = vsel %vm348, %v3929, 0
        %v4079 = vsel %vm348, %v3930, 0
        %v4082 = vsel %vm348, %v3931, 0
        %v4085 = vsel %vm348, %v3932, 0
        %v4088 = vsel %vm348, %v3933, 0
        %v4091 = vsel %vm348, %v3934, 0
        %v4094 = vsel %vm348, %v3935, 0
        %v4097 = vsel %vm348, %v3936, 0
        %v4100 = vsel %vm750, %v4002, 0
        %4102 = vmatpush.bf16.msra.mxu0 0
        %4103 = vmatpush.bf16.msra.mxu0 0
        %4104 = vmatpush.bf16.msra.mxu0 0
        %4105 = vmatpush.bf16.msra.mxu0 0
        %4106 = vmatpush.bf16.msra.mxu0 0
        %4107 = vmatpush.bf16.msra.mxu0 0
        %4108 = vmatpush.bf16.msra.mxu0 0
        %4109 = vmatpush.bf16.msra.mxu0 %v4100
        %4110 = vmatmul.bf16.gmra.mxu0 %v4004
        %v4111 = vpop.f32.mrf.mxu0
        %v4112 = vadd.f32 0.0, %v4111
        %v4113 = vpop.f32.mrf.mxu0
        %v4114 = vadd.f32 0.0, %v4113
        %4115 = vmatmul.bf16.gmra.mxu0 %v4007
        %v4116 = vpop.f32.mrf.mxu0
        %v4117 = vadd.f32 0.0, %v4116
        %v4118 = vpop.f32.mrf.mxu0
        %v4119 = vadd.f32 0.0, %v4118
        %4120 = vmatmul.bf16.gmra.mxu0 %v4010
        %v4121 = vpop.f32.mrf.mxu0
        %v4122 = vadd.f32 0.0, %v4121
        %v4123 = vpop.f32.mrf.mxu0
        %v4124 = vadd.f32 0.0, %v4123
        %4125 = vmatmul.bf16.gmra.mxu0 %v4013
        %v4126 = vpop.f32.mrf.mxu0
        %v4127 = vadd.f32 0.0, %v4126
        %v4128 = vpop.f32.mrf.mxu0
        %v4129 = vadd.f32 0.0, %v4128
        %4130 = vmatmul.bf16.gmra.mxu0 %v4016
        %v4131 = vpop.f32.mrf.mxu0
        %v4132 = vadd.f32 0.0, %v4131
        %v4133 = vpop.f32.mrf.mxu0
        %v4134 = vadd.f32 0.0, %v4133
        %4135 = vmatmul.bf16.gmra.mxu0 %v4019
        %v4136 = vpop.f32.mrf.mxu0
        %v4137 = vadd.f32 0.0, %v4136
        %v4138 = vpop.f32.mrf.mxu0
        %v4139 = vadd.f32 0.0, %v4138
        %4140 = vmatmul.bf16.gmra.mxu0 %v4022
        %v4141 = vpop.f32.mrf.mxu0
        %v4142 = vadd.f32 0.0, %v4141
        %v4143 = vpop.f32.mrf.mxu0
        %v4144 = vadd.f32 0.0, %v4143
        %4145 = vmatmul.bf16.gmra.mxu0 %v4025
        %v4146 = vpop.f32.mrf.mxu0
        %v4147 = vadd.f32 0.0, %v4146
        %v4148 = vpop.f32.mrf.mxu0
        %v4149 = vadd.f32 0.0, %v4148
        %4150 = vmatmul.bf16.gmra.mxu0 %v4028
        %v4151 = vpop.f32.mrf.mxu0
        %v4152 = vadd.f32 0.0, %v4151
        %v4153 = vpop.f32.mrf.mxu0
        %v4154 = vadd.f32 0.0, %v4153
        %4155 = vmatmul.bf16.gmra.mxu0 %v4031
        %v4156 = vpop.f32.mrf.mxu0
        %v4157 = vadd.f32 0.0, %v4156
        %v4158 = vpop.f32.mrf.mxu0
        %v4159 = vadd.f32 0.0, %v4158
        %4160 = vmatmul.bf16.gmra.mxu0 %v4034
        %v4161 = vpop.f32.mrf.mxu0
        %v4162 = vadd.f32 0.0, %v4161
        %v4163 = vpop.f32.mrf.mxu0
        %v4164 = vadd.f32 0.0, %v4163
        %4165 = vmatmul.bf16.gmra.mxu0 %v4037
        %v4166 = vpop.f32.mrf.mxu0
        %v4167 = vadd.f32 0.0, %v4166
        %v4168 = vpop.f32.mrf.mxu0
        %v4169 = vadd.f32 0.0, %v4168
        %4170 = vmatmul.bf16.gmra.mxu0 %v4040
        %v4171 = vpop.f32.mrf.mxu0
        %v4172 = vadd.f32 0.0, %v4171
        %v4173 = vpop.f32.mrf.mxu0
        %v4174 = vadd.f32 0.0, %v4173
        %4175 = vmatmul.bf16.gmra.mxu0 %v4043
        %v4176 = vpop.f32.mrf.mxu0
        %v4177 = vadd.f32 0.0, %v4176
        %v4178 = vpop.f32.mrf.mxu0
        %v4179 = vadd.f32 0.0, %v4178
        %4180 = vmatmul.bf16.gmra.mxu0 %v4046
        %v4181 = vpop.f32.mrf.mxu0
        %v4182 = vadd.f32 0.0, %v4181
        %v4183 = vpop.f32.mrf.mxu0
        %v4184 = vadd.f32 0.0, %v4183
        %4185 = vmatmul.bf16.gmra.mxu0 %v4049
        %v4186 = vpop.f32.mrf.mxu0
        %v4187 = vadd.f32 0.0, %v4186
        %v4188 = vpop.f32.mrf.mxu0
        %v4189 = vadd.f32 0.0, %v4188
        %4190 = vmatmul.bf16.gmra.mxu0 %v4052
        %v4191 = vpop.f32.mrf.mxu0
        %v4192 = vadd.f32 0.0, %v4191
        %v4193 = vpop.f32.mrf.mxu0
        %v4194 = vadd.f32 0.0, %v4193
        %4195 = vmatmul.bf16.gmra.mxu0 %v4055
        %v4196 = vpop.f32.mrf.mxu0
        %v4197 = vadd.f32 0.0, %v4196
        %v4198 = vpop.f32.mrf.mxu0
        %v4199 = vadd.f32 0.0, %v4198
        %4200 = vmatmul.bf16.gmra.mxu0 %v4058
        %v4201 = vpop.f32.mrf.mxu0
        %v4202 = vadd.f32 0.0, %v4201
        %v4203 = vpop.f32.mrf.mxu0
        %v4204 = vadd.f32 0.0, %v4203
        %4205 = vmatmul.bf16.gmra.mxu0 %v4061
        %v4206 = vpop.f32.mrf.mxu0
        %v4207 = vadd.f32 0.0, %v4206
        %v4208 = vpop.f32.mrf.mxu0
        %v4209 = vadd.f32 0.0, %v4208
        %4210 = vmatmul.bf16.gmra.mxu0 %v4064
        %v4211 = vpop.f32.mrf.mxu0
        %v4212 = vadd.f32 0.0, %v4211
        %v4213 = vpop.f32.mrf.mxu0
        %v4214 = vadd.f32 0.0, %v4213
        %4215 = vmatmul.bf16.gmra.mxu0 %v4067
        %v4216 = vpop.f32.mrf.mxu0
        %v4217 = vadd.f32 0.0, %v4216
        %v4218 = vpop.f32.mrf.mxu0
        %v4219 = vadd.f32 0.0, %v4218
        %4220 = vmatmul.bf16.gmra.mxu0 %v4070
        %v4221 = vpop.f32.mrf.mxu0
        %v4222 = vadd.f32 0.0, %v4221
        %v4223 = vpop.f32.mrf.mxu0
        %v4224 = vadd.f32 0.0, %v4223
        %4225 = vmatmul.bf16.gmra.mxu0 %v4073
        %v4226 = vpop.f32.mrf.mxu0
        %v4227 = vadd.f32 0.0, %v4226
        %v4228 = vpop.f32.mrf.mxu0
        %v4229 = vadd.f32 0.0, %v4228
        %4230 = vmatmul.bf16.gmra.mxu0 %v4076
        %v4231 = vpop.f32.mrf.mxu0
        %v4232 = vadd.f32 0.0, %v4231
        %v4233 = vpop.f32.mrf.mxu0
        %v4234 = vadd.f32 0.0, %v4233
        %4235 = vmatmul.bf16.gmra.mxu0 %v4079
        %v4236 = vpop.f32.mrf.mxu0
        %v4237 = vadd.f32 0.0, %v4236
        %v4238 = vpop.f32.mrf.mxu0
        %v4239 = vadd.f32 0.0, %v4238
        %4240 = vmatmul.bf16.gmra.mxu0 %v4082
        %v4241 = vpop.f32.mrf.mxu0
        %v4242 = vadd.f32 0.0, %v4241
        %v4243 = vpop.f32.mrf.mxu0
        %v4244 = vadd.f32 0.0, %v4243
        %4245 = vmatmul.bf16.gmra.mxu0 %v4085
        %v4246 = vpop.f32.mrf.mxu0
        %v4247 = vadd.f32 0.0, %v4246
        %v4248 = vpop.f32.mrf.mxu0
        %v4249 = vadd.f32 0.0, %v4248
        %4250 = vmatmul.bf16.gmra.mxu0 %v4088
        %v4251 = vpop.f32.mrf.mxu0
        %v4252 = vadd.f32 0.0, %v4251
        %v4253 = vpop.f32.mrf.mxu0
        %v4254 = vadd.f32 0.0, %v4253
        %4255 = vmatmul.bf16.gmra.mxu0 %v4091
        %v4256 = vpop.f32.mrf.mxu0
        %v4257 = vadd.f32 0.0, %v4256
        %v4258 = vpop.f32.mrf.mxu0
        %v4259 = vadd.f32 0.0, %v4258
        %4260 = vmatmul.bf16.gmra.mxu0 %v4094
        %v4261 = vpop.f32.mrf.mxu0
        %v4262 = vadd.f32 0.0, %v4261
        %v4263 = vpop.f32.mrf.mxu0
        %v4264 = vadd.f32 0.0, %v4263
        %4265 = vmatmul.bf16.gmra.mxu0 %v4097
        %v4266 = vpop.f32.mrf.mxu0
        %v4267 = vadd.f32 0.0, %v4266
        %v4268 = vpop.f32.mrf.mxu0
        %v4269 = vadd.f32 0.0, %v4268
        %4270 = vdwg.mxu0
        %v4271 = vadd.f32 %v3937, %v4112
        %v4272 = vadd.f32 %v3938, %v4114
        %v4273 = vadd.f32 %v3939, %v4117
        %v4274 = vadd.f32 %v3940, %v4119
        %v4275 = vadd.f32 %v3941, %v4122
        %v4276 = vadd.f32 %v3942, %v4124
        %v4277 = vadd.f32 %v3943, %v4127
        %v4278 = vadd.f32 %v3944, %v4129
        %v4279 = vadd.f32 %v3945, %v4132
        %v4280 = vadd.f32 %v3946, %v4134
        %v4281 = vadd.f32 %v3947, %v4137
        %v4282 = vadd.f32 %v3948, %v4139
        %v4283 = vadd.f32 %v3949, %v4142
        %v4284 = vadd.f32 %v3950, %v4144
        %v4285 = vadd.f32 %v3951, %v4147
        %v4286 = vadd.f32 %v3952, %v4149
        %v4287 = vadd.f32 %v3953, %v4152
        %v4288 = vadd.f32 %v3954, %v4154
        %v4289 = vadd.f32 %v3955, %v4157
        %v4290 = vadd.f32 %v3956, %v4159
        %v4291 = vadd.f32 %v3957, %v4162
        %v4292 = vadd.f32 %v3958, %v4164
        %v4293 = vadd.f32 %v3959, %v4167
        %v4294 = vadd.f32 %v3960, %v4169
        %v4295 = vadd.f32 %v3961, %v4172
        %v4296 = vadd.f32 %v3962, %v4174
        %v4297 = vadd.f32 %v3963, %v4177
        %v4298 = vadd.f32 %v3964, %v4179
        %v4299 = vadd.f32 %v3965, %v4182
        %v4300 = vadd.f32 %v3966, %v4184
        %v4301 = vadd.f32 %v3967, %v4187
        %v4302 = vadd.f32 %v3968, %v4189
        %v4303 = vadd.f32 %v3969, %v4192
        %v4304 = vadd.f32 %v3970, %v4194
        %v4305 = vadd.f32 %v3971, %v4197
        %v4306 = vadd.f32 %v3972, %v4199
        %v4307 = vadd.f32 %v3973, %v4202
        %v4308 = vadd.f32 %v3974, %v4204
        %v4309 = vadd.f32 %v3975, %v4207
        %v4310 = vadd.f32 %v3976, %v4209
        %v4311 = vadd.f32 %v3977, %v4212
        %v4312 = vadd.f32 %v3978, %v4214
        %v4313 = vadd.f32 %v3979, %v4217
        %v4314 = vadd.f32 %v3980, %v4219
        %v4315 = vadd.f32 %v3981, %v4222
        %v4316 = vadd.f32 %v3982, %v4224
        %v4317 = vadd.f32 %v3983, %v4227
        %v4318 = vadd.f32 %v3984, %v4229
        %v4319 = vadd.f32 %v3985, %v4232
        %v4320 = vadd.f32 %v3986, %v4234
        %v4321 = vadd.f32 %v3987, %v4237
        %v4322 = vadd.f32 %v3988, %v4239
        %v4323 = vadd.f32 %v3989, %v4242
        %v4324 = vadd.f32 %v3990, %v4244
        %v4325 = vadd.f32 %v3991, %v4247
        %v4326 = vadd.f32 %v3992, %v4249
        %v4327 = vadd.f32 %v3993, %v4252
        %v4328 = vadd.f32 %v3994, %v4254
        %v4329 = vadd.f32 %v3995, %v4257
        %v4330 = vadd.f32 %v3996, %v4259
        %v4331 = vadd.f32 %v3997, %v4262
        %v4332 = vadd.f32 %v3998, %v4264
        %v4333 = vadd.f32 %v3999, %v4267
        %v4334 = vadd.f32 %v4000, %v4269
        %4335 = vst [vmem:[#allocation3] sm:$0xff] %v4271
        %4336 = vst [vmem:[#allocation3 + $0x8] sm:$0xff] %v4272
        %4337 = vst [vmem:[#allocation3 + $0x10] sm:$0xff] %v4273
        %4338 = vst [vmem:[#allocation3 + $0x18] sm:$0xff] %v4274
        %4339 = vst [vmem:[#allocation3 + $0x20] sm:$0xff] %v4275
        %4340 = vst [vmem:[#allocation3 + $0x28] sm:$0xff] %v4276
        %4341 = vst [vmem:[#allocation3 + $0x30] sm:$0xff] %v4277
        %4342 = vst [vmem:[#allocation3 + $0x38] sm:$0xff] %v4278
        %4343 = vst [vmem:[#allocation3 + $0x40] sm:$0xff] %v4279
        %4344 = vst [vmem:[#allocation3 + $0x48] sm:$0xff] %v4280
        %4345 = vst [vmem:[#allocation3 + $0x50] sm:$0xff] %v4281
        %4346 = vst [vmem:[#allocation3 + $0x58] sm:$0xff] %v4282
        %4347 = vst [vmem:[#allocation3 + $0x60] sm:$0xff] %v4283
        %4348 = vst [vmem:[#allocation3 + $0x68] sm:$0xff] %v4284
        %4349 = vst [vmem:[#allocation3 + $0x70] sm:$0xff] %v4285
        %4350 = vst [vmem:[#allocation3 + $0x78] sm:$0xff] %v4286
        %4351 = vst [vmem:[#allocation3 + $0x80] sm:$0xff] %v4287
        %4352 = vst [vmem:[#allocation3 + $0x88] sm:$0xff] %v4288
        %4353 = vst [vmem:[#allocation3 + $0x90] sm:$0xff] %v4289
        %4354 = vst [vmem:[#allocation3 + $0x98] sm:$0xff] %v4290
        %4355 = vst [vmem:[#allocation3 + $0xa0] sm:$0xff] %v4291
        %4356 = vst [vmem:[#allocation3 + $0xa8] sm:$0xff] %v4292
        %4357 = vst [vmem:[#allocation3 + $0xb0] sm:$0xff] %v4293
        %4358 = vst [vmem:[#allocation3 + $0xb8] sm:$0xff] %v4294
        %4359 = vst [vmem:[#allocation3 + $0xc0] sm:$0xff] %v4295
        %4360 = vst [vmem:[#allocation3 + $0xc8] sm:$0xff] %v4296
        %4361 = vst [vmem:[#allocation3 + $0xd0] sm:$0xff] %v4297
        %4362 = vst [vmem:[#allocation3 + $0xd8] sm:$0xff] %v4298
        %4363 = vst [vmem:[#allocation3 + $0xe0] sm:$0xff] %v4299
        %4364 = vst [vmem:[#allocation3 + $0xe8] sm:$0xff] %v4300
        %4365 = vst [vmem:[#allocation3 + $0xf0] sm:$0xff] %v4301
        %4366 = vst [vmem:[#allocation3 + $0xf8] sm:$0xff] %v4302
        %4367 = vst [vmem:[#allocation3 + $0x100] sm:$0xff] %v4303
        %4368 = vst [vmem:[#allocation3 + $0x108] sm:$0xff] %v4304
        %4369 = vst [vmem:[#allocation3 + $0x110] sm:$0xff] %v4305
        %4370 = vst [vmem:[#allocation3 + $0x118] sm:$0xff] %v4306
        %4371 = vst [vmem:[#allocation3 + $0x120] sm:$0xff] %v4307
        %4372 = vst [vmem:[#allocation3 + $0x128] sm:$0xff] %v4308
        %4373 = vst [vmem:[#allocation3 + $0x130] sm:$0xff] %v4309
        %4374 = vst [vmem:[#allocation3 + $0x138] sm:$0xff] %v4310
        %4375 = vst [vmem:[#allocation3 + $0x140] sm:$0xff] %v4311
        %4376 = vst [vmem:[#allocation3 + $0x148] sm:$0xff] %v4312
        %4377 = vst [vmem:[#allocation3 + $0x150] sm:$0xff] %v4313
        %4378 = vst [vmem:[#allocation3 + $0x158] sm:$0xff] %v4314
        %4379 = vst [vmem:[#allocation3 + $0x160] sm:$0xff] %v4315
        %4380 = vst [vmem:[#allocation3 + $0x168] sm:$0xff] %v4316
        %4381 = vst [vmem:[#allocation3 + $0x170] sm:$0xff] %v4317
        %4382 = vst [vmem:[#allocation3 + $0x178] sm:$0xff] %v4318
        %4383 = vst [vmem:[#allocation3 + $0x180] sm:$0xff] %v4319
        %4384 = vst [vmem:[#allocation3 + $0x188] sm:$0xff] %v4320
        %4385 = vst [vmem:[#allocation3 + $0x190] sm:$0xff] %v4321
        %4386 = vst [vmem:[#allocation3 + $0x198] sm:$0xff] %v4322
        %4387 = vst [vmem:[#allocation3 + $0x1a0] sm:$0xff] %v4323
        %4388 = vst [vmem:[#allocation3 + $0x1a8] sm:$0xff] %v4324
        %4389 = vst [vmem:[#allocation3 + $0x1b0] sm:$0xff] %v4325
        %4390 = vst [vmem:[#allocation3 + $0x1b8] sm:$0xff] %v4326
        %4391 = vst [vmem:[#allocation3 + $0x1c0] sm:$0xff] %v4327
        %4392 = vst [vmem:[#allocation3 + $0x1c8] sm:$0xff] %v4328
        %4393 = vst [vmem:[#allocation3 + $0x1d0] sm:$0xff] %v4329
        %4394 = vst [vmem:[#allocation3 + $0x1d8] sm:$0xff] %v4330
        %4395 = vst [vmem:[#allocation3 + $0x1e0] sm:$0xff] %v4331
        %4396 = vst [vmem:[#allocation3 + $0x1e8] sm:$0xff] %v4332
        %4397 = vst [vmem:[#allocation3 + $0x1f0] sm:$0xff] %v4333
        %4398 = vst [vmem:[#allocation3 + $0x1f8] sm:$0xff] %v4334
        %v4399 = vld [vmem:[#allocation2 + $0x25] sm:$0xff]
        %v4400 = vld [vmem:[#allocation2 + $0x2d] sm:$0xff]
        %v4401 = vld [vmem:[#allocation2 + $0x35] sm:$0xff]
        %v4402 = vld [vmem:[#allocation2 + $0x3d] sm:$0xff]
        %v4403 = vld [vmem:[#allocation2 + $0x45] sm:$0xff]
        %v4404 = vld [vmem:[#allocation2 + $0x4d] sm:$0xff]
        %v4405 = vld [vmem:[#allocation2 + $0x55] sm:$0xff]
        %v4406 = vld [vmem:[#allocation2 + $0x5d] sm:$0xff]
        %v4407 = vld [vmem:[#allocation2 + $0x65] sm:$0xff]
        %v4408 = vld [vmem:[#allocation2 + $0x6d] sm:$0xff]
        %v4409 = vld [vmem:[#allocation2 + $0x75] sm:$0xff]
        %v4410 = vld [vmem:[#allocation2 + $0x7d] sm:$0xff]
        %v4411 = vld [vmem:[#allocation2 + $0x85] sm:$0xff]
        %v4412 = vld [vmem:[#allocation2 + $0x8d] sm:$0xff]
        %v4413 = vld [vmem:[#allocation2 + $0x95] sm:$0xff]
        %v4414 = vld [vmem:[#allocation2 + $0x9d] sm:$0xff]
        %v4415 = vld [vmem:[#allocation2 + $0xa5] sm:$0xff]
        %v4416 = vld [vmem:[#allocation2 + $0xad] sm:$0xff]
        %v4417 = vld [vmem:[#allocation2 + $0xb5] sm:$0xff]
        %v4418 = vld [vmem:[#allocation2 + $0xbd] sm:$0xff]
        %v4419 = vld [vmem:[#allocation2 + $0xc5] sm:$0xff]
        %v4420 = vld [vmem:[#allocation2 + $0xcd] sm:$0xff]
        %v4421 = vld [vmem:[#allocation2 + $0xd5] sm:$0xff]
        %v4422 = vld [vmem:[#allocation2 + $0xdd] sm:$0xff]
        %v4423 = vld [vmem:[#allocation2 + $0xe5] sm:$0xff]
        %v4424 = vld [vmem:[#allocation2 + $0xed] sm:$0xff]
        %v4425 = vld [vmem:[#allocation2 + $0xf5] sm:$0xff]
        %v4426 = vld [vmem:[#allocation2 + $0xfd] sm:$0xff]
        %v4427 = vld [vmem:[#allocation2 + $0x105] sm:$0xff]
        %v4428 = vld [vmem:[#allocation2 + $0x10d] sm:$0xff]
        %v4429 = vld [vmem:[#allocation2 + $0x115] sm:$0xff]
        %v4430 = vld [vmem:[#allocation2 + $0x11d] sm:$0xff]
        %v4431 = vld [vmem:[#allocation2 + $0x125] sm:$0xff]
        %v4432 = vld [vmem:[#allocation2 + $0x12d] sm:$0xff]
        %v4433 = vld [vmem:[#allocation2 + $0x135] sm:$0xff]
        %v4434 = vld [vmem:[#allocation2 + $0x13d] sm:$0xff]
        %v4435 = vld [vmem:[#allocation2 + $0x145] sm:$0xff]
        %v4436 = vld [vmem:[#allocation2 + $0x14d] sm:$0xff]
        %v4437 = vld [vmem:[#allocation2 + $0x155] sm:$0xff]
        %v4438 = vld [vmem:[#allocation2 + $0x15d] sm:$0xff]
        %v4439 = vld [vmem:[#allocation2 + $0x165] sm:$0xff]
        %v4440 = vld [vmem:[#allocation2 + $0x16d] sm:$0xff]
        %v4441 = vld [vmem:[#allocation2 + $0x175] sm:$0xff]
        %v4442 = vld [vmem:[#allocation2 + $0x17d] sm:$0xff]
        %v4443 = vld [vmem:[#allocation2 + $0x185] sm:$0xff]
        %v4444 = vld [vmem:[#allocation2 + $0x18d] sm:$0xff]
        %v4445 = vld [vmem:[#allocation2 + $0x195] sm:$0xff]
        %v4446 = vld [vmem:[#allocation2 + $0x19d] sm:$0xff]
        %v4447 = vld [vmem:[#allocation2 + $0x1a5] sm:$0xff]
        %v4448 = vld [vmem:[#allocation2 + $0x1ad] sm:$0xff]
        %v4449 = vld [vmem:[#allocation2 + $0x1b5] sm:$0xff]
        %v4450 = vld [vmem:[#allocation2 + $0x1bd] sm:$0xff]
        %v4451 = vld [vmem:[#allocation2 + $0x1c5] sm:$0xff]
        %v4452 = vld [vmem:[#allocation2 + $0x1cd] sm:$0xff]
        %v4453 = vld [vmem:[#allocation2 + $0x1d5] sm:$0xff]
        %v4454 = vld [vmem:[#allocation2 + $0x1dd] sm:$0xff]
        %v4455 = vld [vmem:[#allocation2 + $0x1e5] sm:$0xff]
        %v4456 = vld [vmem:[#allocation2 + $0x1ed] sm:$0xff]
        %v4457 = vld [vmem:[#allocation2 + $0x1f5] sm:$0xff]
        %v4458 = vld [vmem:[#allocation2 + $0x1fd] sm:$0xff]
        %v4459 = vld [vmem:[#allocation2 + $0x205] sm:$0xff]
        %v4460 = vld [vmem:[#allocation2 + $0x20d] sm:$0xff]
        %v4461 = vld [vmem:[#allocation2 + $0x215] sm:$0xff]
        %v4462 = vld [vmem:[#allocation2 + $0x21d] sm:$0xff]
        %v4463 = vpack.c.bf16 %v4400, %v4399
        %v4464 = vpack.c.bf16 %v4402, %v4401
        %v4465 = vpack.c.bf16 %v4404, %v4403
        %v4466 = vpack.c.bf16 %v4406, %v4405
        %v4467 = vpack.c.bf16 %v4408, %v4407
        %v4468 = vpack.c.bf16 %v4410, %v4409
        %v4469 = vpack.c.bf16 %v4412, %v4411
        %v4470 = vpack.c.bf16 %v4414, %v4413
        %v4471 = vpack.c.bf16 %v4416, %v4415
        %v4472 = vpack.c.bf16 %v4418, %v4417
        %v4473 = vpack.c.bf16 %v4420, %v4419
        %v4474 = vpack.c.bf16 %v4422, %v4421
        %v4475 = vpack.c.bf16 %v4424, %v4423
        %v4476 = vpack.c.bf16 %v4426, %v4425
        %v4477 = vpack.c.bf16 %v4428, %v4427
        %v4478 = vpack.c.bf16 %v4430, %v4429
        %v4479 = vpack.c.bf16 %v4432, %v4431
        %v4480 = vpack.c.bf16 %v4434, %v4433
        %v4481 = vpack.c.bf16 %v4436, %v4435
        %v4482 = vpack.c.bf16 %v4438, %v4437
        %v4483 = vpack.c.bf16 %v4440, %v4439
        %v4484 = vpack.c.bf16 %v4442, %v4441
        %v4485 = vpack.c.bf16 %v4444, %v4443
        %v4486 = vpack.c.bf16 %v4446, %v4445
        %v4487 = vpack.c.bf16 %v4448, %v4447
        %v4488 = vpack.c.bf16 %v4450, %v4449
        %v4489 = vpack.c.bf16 %v4452, %v4451
        %v4490 = vpack.c.bf16 %v4454, %v4453
        %v4491 = vpack.c.bf16 %v4456, %v4455
        %v4492 = vpack.c.bf16 %v4458, %v4457
        %v4493 = vpack.c.bf16 %v4460, %v4459
        %v4494 = vpack.c.bf16 %v4462, %v4461
        %v4495 = vld [vmem:[#allocation3] sm:$0xff]
        %v4496 = vld [vmem:[#allocation3 + $0x8] sm:$0xff]
        %v4497 = vld [vmem:[#allocation3 + $0x10] sm:$0xff]
        %v4498 = vld [vmem:[#allocation3 + $0x18] sm:$0xff]
        %v4499 = vld [vmem:[#allocation3 + $0x20] sm:$0xff]
        %v4500 = vld [vmem:[#allocation3 + $0x28] sm:$0xff]
        %v4501 = vld [vmem:[#allocation3 + $0x30] sm:$0xff]
        %v4502 = vld [vmem:[#allocation3 + $0x38] sm:$0xff]
        %v4503 = vld [vmem:[#allocation3 + $0x40] sm:$0xff]
        %v4504 = vld [vmem:[#allocation3 + $0x48] sm:$0xff]
        %v4505 = vld [vmem:[#allocation3 + $0x50] sm:$0xff]
        %v4506 = vld [vmem:[#allocation3 + $0x58] sm:$0xff]
        %v4507 = vld [vmem:[#allocation3 + $0x60] sm:$0xff]
        %v4508 = vld [vmem:[#allocation3 + $0x68] sm:$0xff]
        %v4509 = vld [vmem:[#allocation3 + $0x70] sm:$0xff]
        %v4510 = vld [vmem:[#allocation3 + $0x78] sm:$0xff]
        %v4511 = vld [vmem:[#allocation3 + $0x80] sm:$0xff]
        %v4512 = vld [vmem:[#allocation3 + $0x88] sm:$0xff]
        %v4513 = vld [vmem:[#allocation3 + $0x90] sm:$0xff]
        %v4514 = vld [vmem:[#allocation3 + $0x98] sm:$0xff]
        %v4515 = vld [vmem:[#allocation3 + $0xa0] sm:$0xff]
        %v4516 = vld [vmem:[#allocation3 + $0xa8] sm:$0xff]
        %v4517 = vld [vmem:[#allocation3 + $0xb0] sm:$0xff]
        %v4518 = vld [vmem:[#allocation3 + $0xb8] sm:$0xff]
        %v4519 = vld [vmem:[#allocation3 + $0xc0] sm:$0xff]
        %v4520 = vld [vmem:[#allocation3 + $0xc8] sm:$0xff]
        %v4521 = vld [vmem:[#allocation3 + $0xd0] sm:$0xff]
        %v4522 = vld [vmem:[#allocation3 + $0xd8] sm:$0xff]
        %v4523 = vld [vmem:[#allocation3 + $0xe0] sm:$0xff]
        %v4524 = vld [vmem:[#allocation3 + $0xe8] sm:$0xff]
        %v4525 = vld [vmem:[#allocation3 + $0xf0] sm:$0xff]
        %v4526 = vld [vmem:[#allocation3 + $0xf8] sm:$0xff]
        %v4527 = vld [vmem:[#allocation3 + $0x100] sm:$0xff]
        %v4528 = vld [vmem:[#allocation3 + $0x108] sm:$0xff]
        %v4529 = vld [vmem:[#allocation3 + $0x110] sm:$0xff]
        %v4530 = vld [vmem:[#allocation3 + $0x118] sm:$0xff]
        %v4531 = vld [vmem:[#allocation3 + $0x120] sm:$0xff]
        %v4532 = vld [vmem:[#allocation3 + $0x128] sm:$0xff]
        %v4533 = vld [vmem:[#allocation3 + $0x130] sm:$0xff]
        %v4534 = vld [vmem:[#allocation3 + $0x138] sm:$0xff]
        %v4535 = vld [vmem:[#allocation3 + $0x140] sm:$0xff]
        %v4536 = vld [vmem:[#allocation3 + $0x148] sm:$0xff]
        %v4537 = vld [vmem:[#allocation3 + $0x150] sm:$0xff]
        %v4538 = vld [vmem:[#allocation3 + $0x158] sm:$0xff]
        %v4539 = vld [vmem:[#allocation3 + $0x160] sm:$0xff]
        %v4540 = vld [vmem:[#allocation3 + $0x168] sm:$0xff]
        %v4541 = vld [vmem:[#allocation3 + $0x170] sm:$0xff]
        %v4542 = vld [vmem:[#allocation3 + $0x178] sm:$0xff]
        %v4543 = vld [vmem:[#allocation3 + $0x180] sm:$0xff]
        %v4544 = vld [vmem:[#allocation3 + $0x188] sm:$0xff]
        %v4545 = vld [vmem:[#allocation3 + $0x190] sm:$0xff]
        %v4546 = vld [vmem:[#allocation3 + $0x198] sm:$0xff]
        %v4547 = vld [vmem:[#allocation3 + $0x1a0] sm:$0xff]
        %v4548 = vld [vmem:[#allocation3 + $0x1a8] sm:$0xff]
        %v4549 = vld [vmem:[#allocation3 + $0x1b0] sm:$0xff]
        %v4550 = vld [vmem:[#allocation3 + $0x1b8] sm:$0xff]
        %v4551 = vld [vmem:[#allocation3 + $0x1c0] sm:$0xff]
        %v4552 = vld [vmem:[#allocation3 + $0x1c8] sm:$0xff]
        %v4553 = vld [vmem:[#allocation3 + $0x1d0] sm:$0xff]
        %v4554 = vld [vmem:[#allocation3 + $0x1d8] sm:$0xff]
        %v4555 = vld [vmem:[#allocation3 + $0x1e0] sm:$0xff]
        %v4556 = vld [vmem:[#allocation3 + $0x1e8] sm:$0xff]
        %v4557 = vld [vmem:[#allocation3 + $0x1f0] sm:$0xff]
        %v4558 = vld [vmem:[#allocation3 + $0x1f8] sm:$0xff]
        %s4559 = scalar_lea.vmem %s2, 14
        %v4560 = vld [vmem:[%s4559] sm:$0x3]
        %v4562 = vsel %vm348, %v4463, 0
        %v4565 = vsel %vm348, %v4464, 0
        %v4568 = vsel %vm348, %v4465, 0
        %v4571 = vsel %vm348, %v4466, 0
        %v4574 = vsel %vm348, %v4467, 0
        %v4577 = vsel %vm348, %v4468, 0
        %v4580 = vsel %vm348, %v4469, 0
        %v4583 = vsel %vm348, %v4470, 0
        %v4586 = vsel %vm348, %v4471, 0
        %v4589 = vsel %vm348, %v4472, 0
        %v4592 = vsel %vm348, %v4473, 0
        %v4595 = vsel %vm348, %v4474, 0
        %v4598 = vsel %vm348, %v4475, 0
        %v4601 = vsel %vm348, %v4476, 0
        %v4604 = vsel %vm348, %v4477, 0
        %v4607 = vsel %vm348, %v4478, 0
        %v4610 = vsel %vm348, %v4479, 0
        %v4613 = vsel %vm348, %v4480, 0
        %v4616 = vsel %vm348, %v4481, 0
        %v4619 = vsel %vm348, %v4482, 0
        %v4622 = vsel %vm348, %v4483, 0
        %v4625 = vsel %vm348, %v4484, 0
        %v4628 = vsel %vm348, %v4485, 0
        %v4631 = vsel %vm348, %v4486, 0
        %v4634 = vsel %vm348, %v4487, 0
        %v4637 = vsel %vm348, %v4488, 0
        %v4640 = vsel %vm348, %v4489, 0
        %v4643 = vsel %vm348, %v4490, 0
        %v4646 = vsel %vm348, %v4491, 0
        %v4649 = vsel %vm348, %v4492, 0
        %v4652 = vsel %vm348, %v4493, 0
        %v4655 = vsel %vm348, %v4494, 0
        %v4658 = vsel %vm750, %v4560, 0
        %4660 = vmatpush.bf16.msra.mxu0 0
        %4661 = vmatpush.bf16.msra.mxu0 0
        %4662 = vmatpush.bf16.msra.mxu0 0
        %4663 = vmatpush.bf16.msra.mxu0 0
        %4664 = vmatpush.bf16.msra.mxu0 0
        %4665 = vmatpush.bf16.msra.mxu0 0
        %4666 = vmatpush.bf16.msra.mxu0 0
        %4667 = vmatpush.bf16.msra.mxu0 %v4658
        %4668 = vmatmul.bf16.gmra.mxu0 %v4562
        %v4669 = vpop.f32.mrf.mxu0
        %v4670 = vadd.f32 0.0, %v4669
        %v4671 = vpop.f32.mrf.mxu0
        %v4672 = vadd.f32 0.0, %v4671
        %4673 = vmatmul.bf16.gmra.mxu0 %v4565
        %v4674 = vpop.f32.mrf.mxu0
        %v4675 = vadd.f32 0.0, %v4674
        %v4676 = vpop.f32.mrf.mxu0
        %v4677 = vadd.f32 0.0, %v4676
        %4678 = vmatmul.bf16.gmra.mxu0 %v4568
        %v4679 = vpop.f32.mrf.mxu0
        %v4680 = vadd.f32 0.0, %v4679
        %v4681 = vpop.f32.mrf.mxu0
        %v4682 = vadd.f32 0.0, %v4681
        %4683 = vmatmul.bf16.gmra.mxu0 %v4571
        %v4684 = vpop.f32.mrf.mxu0
        %v4685 = vadd.f32 0.0, %v4684
        %v4686 = vpop.f32.mrf.mxu0
        %v4687 = vadd.f32 0.0, %v4686
        %4688 = vmatmul.bf16.gmra.mxu0 %v4574
        %v4689 = vpop.f32.mrf.mxu0
        %v4690 = vadd.f32 0.0, %v4689
        %v4691 = vpop.f32.mrf.mxu0
        %v4692 = vadd.f32 0.0, %v4691
        %4693 = vmatmul.bf16.gmra.mxu0 %v4577
        %v4694 = vpop.f32.mrf.mxu0
        %v4695 = vadd.f32 0.0, %v4694
        %v4696 = vpop.f32.mrf.mxu0
        %v4697 = vadd.f32 0.0, %v4696
        %4698 = vmatmul.bf16.gmra.mxu0 %v4580
        %v4699 = vpop.f32.mrf.mxu0
        %v4700 = vadd.f32 0.0, %v4699
        %v4701 = vpop.f32.mrf.mxu0
        %v4702 = vadd.f32 0.0, %v4701
        %4703 = vmatmul.bf16.gmra.mxu0 %v4583
        %v4704 = vpop.f32.mrf.mxu0
        %v4705 = vadd.f32 0.0, %v4704
        %v4706 = vpop.f32.mrf.mxu0
        %v4707 = vadd.f32 0.0, %v4706
        %4708 = vmatmul.bf16.gmra.mxu0 %v4586
        %v4709 = vpop.f32.mrf.mxu0
        %v4710 = vadd.f32 0.0, %v4709
        %v4711 = vpop.f32.mrf.mxu0
        %v4712 = vadd.f32 0.0, %v4711
        %4713 = vmatmul.bf16.gmra.mxu0 %v4589
        %v4714 = vpop.f32.mrf.mxu0
        %v4715 = vadd.f32 0.0, %v4714
        %v4716 = vpop.f32.mrf.mxu0
        %v4717 = vadd.f32 0.0, %v4716
        %4718 = vmatmul.bf16.gmra.mxu0 %v4592
        %v4719 = vpop.f32.mrf.mxu0
        %v4720 = vadd.f32 0.0, %v4719
        %v4721 = vpop.f32.mrf.mxu0
        %v4722 = vadd.f32 0.0, %v4721
        %4723 = vmatmul.bf16.gmra.mxu0 %v4595
        %v4724 = vpop.f32.mrf.mxu0
        %v4725 = vadd.f32 0.0, %v4724
        %v4726 = vpop.f32.mrf.mxu0
        %v4727 = vadd.f32 0.0, %v4726
        %4728 = vmatmul.bf16.gmra.mxu0 %v4598
        %v4729 = vpop.f32.mrf.mxu0
        %v4730 = vadd.f32 0.0, %v4729
        %v4731 = vpop.f32.mrf.mxu0
        %v4732 = vadd.f32 0.0, %v4731
        %4733 = vmatmul.bf16.gmra.mxu0 %v4601
        %v4734 = vpop.f32.mrf.mxu0
        %v4735 = vadd.f32 0.0, %v4734
        %v4736 = vpop.f32.mrf.mxu0
        %v4737 = vadd.f32 0.0, %v4736
        %4738 = vmatmul.bf16.gmra.mxu0 %v4604
        %v4739 = vpop.f32.mrf.mxu0
        %v4740 = vadd.f32 0.0, %v4739
        %v4741 = vpop.f32.mrf.mxu0
        %v4742 = vadd.f32 0.0, %v4741
        %4743 = vmatmul.bf16.gmra.mxu0 %v4607
        %v4744 = vpop.f32.mrf.mxu0
        %v4745 = vadd.f32 0.0, %v4744
        %v4746 = vpop.f32.mrf.mxu0
        %v4747 = vadd.f32 0.0, %v4746
        %4748 = vmatmul.bf16.gmra.mxu0 %v4610
        %v4749 = vpop.f32.mrf.mxu0
        %v4750 = vadd.f32 0.0, %v4749
        %v4751 = vpop.f32.mrf.mxu0
        %v4752 = vadd.f32 0.0, %v4751
        %4753 = vmatmul.bf16.gmra.mxu0 %v4613
        %v4754 = vpop.f32.mrf.mxu0
        %v4755 = vadd.f32 0.0, %v4754
        %v4756 = vpop.f32.mrf.mxu0
        %v4757 = vadd.f32 0.0, %v4756
        %4758 = vmatmul.bf16.gmra.mxu0 %v4616
        %v4759 = vpop.f32.mrf.mxu0
        %v4760 = vadd.f32 0.0, %v4759
        %v4761 = vpop.f32.mrf.mxu0
        %v4762 = vadd.f32 0.0, %v4761
        %4763 = vmatmul.bf16.gmra.mxu0 %v4619
        %v4764 = vpop.f32.mrf.mxu0
        %v4765 = vadd.f32 0.0, %v4764
        %v4766 = vpop.f32.mrf.mxu0
        %v4767 = vadd.f32 0.0, %v4766
        %4768 = vmatmul.bf16.gmra.mxu0 %v4622
        %v4769 = vpop.f32.mrf.mxu0
        %v4770 = vadd.f32 0.0, %v4769
        %v4771 = vpop.f32.mrf.mxu0
        %v4772 = vadd.f32 0.0, %v4771
        %4773 = vmatmul.bf16.gmra.mxu0 %v4625
        %v4774 = vpop.f32.mrf.mxu0
        %v4775 = vadd.f32 0.0, %v4774
        %v4776 = vpop.f32.mrf.mxu0
        %v4777 = vadd.f32 0.0, %v4776
        %4778 = vmatmul.bf16.gmra.mxu0 %v4628
        %v4779 = vpop.f32.mrf.mxu0
        %v4780 = vadd.f32 0.0, %v4779
        %v4781 = vpop.f32.mrf.mxu0
        %v4782 = vadd.f32 0.0, %v4781
        %4783 = vmatmul.bf16.gmra.mxu0 %v4631
        %v4784 = vpop.f32.mrf.mxu0
        %v4785 = vadd.f32 0.0, %v4784
        %v4786 = vpop.f32.mrf.mxu0
        %v4787 = vadd.f32 0.0, %v4786
        %4788 = vmatmul.bf16.gmra.mxu0 %v4634
        %v4789 = vpop.f32.mrf.mxu0
        %v4790 = vadd.f32 0.0, %v4789
        %v4791 = vpop.f32.mrf.mxu0
        %v4792 = vadd.f32 0.0, %v4791
        %4793 = vmatmul.bf16.gmra.mxu0 %v4637
        %v4794 = vpop.f32.mrf.mxu0
        %v4795 = vadd.f32 0.0, %v4794
        %v4796 = vpop.f32.mrf.mxu0
        %v4797 = vadd.f32 0.0, %v4796
        %4798 = vmatmul.bf16.gmra.mxu0 %v4640
        %v4799 = vpop.f32.mrf.mxu0
        %v4800 = vadd.f32 0.0, %v4799
        %v4801 = vpop.f32.mrf.mxu0
        %v4802 = vadd.f32 0.0, %v4801
        %4803 = vmatmul.bf16.gmra.mxu0 %v4643
        %v4804 = vpop.f32.mrf.mxu0
        %v4805 = vadd.f32 0.0, %v4804
        %v4806 = vpop.f32.mrf.mxu0
        %v4807 = vadd.f32 0.0, %v4806
        %4808 = vmatmul.bf16.gmra.mxu0 %v4646
        %v4809 = vpop.f32.mrf.mxu0
        %v4810 = vadd.f32 0.0, %v4809
        %v4811 = vpop.f32.mrf.mxu0
        %v4812 = vadd.f32 0.0, %v4811
        %4813 = vmatmul.bf16.gmra.mxu0 %v4649
        %v4814 = vpop.f32.mrf.mxu0
        %v4815 = vadd.f32 0.0, %v4814
        %v4816 = vpop.f32.mrf.mxu0
        %v4817 = vadd.f32 0.0, %v4816
        %4818 = vmatmul.bf16.gmra.mxu0 %v4652
        %v4819 = vpop.f32.mrf.mxu0
        %v4820 = vadd.f32 0.0, %v4819
        %v4821 = vpop.f32.mrf.mxu0
        %v4822 = vadd.f32 0.0, %v4821
        %4823 = vmatmul.bf16.gmra.mxu0 %v4655
        %v4824 = vpop.f32.mrf.mxu0
        %v4825 = vadd.f32 0.0, %v4824
        %v4826 = vpop.f32.mrf.mxu0
        %v4827 = vadd.f32 0.0, %v4826
        %4828 = vdwg.mxu0
        %v4829 = vadd.f32 %v4495, %v4670
        %v4830 = vadd.f32 %v4496, %v4672
        %v4831 = vadd.f32 %v4497, %v4675
        %v4832 = vadd.f32 %v4498, %v4677
        %v4833 = vadd.f32 %v4499, %v4680
        %v4834 = vadd.f32 %v4500, %v4682
        %v4835 = vadd.f32 %v4501, %v4685
        %v4836 = vadd.f32 %v4502, %v4687
        %v4837 = vadd.f32 %v4503, %v4690
        %v4838 = vadd.f32 %v4504, %v4692
        %v4839 = vadd.f32 %v4505, %v4695
        %v4840 = vadd.f32 %v4506, %v4697
        %v4841 = vadd.f32 %v4507, %v4700
        %v4842 = vadd.f32 %v4508, %v4702
        %v4843 = vadd.f32 %v4509, %v4705
        %v4844 = vadd.f32 %v4510, %v4707
        %v4845 = vadd.f32 %v4511, %v4710
        %v4846 = vadd.f32 %v4512, %v4712
        %v4847 = vadd.f32 %v4513, %v4715
        %v4848 = vadd.f32 %v4514, %v4717
        %v4849 = vadd.f32 %v4515, %v4720
        %v4850 = vadd.f32 %v4516, %v4722
        %v4851 = vadd.f32 %v4517, %v4725
        %v4852 = vadd.f32 %v4518, %v4727
        %v4853 = vadd.f32 %v4519, %v4730
        %v4854 = vadd.f32 %v4520, %v4732
        %v4855 = vadd.f32 %v4521, %v4735
        %v4856 = vadd.f32 %v4522, %v4737
        %v4857 = vadd.f32 %v4523, %v4740
        %v4858 = vadd.f32 %v4524, %v4742
        %v4859 = vadd.f32 %v4525, %v4745
        %v4860 = vadd.f32 %v4526, %v4747
        %v4861 = vadd.f32 %v4527, %v4750
        %v4862 = vadd.f32 %v4528, %v4752
        %v4863 = vadd.f32 %v4529, %v4755
        %v4864 = vadd.f32 %v4530, %v4757
        %v4865 = vadd.f32 %v4531, %v4760
        %v4866 = vadd.f32 %v4532, %v4762
        %v4867 = vadd.f32 %v4533, %v4765
        %v4868 = vadd.f32 %v4534, %v4767
        %v4869 = vadd.f32 %v4535, %v4770
        %v4870 = vadd.f32 %v4536, %v4772
        %v4871 = vadd.f32 %v4537, %v4775
        %v4872 = vadd.f32 %v4538, %v4777
        %v4873 = vadd.f32 %v4539, %v4780
        %v4874 = vadd.f32 %v4540, %v4782
        %v4875 = vadd.f32 %v4541, %v4785
        %v4876 = vadd.f32 %v4542, %v4787
        %v4877 = vadd.f32 %v4543, %v4790
        %v4878 = vadd.f32 %v4544, %v4792
        %v4879 = vadd.f32 %v4545, %v4795
        %v4880 = vadd.f32 %v4546, %v4797
        %v4881 = vadd.f32 %v4547, %v4800
        %v4882 = vadd.f32 %v4548, %v4802
        %v4883 = vadd.f32 %v4549, %v4805
        %v4884 = vadd.f32 %v4550, %v4807
        %v4885 = vadd.f32 %v4551, %v4810
        %v4886 = vadd.f32 %v4552, %v4812
        %v4887 = vadd.f32 %v4553, %v4815
        %v4888 = vadd.f32 %v4554, %v4817
        %v4889 = vadd.f32 %v4555, %v4820
        %v4890 = vadd.f32 %v4556, %v4822
        %v4891 = vadd.f32 %v4557, %v4825
        %v4892 = vadd.f32 %v4558, %v4827
        %4893 = vst [vmem:[#allocation3] sm:$0xff] %v4829
        %4894 = vst [vmem:[#allocation3 + $0x8] sm:$0xff] %v4830
        %4895 = vst [vmem:[#allocation3 + $0x10] sm:$0xff] %v4831
        %4896 = vst [vmem:[#allocation3 + $0x18] sm:$0xff] %v4832
        %4897 = vst [vmem:[#allocation3 + $0x20] sm:$0xff] %v4833
        %4898 = vst [vmem:[#allocation3 + $0x28] sm:$0xff] %v4834
        %4899 = vst [vmem:[#allocation3 + $0x30] sm:$0xff] %v4835
        %4900 = vst [vmem:[#allocation3 + $0x38] sm:$0xff] %v4836
        %4901 = vst [vmem:[#allocation3 + $0x40] sm:$0xff] %v4837
        %4902 = vst [vmem:[#allocation3 + $0x48] sm:$0xff] %v4838
        %4903 = vst [vmem:[#allocation3 + $0x50] sm:$0xff] %v4839
        %4904 = vst [vmem:[#allocation3 + $0x58] sm:$0xff] %v4840
        %4905 = vst [vmem:[#allocation3 + $0x60] sm:$0xff] %v4841
        %4906 = vst [vmem:[#allocation3 + $0x68] sm:$0xff] %v4842
        %4907 = vst [vmem:[#allocation3 + $0x70] sm:$0xff] %v4843
        %4908 = vst [vmem:[#allocation3 + $0x78] sm:$0xff] %v4844
        %4909 = vst [vmem:[#allocation3 + $0x80] sm:$0xff] %v4845
        %4910 = vst [vmem:[#allocation3 + $0x88] sm:$0xff] %v4846
        %4911 = vst [vmem:[#allocation3 + $0x90] sm:$0xff] %v4847
        %4912 = vst [vmem:[#allocation3 + $0x98] sm:$0xff] %v4848
        %4913 = vst [vmem:[#allocation3 + $0xa0] sm:$0xff] %v4849
        %4914 = vst [vmem:[#allocation3 + $0xa8] sm:$0xff] %v4850
        %4915 = vst [vmem:[#allocation3 + $0xb0] sm:$0xff] %v4851
        %4916 = vst [vmem:[#allocation3 + $0xb8] sm:$0xff] %v4852
        %4917 = vst [vmem:[#allocation3 + $0xc0] sm:$0xff] %v4853
        %4918 = vst [vmem:[#allocation3 + $0xc8] sm:$0xff] %v4854
        %4919 = vst [vmem:[#allocation3 + $0xd0] sm:$0xff] %v4855
        %4920 = vst [vmem:[#allocation3 + $0xd8] sm:$0xff] %v4856
        %4921 = vst [vmem:[#allocation3 + $0xe0] sm:$0xff] %v4857
        %4922 = vst [vmem:[#allocation3 + $0xe8] sm:$0xff] %v4858
        %4923 = vst [vmem:[#allocation3 + $0xf0] sm:$0xff] %v4859
        %4924 = vst [vmem:[#allocation3 + $0xf8] sm:$0xff] %v4860
        %4925 = vst [vmem:[#allocation3 + $0x100] sm:$0xff] %v4861
        %4926 = vst [vmem:[#allocation3 + $0x108] sm:$0xff] %v4862
        %4927 = vst [vmem:[#allocation3 + $0x110] sm:$0xff] %v4863
        %4928 = vst [vmem:[#allocation3 + $0x118] sm:$0xff] %v4864
        %4929 = vst [vmem:[#allocation3 + $0x120] sm:$0xff] %v4865
        %4930 = vst [vmem:[#allocation3 + $0x128] sm:$0xff] %v4866
        %4931 = vst [vmem:[#allocation3 + $0x130] sm:$0xff] %v4867
        %4932 = vst [vmem:[#allocation3 + $0x138] sm:$0xff] %v4868
        %4933 = vst [vmem:[#allocation3 + $0x140] sm:$0xff] %v4869
        %4934 = vst [vmem:[#allocation3 + $0x148] sm:$0xff] %v4870
        %4935 = vst [vmem:[#allocation3 + $0x150] sm:$0xff] %v4871
        %4936 = vst [vmem:[#allocation3 + $0x158] sm:$0xff] %v4872
        %4937 = vst [vmem:[#allocation3 + $0x160] sm:$0xff] %v4873
        %4938 = vst [vmem:[#allocation3 + $0x168] sm:$0xff] %v4874
        %4939 = vst [vmem:[#allocation3 + $0x170] sm:$0xff] %v4875
        %4940 = vst [vmem:[#allocation3 + $0x178] sm:$0xff] %v4876
        %4941 = vst [vmem:[#allocation3 + $0x180] sm:$0xff] %v4877
        %4942 = vst [vmem:[#allocation3 + $0x188] sm:$0xff] %v4878
        %4943 = vst [vmem:[#allocation3 + $0x190] sm:$0xff] %v4879
        %4944 = vst [vmem:[#allocation3 + $0x198] sm:$0xff] %v4880
        %4945 = vst [vmem:[#allocation3 + $0x1a0] sm:$0xff] %v4881
        %4946 = vst [vmem:[#allocation3 + $0x1a8] sm:$0xff] %v4882
        %4947 = vst [vmem:[#allocation3 + $0x1b0] sm:$0xff] %v4883
        %4948 = vst [vmem:[#allocation3 + $0x1b8] sm:$0xff] %v4884
        %4949 = vst [vmem:[#allocation3 + $0x1c0] sm:$0xff] %v4885
        %4950 = vst [vmem:[#allocation3 + $0x1c8] sm:$0xff] %v4886
        %4951 = vst [vmem:[#allocation3 + $0x1d0] sm:$0xff] %v4887
        %4952 = vst [vmem:[#allocation3 + $0x1d8] sm:$0xff] %v4888
        %4953 = vst [vmem:[#allocation3 + $0x1e0] sm:$0xff] %v4889
        %4954 = vst [vmem:[#allocation3 + $0x1e8] sm:$0xff] %v4890
        %4955 = vst [vmem:[#allocation3 + $0x1f0] sm:$0xff] %v4891
        %4956 = vst [vmem:[#allocation3 + $0x1f8] sm:$0xff] %v4892
        %v4957 = vld [vmem:[#allocation2 + $0x26] sm:$0xff]
        %v4958 = vld [vmem:[#allocation2 + $0x2e] sm:$0xff]
        %v4959 = vld [vmem:[#allocation2 + $0x36] sm:$0xff]
        %v4960 = vld [vmem:[#allocation2 + $0x3e] sm:$0xff]
        %v4961 = vld [vmem:[#allocation2 + $0x46] sm:$0xff]
        %v4962 = vld [vmem:[#allocation2 + $0x4e] sm:$0xff]
        %v4963 = vld [vmem:[#allocation2 + $0x56] sm:$0xff]
        %v4964 = vld [vmem:[#allocation2 + $0x5e] sm:$0xff]
        %v4965 = vld [vmem:[#allocation2 + $0x66] sm:$0xff]
        %v4966 = vld [vmem:[#allocation2 + $0x6e] sm:$0xff]
        %v4967 = vld [vmem:[#allocation2 + $0x76] sm:$0xff]
        %v4968 = vld [vmem:[#allocation2 + $0x7e] sm:$0xff]
        %v4969 = vld [vmem:[#allocation2 + $0x86] sm:$0xff]
        %v4970 = vld [vmem:[#allocation2 + $0x8e] sm:$0xff]
        %v4971 = vld [vmem:[#allocation2 + $0x96] sm:$0xff]
        %v4972 = vld [vmem:[#allocation2 + $0x9e] sm:$0xff]
        %v4973 = vld [vmem:[#allocation2 + $0xa6] sm:$0xff]
        %v4974 = vld [vmem:[#allocation2 + $0xae] sm:$0xff]
        %v4975 = vld [vmem:[#allocation2 + $0xb6] sm:$0xff]
        %v4976 = vld [vmem:[#allocation2 + $0xbe] sm:$0xff]
        %v4977 = vld [vmem:[#allocation2 + $0xc6] sm:$0xff]
        %v4978 = vld [vmem:[#allocation2 + $0xce] sm:$0xff]
        %v4979 = vld [vmem:[#allocation2 + $0xd6] sm:$0xff]
        %v4980 = vld [vmem:[#allocation2 + $0xde] sm:$0xff]
        %v4981 = vld [vmem:[#allocation2 + $0xe6] sm:$0xff]
        %v4982 = vld [vmem:[#allocation2 + $0xee] sm:$0xff]
        %v4983 = vld [vmem:[#allocation2 + $0xf6] sm:$0xff]
        %v4984 = vld [vmem:[#allocation2 + $0xfe] sm:$0xff]
        %v4985 = vld [vmem:[#allocation2 + $0x106] sm:$0xff]
        %v4986 = vld [vmem:[#allocation2 + $0x10e] sm:$0xff]
        %v4987 = vld [vmem:[#allocation2 + $0x116] sm:$0xff]
        %v4988 = vld [vmem:[#allocation2 + $0x11e] sm:$0xff]
        %v4989 = vld [vmem:[#allocation2 + $0x126] sm:$0xff]
        %v4990 = vld [vmem:[#allocation2 + $0x12e] sm:$0xff]
        %v4991 = vld [vmem:[#allocation2 + $0x136] sm:$0xff]
        %v4992 = vld [vmem:[#allocation2 + $0x13e] sm:$0xff]
        %v4993 = vld [vmem:[#allocation2 + $0x146] sm:$0xff]
        %v4994 = vld [vmem:[#allocation2 + $0x14e] sm:$0xff]
        %v4995 = vld [vmem:[#allocation2 + $0x156] sm:$0xff]
        %v4996 = vld [vmem:[#allocation2 + $0x15e] sm:$0xff]
        %v4997 = vld [vmem:[#allocation2 + $0x166] sm:$0xff]
        %v4998 = vld [vmem:[#allocation2 + $0x16e] sm:$0xff]
        %v4999 = vld [vmem:[#allocation2 + $0x176] sm:$0xff]
        %v5000 = vld [vmem:[#allocation2 + $0x17e] sm:$0xff]
        %v5001 = vld [vmem:[#allocation2 + $0x186] sm:$0xff]
        %v5002 = vld [vmem:[#allocation2 + $0x18e] sm:$0xff]
        %v5003 = vld [vmem:[#allocation2 + $0x196] sm:$0xff]
        %v5004 = vld [vmem:[#allocation2 + $0x19e] sm:$0xff]
        %v5005 = vld [vmem:[#allocation2 + $0x1a6] sm:$0xff]
        %v5006 = vld [vmem:[#allocation2 + $0x1ae] sm:$0xff]
        %v5007 = vld [vmem:[#allocation2 + $0x1b6] sm:$0xff]
        %v5008 = vld [vmem:[#allocation2 + $0x1be] sm:$0xff]
        %v5009 = vld [vmem:[#allocation2 + $0x1c6] sm:$0xff]
        %v5010 = vld [vmem:[#allocation2 + $0x1ce] sm:$0xff]
        %v5011 = vld [vmem:[#allocation2 + $0x1d6] sm:$0xff]
        %v5012 = vld [vmem:[#allocation2 + $0x1de] sm:$0xff]
        %v5013 = vld [vmem:[#allocation2 + $0x1e6] sm:$0xff]
        %v5014 = vld [vmem:[#allocation2 + $0x1ee] sm:$0xff]
        %v5015 = vld [vmem:[#allocation2 + $0x1f6] sm:$0xff]
        %v5016 = vld [vmem:[#allocation2 + $0x1fe] sm:$0xff]
        %v5017 = vld [vmem:[#allocation2 + $0x206] sm:$0xff]
        %v5018 = vld [vmem:[#allocation2 + $0x20e] sm:$0xff]
        %v5019 = vld [vmem:[#allocation2 + $0x216] sm:$0xff]
        %v5020 = vld [vmem:[#allocation2 + $0x21e] sm:$0xff]
        %v5021 = vpack.c.bf16 %v4958, %v4957
        %v5022 = vpack.c.bf16 %v4960, %v4959
        %v5023 = vpack.c.bf16 %v4962, %v4961
        %v5024 = vpack.c.bf16 %v4964, %v4963
        %v5025 = vpack.c.bf16 %v4966, %v4965
        %v5026 = vpack.c.bf16 %v4968, %v4967
        %v5027 = vpack.c.bf16 %v4970, %v4969
        %v5028 = vpack.c.bf16 %v4972, %v4971
        %v5029 = vpack.c.bf16 %v4974, %v4973
        %v5030 = vpack.c.bf16 %v4976, %v4975
        %v5031 = vpack.c.bf16 %v4978, %v4977
        %v5032 = vpack.c.bf16 %v4980, %v4979
        %v5033 = vpack.c.bf16 %v4982, %v4981
        %v5034 = vpack.c.bf16 %v4984, %v4983
        %v5035 = vpack.c.bf16 %v4986, %v4985
        %v5036 = vpack.c.bf16 %v4988, %v4987
        %v5037 = vpack.c.bf16 %v4990, %v4989
        %v5038 = vpack.c.bf16 %v4992, %v4991
        %v5039 = vpack.c.bf16 %v4994, %v4993
        %v5040 = vpack.c.bf16 %v4996, %v4995
        %v5041 = vpack.c.bf16 %v4998, %v4997
        %v5042 = vpack.c.bf16 %v5000, %v4999
        %v5043 = vpack.c.bf16 %v5002, %v5001
        %v5044 = vpack.c.bf16 %v5004, %v5003
        %v5045 = vpack.c.bf16 %v5006, %v5005
        %v5046 = vpack.c.bf16 %v5008, %v5007
        %v5047 = vpack.c.bf16 %v5010, %v5009
        %v5048 = vpack.c.bf16 %v5012, %v5011
        %v5049 = vpack.c.bf16 %v5014, %v5013
        %v5050 = vpack.c.bf16 %v5016, %v5015
        %v5051 = vpack.c.bf16 %v5018, %v5017
        %v5052 = vpack.c.bf16 %v5020, %v5019
        %v5053 = vld [vmem:[#allocation3] sm:$0xff]
        %v5054 = vld [vmem:[#allocation3 + $0x8] sm:$0xff]
        %v5055 = vld [vmem:[#allocation3 + $0x10] sm:$0xff]
        %v5056 = vld [vmem:[#allocation3 + $0x18] sm:$0xff]
        %v5057 = vld [vmem:[#allocation3 + $0x20] sm:$0xff]
        %v5058 = vld [vmem:[#allocation3 + $0x28] sm:$0xff]
        %v5059 = vld [vmem:[#allocation3 + $0x30] sm:$0xff]
        %v5060 = vld [vmem:[#allocation3 + $0x38] sm:$0xff]
        %v5061 = vld [vmem:[#allocation3 + $0x40] sm:$0xff]
        %v5062 = vld [vmem:[#allocation3 + $0x48] sm:$0xff]
        %v5063 = vld [vmem:[#allocation3 + $0x50] sm:$0xff]
        %v5064 = vld [vmem:[#allocation3 + $0x58] sm:$0xff]
        %v5065 = vld [vmem:[#allocation3 + $0x60] sm:$0xff]
        %v5066 = vld [vmem:[#allocation3 + $0x68] sm:$0xff]
        %v5067 = vld [vmem:[#allocation3 + $0x70] sm:$0xff]
        %v5068 = vld [vmem:[#allocation3 + $0x78] sm:$0xff]
        %v5069 = vld [vmem:[#allocation3 + $0x80] sm:$0xff]
        %v5070 = vld [vmem:[#allocation3 + $0x88] sm:$0xff]
        %v5071 = vld [vmem:[#allocation3 + $0x90] sm:$0xff]
        %v5072 = vld [vmem:[#allocation3 + $0x98] sm:$0xff]
        %v5073 = vld [vmem:[#allocation3 + $0xa0] sm:$0xff]
        %v5074 = vld [vmem:[#allocation3 + $0xa8] sm:$0xff]
        %v5075 = vld [vmem:[#allocation3 + $0xb0] sm:$0xff]
        %v5076 = vld [vmem:[#allocation3 + $0xb8] sm:$0xff]
        %v5077 = vld [vmem:[#allocation3 + $0xc0] sm:$0xff]
        %v5078 = vld [vmem:[#allocation3 + $0xc8] sm:$0xff]
        %v5079 = vld [vmem:[#allocation3 + $0xd0] sm:$0xff]
        %v5080 = vld [vmem:[#allocation3 + $0xd8] sm:$0xff]
        %v5081 = vld [vmem:[#allocation3 + $0xe0] sm:$0xff]
        %v5082 = vld [vmem:[#allocation3 + $0xe8] sm:$0xff]
        %v5083 = vld [vmem:[#allocation3 + $0xf0] sm:$0xff]
        %v5084 = vld [vmem:[#allocation3 + $0xf8] sm:$0xff]
        %v5085 = vld [vmem:[#allocation3 + $0x100] sm:$0xff]
        %v5086 = vld [vmem:[#allocation3 + $0x108] sm:$0xff]
        %v5087 = vld [vmem:[#allocation3 + $0x110] sm:$0xff]
        %v5088 = vld [vmem:[#allocation3 + $0x118] sm:$0xff]
        %v5089 = vld [vmem:[#allocation3 + $0x120] sm:$0xff]
        %v5090 = vld [vmem:[#allocation3 + $0x128] sm:$0xff]
        %v5091 = vld [vmem:[#allocation3 + $0x130] sm:$0xff]
        %v5092 = vld [vmem:[#allocation3 + $0x138] sm:$0xff]
        %v5093 = vld [vmem:[#allocation3 + $0x140] sm:$0xff]
        %v5094 = vld [vmem:[#allocation3 + $0x148] sm:$0xff]
        %v5095 = vld [vmem:[#allocation3 + $0x150] sm:$0xff]
        %v5096 = vld [vmem:[#allocation3 + $0x158] sm:$0xff]
        %v5097 = vld [vmem:[#allocation3 + $0x160] sm:$0xff]
        %v5098 = vld [vmem:[#allocation3 + $0x168] sm:$0xff]
        %v5099 = vld [vmem:[#allocation3 + $0x170] sm:$0xff]
        %v5100 = vld [vmem:[#allocation3 + $0x178] sm:$0xff]
        %v5101 = vld [vmem:[#allocation3 + $0x180] sm:$0xff]
        %v5102 = vld [vmem:[#allocation3 + $0x188] sm:$0xff]
        %v5103 = vld [vmem:[#allocation3 + $0x190] sm:$0xff]
        %v5104 = vld [vmem:[#allocation3 + $0x198] sm:$0xff]
        %v5105 = vld [vmem:[#allocation3 + $0x1a0] sm:$0xff]
        %v5106 = vld [vmem:[#allocation3 + $0x1a8] sm:$0xff]
        %v5107 = vld [vmem:[#allocation3 + $0x1b0] sm:$0xff]
        %v5108 = vld [vmem:[#allocation3 + $0x1b8] sm:$0xff]
        %v5109 = vld [vmem:[#allocation3 + $0x1c0] sm:$0xff]
        %v5110 = vld [vmem:[#allocation3 + $0x1c8] sm:$0xff]
        %v5111 = vld [vmem:[#allocation3 + $0x1d0] sm:$0xff]
        %v5112 = vld [vmem:[#allocation3 + $0x1d8] sm:$0xff]
        %v5113 = vld [vmem:[#allocation3 + $0x1e0] sm:$0xff]
        %v5114 = vld [vmem:[#allocation3 + $0x1e8] sm:$0xff]
        %v5115 = vld [vmem:[#allocation3 + $0x1f0] sm:$0xff]
        %v5116 = vld [vmem:[#allocation3 + $0x1f8] sm:$0xff]
        %s5117 = scalar_lea.vmem %s2, 16
        %v5118 = vld [vmem:[%s5117] sm:$0x3]
        %v5120 = vsel %vm348, %v5021, 0
        %v5123 = vsel %vm348, %v5022, 0
        %v5126 = vsel %vm348, %v5023, 0
        %v5129 = vsel %vm348, %v5024, 0
        %v5132 = vsel %vm348, %v5025, 0
        %v5135 = vsel %vm348, %v5026, 0
        %v5138 = vsel %vm348, %v5027, 0
        %v5141 = vsel %vm348, %v5028, 0
        %v5144 = vsel %vm348, %v5029, 0
        %v5147 = vsel %vm348, %v5030, 0
        %v5150 = vsel %vm348, %v5031, 0
        %v5153 = vsel %vm348, %v5032, 0
        %v5156 = vsel %vm348, %v5033, 0
        %v5159 = vsel %vm348, %v5034, 0
        %v5162 = vsel %vm348, %v5035, 0
        %v5165 = vsel %vm348, %v5036, 0
        %v5168 = vsel %vm348, %v5037, 0
        %v5171 = vsel %vm348, %v5038, 0
        %v5174 = vsel %vm348, %v5039, 0
        %v5177 = vsel %vm348, %v5040, 0
        %v5180 = vsel %vm348, %v5041, 0
        %v5183 = vsel %vm348, %v5042, 0
        %v5186 = vsel %vm348, %v5043, 0
        %v5189 = vsel %vm348, %v5044, 0
        %v5192 = vsel %vm348, %v5045, 0
        %v5195 = vsel %vm348, %v5046, 0
        %v5198 = vsel %vm348, %v5047, 0
        %v5201 = vsel %vm348, %v5048, 0
        %v5204 = vsel %vm348, %v5049, 0
        %v5207 = vsel %vm348, %v5050, 0
        %v5210 = vsel %vm348, %v5051, 0
        %v5213 = vsel %vm348, %v5052, 0
        %v5216 = vsel %vm750, %v5118, 0
        %5218 = vmatpush.bf16.msra.mxu0 0
        %5219 = vmatpush.bf16.msra.mxu0 0
        %5220 = vmatpush.bf16.msra.mxu0 0
        %5221 = vmatpush.bf16.msra.mxu0 0
        %5222 = vmatpush.bf16.msra.mxu0 0
        %5223 = vmatpush.bf16.msra.mxu0 0
        %5224 = vmatpush.bf16.msra.mxu0 0
        %5225 = vmatpush.bf16.msra.mxu0 %v5216
        %5226 = vmatmul.bf16.gmra.mxu0 %v5120
        %v5227 = vpop.f32.mrf.mxu0
        %v5228 = vadd.f32 0.0, %v5227
        %v5229 = vpop.f32.mrf.mxu0
        %v5230 = vadd.f32 0.0, %v5229
        %5231 = vmatmul.bf16.gmra.mxu0 %v5123
        %v5232 = vpop.f32.mrf.mxu0
        %v5233 = vadd.f32 0.0, %v5232
        %v5234 = vpop.f32.mrf.mxu0
        %v5235 = vadd.f32 0.0, %v5234
        %5236 = vmatmul.bf16.gmra.mxu0 %v5126
        %v5237 = vpop.f32.mrf.mxu0
        %v5238 = vadd.f32 0.0, %v5237
        %v5239 = vpop.f32.mrf.mxu0
        %v5240 = vadd.f32 0.0, %v5239
        %5241 = vmatmul.bf16.gmra.mxu0 %v5129
        %v5242 = vpop.f32.mrf.mxu0
        %v5243 = vadd.f32 0.0, %v5242
        %v5244 = vpop.f32.mrf.mxu0
        %v5245 = vadd.f32 0.0, %v5244
        %5246 = vmatmul.bf16.gmra.mxu0 %v5132
        %v5247 = vpop.f32.mrf.mxu0
        %v5248 = vadd.f32 0.0, %v5247
        %v5249 = vpop.f32.mrf.mxu0
        %v5250 = vadd.f32 0.0, %v5249
        %5251 = vmatmul.bf16.gmra.mxu0 %v5135
        %v5252 = vpop.f32.mrf.mxu0
        %v5253 = vadd.f32 0.0, %v5252
        %v5254 = vpop.f32.mrf.mxu0
        %v5255 = vadd.f32 0.0, %v5254
        %5256 = vmatmul.bf16.gmra.mxu0 %v5138
        %v5257 = vpop.f32.mrf.mxu0
        %v5258 = vadd.f32 0.0, %v5257
        %v5259 = vpop.f32.mrf.mxu0
        %v5260 = vadd.f32 0.0, %v5259
        %5261 = vmatmul.bf16.gmra.mxu0 %v5141
        %v5262 = vpop.f32.mrf.mxu0
        %v5263 = vadd.f32 0.0, %v5262
        %v5264 = vpop.f32.mrf.mxu0
        %v5265 = vadd.f32 0.0, %v5264
        %5266 = vmatmul.bf16.gmra.mxu0 %v5144
        %v5267 = vpop.f32.mrf.mxu0
        %v5268 = vadd.f32 0.0, %v5267
        %v5269 = vpop.f32.mrf.mxu0
        %v5270 = vadd.f32 0.0, %v5269
        %5271 = vmatmul.bf16.gmra.mxu0 %v5147
        %v5272 = vpop.f32.mrf.mxu0
        %v5273 = vadd.f32 0.0, %v5272
        %v5274 = vpop.f32.mrf.mxu0
        %v5275 = vadd.f32 0.0, %v5274
        %5276 = vmatmul.bf16.gmra.mxu0 %v5150
        %v5277 = vpop.f32.mrf.mxu0
        %v5278 = vadd.f32 0.0, %v5277
        %v5279 = vpop.f32.mrf.mxu0
        %v5280 = vadd.f32 0.0, %v5279
        %5281 = vmatmul.bf16.gmra.mxu0 %v5153
        %v5282 = vpop.f32.mrf.mxu0
        %v5283 = vadd.f32 0.0, %v5282
        %v5284 = vpop.f32.mrf.mxu0
        %v5285 = vadd.f32 0.0, %v5284
        %5286 = vmatmul.bf16.gmra.mxu0 %v5156
        %v5287 = vpop.f32.mrf.mxu0
        %v5288 = vadd.f32 0.0, %v5287
        %v5289 = vpop.f32.mrf.mxu0
        %v5290 = vadd.f32 0.0, %v5289
        %5291 = vmatmul.bf16.gmra.mxu0 %v5159
        %v5292 = vpop.f32.mrf.mxu0
        %v5293 = vadd.f32 0.0, %v5292
        %v5294 = vpop.f32.mrf.mxu0
        %v5295 = vadd.f32 0.0, %v5294
        %5296 = vmatmul.bf16.gmra.mxu0 %v5162
        %v5297 = vpop.f32.mrf.mxu0
        %v5298 = vadd.f32 0.0, %v5297
        %v5299 = vpop.f32.mrf.mxu0
        %v5300 = vadd.f32 0.0, %v5299
        %5301 = vmatmul.bf16.gmra.mxu0 %v5165
        %v5302 = vpop.f32.mrf.mxu0
        %v5303 = vadd.f32 0.0, %v5302
        %v5304 = vpop.f32.mrf.mxu0
        %v5305 = vadd.f32 0.0, %v5304
        %5306 = vmatmul.bf16.gmra.mxu0 %v5168
        %v5307 = vpop.f32.mrf.mxu0
        %v5308 = vadd.f32 0.0, %v5307
        %v5309 = vpop.f32.mrf.mxu0
        %v5310 = vadd.f32 0.0, %v5309
        %5311 = vmatmul.bf16.gmra.mxu0 %v5171
        %v5312 = vpop.f32.mrf.mxu0
        %v5313 = vadd.f32 0.0, %v5312
        %v5314 = vpop.f32.mrf.mxu0
        %v5315 = vadd.f32 0.0, %v5314
        %5316 = vmatmul.bf16.gmra.mxu0 %v5174
        %v5317 = vpop.f32.mrf.mxu0
        %v5318 = vadd.f32 0.0, %v5317
        %v5319 = vpop.f32.mrf.mxu0
        %v5320 = vadd.f32 0.0, %v5319
        %5321 = vmatmul.bf16.gmra.mxu0 %v5177
        %v5322 = vpop.f32.mrf.mxu0
        %v5323 = vadd.f32 0.0, %v5322
        %v5324 = vpop.f32.mrf.mxu0
        %v5325 = vadd.f32 0.0, %v5324
        %5326 = vmatmul.bf16.gmra.mxu0 %v5180
        %v5327 = vpop.f32.mrf.mxu0
        %v5328 = vadd.f32 0.0, %v5327
        %v5329 = vpop.f32.mrf.mxu0
        %v5330 = vadd.f32 0.0, %v5329
        %5331 = vmatmul.bf16.gmra.mxu0 %v5183
        %v5332 = vpop.f32.mrf.mxu0
        %v5333 = vadd.f32 0.0, %v5332
        %v5334 = vpop.f32.mrf.mxu0
        %v5335 = vadd.f32 0.0, %v5334
        %5336 = vmatmul.bf16.gmra.mxu0 %v5186
        %v5337 = vpop.f32.mrf.mxu0
        %v5338 = vadd.f32 0.0, %v5337
        %v5339 = vpop.f32.mrf.mxu0
        %v5340 = vadd.f32 0.0, %v5339
        %5341 = vmatmul.bf16.gmra.mxu0 %v5189
        %v5342 = vpop.f32.mrf.mxu0
        %v5343 = vadd.f32 0.0, %v5342
        %v5344 = vpop.f32.mrf.mxu0
        %v5345 = vadd.f32 0.0, %v5344
        %5346 = vmatmul.bf16.gmra.mxu0 %v5192
        %v5347 = vpop.f32.mrf.mxu0
        %v5348 = vadd.f32 0.0, %v5347
        %v5349 = vpop.f32.mrf.mxu0
        %v5350 = vadd.f32 0.0, %v5349
        %5351 = vmatmul.bf16.gmra.mxu0 %v5195
        %v5352 = vpop.f32.mrf.mxu0
        %v5353 = vadd.f32 0.0, %v5352
        %v5354 = vpop.f32.mrf.mxu0
        %v5355 = vadd.f32 0.0, %v5354
        %5356 = vmatmul.bf16.gmra.mxu0 %v5198
        %v5357 = vpop.f32.mrf.mxu0
        %v5358 = vadd.f32 0.0, %v5357
        %v5359 = vpop.f32.mrf.mxu0
        %v5360 = vadd.f32 0.0, %v5359
        %5361 = vmatmul.bf16.gmra.mxu0 %v5201
        %v5362 = vpop.f32.mrf.mxu0
        %v5363 = vadd.f32 0.0, %v5362
        %v5364 = vpop.f32.mrf.mxu0
        %v5365 = vadd.f32 0.0, %v5364
        %5366 = vmatmul.bf16.gmra.mxu0 %v5204
        %v5367 = vpop.f32.mrf.mxu0
        %v5368 = vadd.f32 0.0, %v5367
        %v5369 = vpop.f32.mrf.mxu0
        %v5370 = vadd.f32 0.0, %v5369
        %5371 = vmatmul.bf16.gmra.mxu0 %v5207
        %v5372 = vpop.f32.mrf.mxu0
        %v5373 = vadd.f32 0.0, %v5372
        %v5374 = vpop.f32.mrf.mxu0
        %v5375 = vadd.f32 0.0, %v5374
        %5376 = vmatmul.bf16.gmra.mxu0 %v5210
        %v5377 = vpop.f32.mrf.mxu0
        %v5378 = vadd.f32 0.0, %v5377
        %v5379 = vpop.f32.mrf.mxu0
        %v5380 = vadd.f32 0.0, %v5379
        %5381 = vmatmul.bf16.gmra.mxu0 %v5213
        %v5382 = vpop.f32.mrf.mxu0
        %v5383 = vadd.f32 0.0, %v5382
        %v5384 = vpop.f32.mrf.mxu0
        %v5385 = vadd.f32 0.0, %v5384
        %5386 = vdwg.mxu0
        %v5387 = vadd.f32 %v5053, %v5228
        %v5388 = vadd.f32 %v5054, %v5230
        %v5389 = vadd.f32 %v5055, %v5233
        %v5390 = vadd.f32 %v5056, %v5235
        %v5391 = vadd.f32 %v5057, %v5238
        %v5392 = vadd.f32 %v5058, %v5240
        %v5393 = vadd.f32 %v5059, %v5243
        %v5394 = vadd.f32 %v5060, %v5245
        %v5395 = vadd.f32 %v5061, %v5248
        %v5396 = vadd.f32 %v5062, %v5250
        %v5397 = vadd.f32 %v5063, %v5253
        %v5398 = vadd.f32 %v5064, %v5255
        %v5399 = vadd.f32 %v5065, %v5258
        %v5400 = vadd.f32 %v5066, %v5260
        %v5401 = vadd.f32 %v5067, %v5263
        %v5402 = vadd.f32 %v5068, %v5265
        %v5403 = vadd.f32 %v5069, %v5268
        %v5404 = vadd.f32 %v5070, %v5270
        %v5405 = vadd.f32 %v5071, %v5273
        %v5406 = vadd.f32 %v5072, %v5275
        %v5407 = vadd.f32 %v5073, %v5278
        %v5408 = vadd.f32 %v5074, %v5280
        %v5409 = vadd.f32 %v5075, %v5283
        %v5410 = vadd.f32 %v5076, %v5285
        %v5411 = vadd.f32 %v5077, %v5288
        %v5412 = vadd.f32 %v5078, %v5290
        %v5413 = vadd.f32 %v5079, %v5293
        %v5414 = vadd.f32 %v5080, %v5295
        %v5415 = vadd.f32 %v5081, %v5298
        %v5416 = vadd.f32 %v5082, %v5300
        %v5417 = vadd.f32 %v5083, %v5303
        %v5418 = vadd.f32 %v5084, %v5305
        %v5419 = vadd.f32 %v5085, %v5308
        %v5420 = vadd.f32 %v5086, %v5310
        %v5421 = vadd.f32 %v5087, %v5313
        %v5422 = vadd.f32 %v5088, %v5315
        %v5423 = vadd.f32 %v5089, %v5318
        %v5424 = vadd.f32 %v5090, %v5320
        %v5425 = vadd.f32 %v5091, %v5323
        %v5426 = vadd.f32 %v5092, %v5325
        %v5427 = vadd.f32 %v5093, %v5328
        %v5428 = vadd.f32 %v5094, %v5330
        %v5429 = vadd.f32 %v5095, %v5333
        %v5430 = vadd.f32 %v5096, %v5335
        %v5431 = vadd.f32 %v5097, %v5338
        %v5432 = vadd.f32 %v5098, %v5340
        %v5433 = vadd.f32 %v5099, %v5343
        %v5434 = vadd.f32 %v5100, %v5345
        %v5435 = vadd.f32 %v5101, %v5348
        %v5436 = vadd.f32 %v5102, %v5350
        %v5437 = vadd.f32 %v5103, %v5353
        %v5438 = vadd.f32 %v5104, %v5355
        %v5439 = vadd.f32 %v5105, %v5358
        %v5440 = vadd.f32 %v5106, %v5360
        %v5441 = vadd.f32 %v5107, %v5363
        %v5442 = vadd.f32 %v5108, %v5365
        %v5443 = vadd.f32 %v5109, %v5368
        %v5444 = vadd.f32 %v5110, %v5370
        %v5445 = vadd.f32 %v5111, %v5373
        %v5446 = vadd.f32 %v5112, %v5375
        %v5447 = vadd.f32 %v5113, %v5378
        %v5448 = vadd.f32 %v5114, %v5380
        %v5449 = vadd.f32 %v5115, %v5383
        %v5450 = vadd.f32 %v5116, %v5385
        %5451 = vst [vmem:[#allocation3] sm:$0xff] %v5387
        %5452 = vst [vmem:[#allocation3 + $0x8] sm:$0xff] %v5388
        %5453 = vst [vmem:[#allocation3 + $0x10] sm:$0xff] %v5389
        %5454 = vst [vmem:[#allocation3 + $0x18] sm:$0xff] %v5390
        %5455 = vst [vmem:[#allocation3 + $0x20] sm:$0xff] %v5391
        %5456 = vst [vmem:[#allocation3 + $0x28] sm:$0xff] %v5392
        %5457 = vst [vmem:[#allocation3 + $0x30] sm:$0xff] %v5393
        %5458 = vst [vmem:[#allocation3 + $0x38] sm:$0xff] %v5394
        %5459 = vst [vmem:[#allocation3 + $0x40] sm:$0xff] %v5395
        %5460 = vst [vmem:[#allocation3 + $0x48] sm:$0xff] %v5396
        %5461 = vst [vmem:[#allocation3 + $0x50] sm:$0xff] %v5397
        %5462 = vst [vmem:[#allocation3 + $0x58] sm:$0xff] %v5398
        %5463 = vst [vmem:[#allocation3 + $0x60] sm:$0xff] %v5399
        %5464 = vst [vmem:[#allocation3 + $0x68] sm:$0xff] %v5400
        %5465 = vst [vmem:[#allocation3 + $0x70] sm:$0xff] %v5401
        %5466 = vst [vmem:[#allocation3 + $0x78] sm:$0xff] %v5402
        %5467 = vst [vmem:[#allocation3 + $0x80] sm:$0xff] %v5403
        %5468 = vst [vmem:[#allocation3 + $0x88] sm:$0xff] %v5404
        %5469 = vst [vmem:[#allocation3 + $0x90] sm:$0xff] %v5405
        %5470 = vst [vmem:[#allocation3 + $0x98] sm:$0xff] %v5406
        %5471 = vst [vmem:[#allocation3 + $0xa0] sm:$0xff] %v5407
        %5472 = vst [vmem:[#allocation3 + $0xa8] sm:$0xff] %v5408
        %5473 = vst [vmem:[#allocation3 + $0xb0] sm:$0xff] %v5409
        %5474 = vst [vmem:[#allocation3 + $0xb8] sm:$0xff] %v5410
        %5475 = vst [vmem:[#allocation3 + $0xc0] sm:$0xff] %v5411
        %5476 = vst [vmem:[#allocation3 + $0xc8] sm:$0xff] %v5412
        %5477 = vst [vmem:[#allocation3 + $0xd0] sm:$0xff] %v5413
        %5478 = vst [vmem:[#allocation3 + $0xd8] sm:$0xff] %v5414
        %5479 = vst [vmem:[#allocation3 + $0xe0] sm:$0xff] %v5415
        %5480 = vst [vmem:[#allocation3 + $0xe8] sm:$0xff] %v5416
        %5481 = vst [vmem:[#allocation3 + $0xf0] sm:$0xff] %v5417
        %5482 = vst [vmem:[#allocation3 + $0xf8] sm:$0xff] %v5418
        %5483 = vst [vmem:[#allocation3 + $0x100] sm:$0xff] %v5419
        %5484 = vst [vmem:[#allocation3 + $0x108] sm:$0xff] %v5420
        %5485 = vst [vmem:[#allocation3 + $0x110] sm:$0xff] %v5421
        %5486 = vst [vmem:[#allocation3 + $0x118] sm:$0xff] %v5422
        %5487 = vst [vmem:[#allocation3 + $0x120] sm:$0xff] %v5423
        %5488 = vst [vmem:[#allocation3 + $0x128] sm:$0xff] %v5424
        %5489 = vst [vmem:[#allocation3 + $0x130] sm:$0xff] %v5425
        %5490 = vst [vmem:[#allocation3 + $0x138] sm:$0xff] %v5426
        %5491 = vst [vmem:[#allocation3 + $0x140] sm:$0xff] %v5427
        %5492 = vst [vmem:[#allocation3 + $0x148] sm:$0xff] %v5428
        %5493 = vst [vmem:[#allocation3 + $0x150] sm:$0xff] %v5429
        %5494 = vst [vmem:[#allocation3 + $0x158] sm:$0xff] %v5430
        %5495 = vst [vmem:[#allocation3 + $0x160] sm:$0xff] %v5431
        %5496 = vst [vmem:[#allocation3 + $0x168] sm:$0xff] %v5432
        %5497 = vst [vmem:[#allocation3 + $0x170] sm:$0xff] %v5433
        %5498 = vst [vmem:[#allocation3 + $0x178] sm:$0xff] %v5434
        %5499 = vst [vmem:[#allocation3 + $0x180] sm:$0xff] %v5435
        %5500 = vst [vmem:[#allocation3 + $0x188] sm:$0xff] %v5436
        %5501 = vst [vmem:[#allocation3 + $0x190] sm:$0xff] %v5437
        %5502 = vst [vmem:[#allocation3 + $0x198] sm:$0xff] %v5438
        %5503 = vst [vmem:[#allocation3 + $0x1a0] sm:$0xff] %v5439
        %5504 = vst [vmem:[#allocation3 + $0x1a8] sm:$0xff] %v5440
        %5505 = vst [vmem:[#allocation3 + $0x1b0] sm:$0xff] %v5441
        %5506 = vst [vmem:[#allocation3 + $0x1b8] sm:$0xff] %v5442
        %5507 = vst [vmem:[#allocation3 + $0x1c0] sm:$0xff] %v5443
        %5508 = vst [vmem:[#allocation3 + $0x1c8] sm:$0xff] %v5444
        %5509 = vst [vmem:[#allocation3 + $0x1d0] sm:$0xff] %v5445
        %5510 = vst [vmem:[#allocation3 + $0x1d8] sm:$0xff] %v5446
        %5511 = vst [vmem:[#allocation3 + $0x1e0] sm:$0xff] %v5447
        %5512 = vst [vmem:[#allocation3 + $0x1e8] sm:$0xff] %v5448
        %5513 = vst [vmem:[#allocation3 + $0x1f0] sm:$0xff] %v5449
        %5514 = vst [vmem:[#allocation3 + $0x1f8] sm:$0xff] %v5450
        %v5515 = vld [vmem:[#allocation3] sm:$0xff]
        %v5516 = vld [vmem:[#allocation3 + $0x8] sm:$0xff]
        %v5517 = vld [vmem:[#allocation3 + $0x10] sm:$0xff]
        %v5518 = vld [vmem:[#allocation3 + $0x18] sm:$0xff]
        %v5519 = vld [vmem:[#allocation3 + $0x20] sm:$0xff]
        %v5520 = vld [vmem:[#allocation3 + $0x28] sm:$0xff]
        %v5521 = vld [vmem:[#allocation3 + $0x30] sm:$0xff]
        %v5522 = vld [vmem:[#allocation3 + $0x38] sm:$0xff]
        %v5523 = vld [vmem:[#allocation3 + $0x40] sm:$0xff]
        %v5524 = vld [vmem:[#allocation3 + $0x48] sm:$0xff]
        %v5525 = vld [vmem:[#allocation3 + $0x50] sm:$0xff]
        %v5526 = vld [vmem:[#allocation3 + $0x58] sm:$0xff]
        %v5527 = vld [vmem:[#allocation3 + $0x60] sm:$0xff]
        %v5528 = vld [vmem:[#allocation3 + $0x68] sm:$0xff]
        %v5529 = vld [vmem:[#allocation3 + $0x70] sm:$0xff]
        %v5530 = vld [vmem:[#allocation3 + $0x78] sm:$0xff]
        %v5531 = vld [vmem:[#allocation3 + $0x80] sm:$0xff]
        %v5532 = vld [vmem:[#allocation3 + $0x88] sm:$0xff]
        %v5533 = vld [vmem:[#allocation3 + $0x90] sm:$0xff]
        %v5534 = vld [vmem:[#allocation3 + $0x98] sm:$0xff]
        %v5535 = vld [vmem:[#allocation3 + $0xa0] sm:$0xff]
        %v5536 = vld [vmem:[#allocation3 + $0xa8] sm:$0xff]
        %v5537 = vld [vmem:[#allocation3 + $0xb0] sm:$0xff]
        %v5538 = vld [vmem:[#allocation3 + $0xb8] sm:$0xff]
        %v5539 = vld [vmem:[#allocation3 + $0xc0] sm:$0xff]
        %v5540 = vld [vmem:[#allocation3 + $0xc8] sm:$0xff]
        %v5541 = vld [vmem:[#allocation3 + $0xd0] sm:$0xff]
        %v5542 = vld [vmem:[#allocation3 + $0xd8] sm:$0xff]
        %v5543 = vld [vmem:[#allocation3 + $0xe0] sm:$0xff]
        %v5544 = vld [vmem:[#allocation3 + $0xe8] sm:$0xff]
        %v5545 = vld [vmem:[#allocation3 + $0xf0] sm:$0xff]
        %v5546 = vld [vmem:[#allocation3 + $0xf8] sm:$0xff]
        %v5547 = vld [vmem:[#allocation3 + $0x100] sm:$0xff]
        %v5548 = vld [vmem:[#allocation3 + $0x108] sm:$0xff]
        %v5549 = vld [vmem:[#allocation3 + $0x110] sm:$0xff]
        %v5550 = vld [vmem:[#allocation3 + $0x118] sm:$0xff]
        %v5551 = vld [vmem:[#allocation3 + $0x120] sm:$0xff]
        %v5552 = vld [vmem:[#allocation3 + $0x128] sm:$0xff]
        %v5553 = vld [vmem:[#allocation3 + $0x130] sm:$0xff]
        %v5554 = vld [vmem:[#allocation3 + $0x138] sm:$0xff]
        %v5555 = vld [vmem:[#allocation3 + $0x140] sm:$0xff]
        %v5556 = vld [vmem:[#allocation3 + $0x148] sm:$0xff]
        %v5557 = vld [vmem:[#allocation3 + $0x150] sm:$0xff]
        %v5558 = vld [vmem:[#allocation3 + $0x158] sm:$0xff]
        %v5559 = vld [vmem:[#allocation3 + $0x160] sm:$0xff]
        %v5560 = vld [vmem:[#allocation3 + $0x168] sm:$0xff]
        %v5561 = vld [vmem:[#allocation3 + $0x170] sm:$0xff]
        %v5562 = vld [vmem:[#allocation3 + $0x178] sm:$0xff]
        %v5563 = vld [vmem:[#allocation3 + $0x180] sm:$0xff]
        %v5564 = vld [vmem:[#allocation3 + $0x188] sm:$0xff]
        %v5565 = vld [vmem:[#allocation3 + $0x190] sm:$0xff]
        %v5566 = vld [vmem:[#allocation3 + $0x198] sm:$0xff]
        %v5567 = vld [vmem:[#allocation3 + $0x1a0] sm:$0xff]
        %v5568 = vld [vmem:[#allocation3 + $0x1a8] sm:$0xff]
        %v5569 = vld [vmem:[#allocation3 + $0x1b0] sm:$0xff]
        %v5570 = vld [vmem:[#allocation3 + $0x1b8] sm:$0xff]
        %v5571 = vld [vmem:[#allocation3 + $0x1c0] sm:$0xff]
        %v5572 = vld [vmem:[#allocation3 + $0x1c8] sm:$0xff]
        %v5573 = vld [vmem:[#allocation3 + $0x1d0] sm:$0xff]
        %v5574 = vld [vmem:[#allocation3 + $0x1d8] sm:$0xff]
        %v5575 = vld [vmem:[#allocation3 + $0x1e0] sm:$0xff]
        %v5576 = vld [vmem:[#allocation3 + $0x1e8] sm:$0xff]
        %v5577 = vld [vmem:[#allocation3 + $0x1f0] sm:$0xff]
        %v5578 = vld [vmem:[#allocation3 + $0x1f8] sm:$0xff]
        %v5579 = vld [vmem:[%s3] sm:$0x1]
        %v5581 = vperm.slane %v5579, 0
        %v5583 = vadd.f32 %v5515, %v5581
        %v5584 = vadd.f32 %v5516, %v5581
        %v5585 = vadd.f32 %v5517, %v5581
        %v5586 = vadd.f32 %v5518, %v5581
        %v5587 = vadd.f32 %v5519, %v5581
        %v5588 = vadd.f32 %v5520, %v5581
        %v5589 = vadd.f32 %v5521, %v5581
        %v5590 = vadd.f32 %v5522, %v5581
        %v5591 = vadd.f32 %v5523, %v5581
        %v5592 = vadd.f32 %v5524, %v5581
        %v5593 = vadd.f32 %v5525, %v5581
        %v5594 = vadd.f32 %v5526, %v5581
        %v5595 = vadd.f32 %v5527, %v5581
        %v5596 = vadd.f32 %v5528, %v5581
        %v5597 = vadd.f32 %v5529, %v5581
        %v5598 = vadd.f32 %v5530, %v5581
        %v5599 = vadd.f32 %v5531, %v5581
        %v5600 = vadd.f32 %v5532, %v5581
        %v5601 = vadd.f32 %v5533, %v5581
        %v5602 = vadd.f32 %v5534, %v5581
        %v5603 = vadd.f32 %v5535, %v5581
        %v5604 = vadd.f32 %v5536, %v5581
        %v5605 = vadd.f32 %v5537, %v5581
        %v5606 = vadd.f32 %v5538, %v5581
        %v5607 = vadd.f32 %v5539, %v5581
        %v5608 = vadd.f32 %v5540, %v5581
        %v5609 = vadd.f32 %v5541, %v5581
        %v5610 = vadd.f32 %v5542, %v5581
        %v5611 = vadd.f32 %v5543, %v5581
        %v5612 = vadd.f32 %v5544, %v5581
        %v5613 = vadd.f32 %v5545, %v5581
        %v5614 = vadd.f32 %v5546, %v5581
        %v5615 = vadd.f32 %v5547, %v5581
        %v5616 = vadd.f32 %v5548, %v5581
        %v5617 = vadd.f32 %v5549, %v5581
        %v5618 = vadd.f32 %v5550, %v5581
        %v5619 = vadd.f32 %v5551, %v5581
        %v5620 = vadd.f32 %v5552, %v5581
        %v5621 = vadd.f32 %v5553, %v5581
        %v5622 = vadd.f32 %v5554, %v5581
        %v5623 = vadd.f32 %v5555, %v5581
        %v5624 = vadd.f32 %v5556, %v5581
        %v5625 = vadd.f32 %v5557, %v5581
        %v5626 = vadd.f32 %v5558, %v5581
        %v5627 = vadd.f32 %v5559, %v5581
        %v5628 = vadd.f32 %v5560, %v5581
        %v5629 = vadd.f32 %v5561, %v5581
        %v5630 = vadd.f32 %v5562, %v5581
        %v5631 = vadd.f32 %v5563, %v5581
        %v5632 = vadd.f32 %v5564, %v5581
        %v5633 = vadd.f32 %v5565, %v5581
        %v5634 = vadd.f32 %v5566, %v5581
        %v5635 = vadd.f32 %v5567, %v5581
        %v5636 = vadd.f32 %v5568, %v5581
        %v5637 = vadd.f32 %v5569, %v5581
        %v5638 = vadd.f32 %v5570, %v5581
        %v5639 = vadd.f32 %v5571, %v5581
        %v5640 = vadd.f32 %v5572, %v5581
        %v5641 = vadd.f32 %v5573, %v5581
        %v5642 = vadd.f32 %v5574, %v5581
        %v5643 = vadd.f32 %v5575, %v5581
        %v5644 = vadd.f32 %v5576, %v5581
        %v5645 = vadd.f32 %v5577, %v5581
        %v5646 = vadd.f32 %v5578, %v5581
        %v5647 = vmax.f32 %v5583, 0.0
        %v5648 = vmax.f32 %v5584, 0.0
        %v5649 = vmax.f32 %v5585, 0.0
        %v5650 = vmax.f32 %v5586, 0.0
        %v5651 = vmax.f32 %v5587, 0.0
        %v5652 = vmax.f32 %v5588, 0.0
        %v5653 = vmax.f32 %v5589, 0.0
        %v5654 = vmax.f32 %v5590, 0.0
        %v5655 = vmax.f32 %v5591, 0.0
        %v5656 = vmax.f32 %v5592, 0.0
        %v5657 = vmax.f32 %v5593, 0.0
        %v5658 = vmax.f32 %v5594, 0.0
        %v5659 = vmax.f32 %v5595, 0.0
        %v5660 = vmax.f32 %v5596, 0.0
        %v5661 = vmax.f32 %v5597, 0.0
        %v5662 = vmax.f32 %v5598, 0.0
        %v5663 = vmax.f32 %v5599, 0.0
        %v5664 = vmax.f32 %v5600, 0.0
        %v5665 = vmax.f32 %v5601, 0.0
        %v5666 = vmax.f32 %v5602, 0.0
        %v5667 = vmax.f32 %v5603, 0.0
        %v5668 = vmax.f32 %v5604, 0.0
        %v5669 = vmax.f32 %v5605, 0.0
        %v5670 = vmax.f32 %v5606, 0.0
        %v5671 = vmax.f32 %v5607, 0.0
        %v5672 = vmax.f32 %v5608, 0.0
        %v5673 = vmax.f32 %v5609, 0.0
        %v5674 = vmax.f32 %v5610, 0.0
        %v5675 = vmax.f32 %v5611, 0.0
        %v5676 = vmax.f32 %v5612, 0.0
        %v5677 = vmax.f32 %v5613, 0.0
        %v5678 = vmax.f32 %v5614, 0.0
        %v5679 = vmax.f32 %v5615, 0.0
        %v5680 = vmax.f32 %v5616, 0.0
        %v5681 = vmax.f32 %v5617, 0.0
        %v5682 = vmax.f32 %v5618, 0.0
        %v5683 = vmax.f32 %v5619, 0.0
        %v5684 = vmax.f32 %v5620, 0.0
        %v5685 = vmax.f32 %v5621, 0.0
        %v5686 = vmax.f32 %v5622, 0.0
        %v5687 = vmax.f32 %v5623, 0.0
        %v5688 = vmax.f32 %v5624, 0.0
        %v5689 = vmax.f32 %v5625, 0.0
        %v5690 = vmax.f32 %v5626, 0.0
        %v5691 = vmax.f32 %v5627, 0.0
        %v5692 = vmax.f32 %v5628, 0.0
        %v5693 = vmax.f32 %v5629, 0.0
        %v5694 = vmax.f32 %v5630, 0.0
        %v5695 = vmax.f32 %v5631, 0.0
        %v5696 = vmax.f32 %v5632, 0.0
        %v5697 = vmax.f32 %v5633, 0.0
        %v5698 = vmax.f32 %v5634, 0.0
        %v5699 = vmax.f32 %v5635, 0.0
        %v5700 = vmax.f32 %v5636, 0.0
        %v5701 = vmax.f32 %v5637, 0.0
        %v5702 = vmax.f32 %v5638, 0.0
        %v5703 = vmax.f32 %v5639, 0.0
        %v5704 = vmax.f32 %v5640, 0.0
        %v5705 = vmax.f32 %v5641, 0.0
        %v5706 = vmax.f32 %v5642, 0.0
        %v5707 = vmax.f32 %v5643, 0.0
        %v5708 = vmax.f32 %v5644, 0.0
        %v5709 = vmax.f32 %v5645, 0.0
        %v5710 = vmax.f32 %v5646, 0.0
        %5711 = vst [vmem:[%s206] sm:$0xff] %v5647
        %5712 = vst [vmem:[%s206 + $0x8] sm:$0xff] %v5648
        %5713 = vst [vmem:[%s206 + $0x10] sm:$0xff] %v5649
        %5714 = vst [vmem:[%s206 + $0x18] sm:$0xff] %v5650
        %5715 = vst [vmem:[%s206 + $0x20] sm:$0xff] %v5651
        %5716 = vst [vmem:[%s206 + $0x28] sm:$0xff] %v5652
        %5717 = vst [vmem:[%s206 + $0x30] sm:$0xff] %v5653
        %5718 = vst [vmem:[%s206 + $0x38] sm:$0xff] %v5654
        %5719 = vst [vmem:[%s206 + $0x40] sm:$0xff] %v5655
        %5720 = vst [vmem:[%s206 + $0x48] sm:$0xff] %v5656
        %5721 = vst [vmem:[%s206 + $0x50] sm:$0xff] %v5657
        %5722 = vst [vmem:[%s206 + $0x58] sm:$0xff] %v5658
        %5723 = vst [vmem:[%s206 + $0x60] sm:$0xff] %v5659
        %5724 = vst [vmem:[%s206 + $0x68] sm:$0xff] %v5660
        %5725 = vst [vmem:[%s206 + $0x70] sm:$0xff] %v5661
        %5726 = vst [vmem:[%s206 + $0x78] sm:$0xff] %v5662
        %5727 = vst [vmem:[%s206 + $0x80] sm:$0xff] %v5663
        %5728 = vst [vmem:[%s206 + $0x88] sm:$0xff] %v5664
        %5729 = vst [vmem:[%s206 + $0x90] sm:$0xff] %v5665
        %5730 = vst [vmem:[%s206 + $0x98] sm:$0xff] %v5666
        %5731 = vst [vmem:[%s206 + $0xa0] sm:$0xff] %v5667
        %5732 = vst [vmem:[%s206 + $0xa8] sm:$0xff] %v5668
        %5733 = vst [vmem:[%s206 + $0xb0] sm:$0xff] %v5669
        %5734 = vst [vmem:[%s206 + $0xb8] sm:$0xff] %v5670
        %5735 = vst [vmem:[%s206 + $0xc0] sm:$0xff] %v5671
        %5736 = vst [vmem:[%s206 + $0xc8] sm:$0xff] %v5672
        %5737 = vst [vmem:[%s206 + $0xd0] sm:$0xff] %v5673
        %5738 = vst [vmem:[%s206 + $0xd8] sm:$0xff] %v5674
        %5739 = vst [vmem:[%s206 + $0xe0] sm:$0xff] %v5675
        %5740 = vst [vmem:[%s206 + $0xe8] sm:$0xff] %v5676
        %5741 = vst [vmem:[%s206 + $0xf0] sm:$0xff] %v5677
        %5742 = vst [vmem:[%s206 + $0xf8] sm:$0xff] %v5678
        %5743 = vst [vmem:[%s206 + $0x100] sm:$0xff] %v5679
        %5744 = vst [vmem:[%s206 + $0x108] sm:$0xff] %v5680
        %5745 = vst [vmem:[%s206 + $0x110] sm:$0xff] %v5681
        %5746 = vst [vmem:[%s206 + $0x118] sm:$0xff] %v5682
        %5747 = vst [vmem:[%s206 + $0x120] sm:$0xff] %v5683
        %5748 = vst [vmem:[%s206 + $0x128] sm:$0xff] %v5684
        %5749 = vst [vmem:[%s206 + $0x130] sm:$0xff] %v5685
        %5750 = vst [vmem:[%s206 + $0x138] sm:$0xff] %v5686
        %5751 = vst [vmem:[%s206 + $0x140] sm:$0xff] %v5687
        %5752 = vst [vmem:[%s206 + $0x148] sm:$0xff] %v5688
        %5753 = vst [vmem:[%s206 + $0x150] sm:$0xff] %v5689
        %5754 = vst [vmem:[%s206 + $0x158] sm:$0xff] %v5690
        %5755 = vst [vmem:[%s206 + $0x160] sm:$0xff] %v5691
        %5756 = vst [vmem:[%s206 + $0x168] sm:$0xff] %v5692
        %5757 = vst [vmem:[%s206 + $0x170] sm:$0xff] %v5693
        %5758 = vst [vmem:[%s206 + $0x178] sm:$0xff] %v5694
        %5759 = vst [vmem:[%s206 + $0x180] sm:$0xff] %v5695
        %5760 = vst [vmem:[%s206 + $0x188] sm:$0xff] %v5696
        %5761 = vst [vmem:[%s206 + $0x190] sm:$0xff] %v5697
        %5762 = vst [vmem:[%s206 + $0x198] sm:$0xff] %v5698
        %5763 = vst [vmem:[%s206 + $0x1a0] sm:$0xff] %v5699
        %5764 = vst [vmem:[%s206 + $0x1a8] sm:$0xff] %v5700
        %5765 = vst [vmem:[%s206 + $0x1b0] sm:$0xff] %v5701
        %5766 = vst [vmem:[%s206 + $0x1b8] sm:$0xff] %v5702
        %5767 = vst [vmem:[%s206 + $0x1c0] sm:$0xff] %v5703
        %5768 = vst [vmem:[%s206 + $0x1c8] sm:$0xff] %v5704
        %5769 = vst [vmem:[%s206 + $0x1d0] sm:$0xff] %v5705
        %5770 = vst [vmem:[%s206 + $0x1d8] sm:$0xff] %v5706
        %5771 = vst [vmem:[%s206 + $0x1e0] sm:$0xff] %v5707
        %5772 = vst [vmem:[%s206 + $0x1e8] sm:$0xff] %v5708
        %5773 = vst [vmem:[%s206 + $0x1f0] sm:$0xff] %v5709
        %5774 = vst [vmem:[%s206 + $0x1f8] sm:$0xff] %v5710
        %s5775 = sand.u32 %s120, 1
        %s5776 = scalar_lea.sflag [#allocation5], %s5775
        %s5777 = sand.u32 %s120, 1
        %s5778 = smul.addr %s5777, 512
        %s5779 = scalar_lea.vmem [#allocation4], %s5778
        // Predicated region
        $region37: #{tpu_custom_call.1} parent=35 // pred_check
          %p5780 = pneg %p130
        $region38: #{tpu_custom_call.1} parent=35 // pred_check_branch
          %5782 = sbr.rel (%p5780) target = $region40
        $region39: #{tpu_custom_call.1} parent=35 // pred_region
          %s5783 = smul.u32 64, %s18
          %5785 = vsyncadd %s5776, 0
          %s5786 = smul.addr %s5783, 8
          %s5787 = scalar_lea.hbm %s4, %s5786
          %s5788 = sshll.u32 %s5779, 4
          %s5789 = int_to_ptr.vmem [resolvable:$true] %s5788
          %s5790 = sshll.u32 %s5787, 4
          %s5791 = int_to_ptr.hbm [resolvable:$true] %s5790
          %5796 = dma.vmem_to_hbm [thread:$0]  %s5789, 8192, %s5791, %s5776, 128, 128, 8
        $region40: #{tpu_custom_call.1} parent=35 // pred_fallthru
          _
      $region36: #{tpu_custom_call.1} parent=5 // pred_fallthru
        _
      %p5797 = scmp.le.s32.totalorder 2, %s13
      // Predicated region
      $region41: #{tpu_custom_call.1} parent=5 // pred_check
        %p5798 = pneg %p5797
      $region42: #{tpu_custom_call.1} parent=5 // pred_check_branch
        %5800 = sbr.rel (%p5798) target = $region44
      $region43: #{tpu_custom_call.1} parent=5 // pred_region
        %s5801 = ssub.s32 %s13, 2
        // Predicated region
        $region45: #{tpu_custom_call.1} parent=43 // pred_check
          %p5802 = pneg %p136
        $region46: #{tpu_custom_call.1} parent=43 // pred_check_branch
          %5804 = sbr.rel (%p5802) target = $region48
        $region47: #{tpu_custom_call.1} parent=43 // pred_region
          %s5805 = sand.u32 %s121, 1
          %s5806 = scalar_lea.sflag [#allocation5], %s5805
          %s5807 = sand.u32 %s121, 1
          %s5808 = smul.addr %s5807, 512
          %s5809 = scalar_lea.vmem [#allocation4], %s5808
          %5811 = dma.done %s5806, 8192
        $region48: #{tpu_custom_call.1} parent=43 // pred_fallthru
          _
      $region44: #{tpu_custom_call.1} parent=5 // pred_fallthru
        _
    $region6: #{tpu_custom_call.1} parent=1 // loop_footer
      %s17 = sadd.s32 1, %s13
    $region7: #{tpu_custom_call.1} parent=1 // loop_footer_branch
      %12 = sbr.rel target = $region3
    $region8: #{tpu_custom_call.1} parent=1 // loop_exit
      _
    %5812 = vsyncpa [#allocation5], 1
    %s5813 = scalar_lea.sflag [#allocation5], 1
    %5814 = vsyncpa %s5813, 1

</llo_original>
